<compile_context>
chip_gen: v6e
topology: v6e:2x2x1
jax: 0.10.0
libtpu: 0.0.40
codegen_flags: <defaults>
</compile_context>

<pallas_src>
import functools
import inspect

import jax
import jax.numpy as jnp
from jax import lax
from jax.experimental import pallas as pl
from jax.experimental.pallas import tpu as pltpu


# Feature-detect BlockSpec.pipeline_mode (perf-review #2); fall back gracefully
# on JAX versions without it so the kernel always runs.
try:
    _HAS_PIPELINE_MODE = (
        hasattr(pl, "Buffered")
        and "pipeline_mode" in inspect.signature(pl.BlockSpec).parameters)
except (TypeError, ValueError):
    _HAS_PIPELINE_MODE = False


# ----------------------------- Kernel helpers --------------------------------

def _conv3_rows(x, w_ref, b_ref):
    """VALID 3x3 conv + bias + ReLU on a lane-dense (H_in, K) activation slab.

    x:     (H_in, K)           lane index = w*Cin + ci
    w_ref: (3, K, Wout*Cout)   banded row-Toeplitz weights, one matmul per kh
    b_ref: (1, Wout*Cout)      bias tiled along Wout
    -> (H_out, Wout*Cout), H_out = H_in - 2
    """
    h_out = x.shape[0] - 2
    # Perf-review #6: kh=1,2 operands start at sublane offsets 1/2; kept as
    # plain slices (see header note).
    acc = jnp.dot(x[0:h_out, :], w_ref[0], preferred_element_type=jnp.float32)
    acc = acc + jnp.dot(x[1:h_out + 1, :], w_ref[1],
                        preferred_element_type=jnp.float32)
    acc = acc + jnp.dot(x[2:h_out + 2, :], w_ref[2],
                        preferred_element_type=jnp.float32)
    return jnp.maximum(acc + b_ref[...], 0.0)


def _pool3_h(x, oh):
    """Max over row triplets (floor mode): (>=3*oh, L) -> (oh, L)."""
    l = x.shape[1]
    return jnp.max(x[:3 * oh, :].reshape(oh, 3, l), axis=1)


def _pool3_w_uncompacted(x, c):
    """W-direction 3-wide/stride-3 max WITHOUT compacting lanes (review #7).

    x: (R, L) with lane index = w*c + ci.  Returns m of shape (R, L - 2*c) with
    m[:, j] = max(x[:, j], x[:, j+c], x[:, j+2c]); the pooled value of output
    column ow, channel ci sits at lane 3*ow*c + ci.  Lane compaction is folded
    into the next matmul (zero-row-expanded banded weights / selection matrix),
    so no lane-splitting reshape or gather is needed.
    """
    l = x.shape[1]
    a = x[:, 0:l - 2 * c]
    b = x[:, c:l - c]
    d = x[:, 2 * c:l]
    return jnp.maximum(jnp.maximum(a, b), d)


def _fused_kernel(x_ref, w1_ref, b1_ref, w2_ref, b2_ref, w3_ref, b3_ref,
                  sel_ref, o_ref, *, c2, c3, hp1, hp2):
    """Whole FeatureExtractor forward for one batch element (Cin = 1)."""
    x = x_ref[0]                                        # (H, W)
    a1 = _conv3_rows(x, w1_ref, b1_ref)                 # (H-2, (W-2)*12)
    a2 = _conv3_rows(a1, w2_ref, b2_ref)                # (H-4, (W-4)*12)
    p1 = _pool3_w_uncompacted(_pool3_h(a2, hp1), c2)    # (hp1, (w2s-2)*12), uncompacted lanes
    a3 = _conv3_rows(p1, w3_ref, b3_ref)                # (hp1-2, w3s*24)
    p2 = _pool3_w_uncompacted(_pool3_h(a3, hp2), c3)    # (hp2, (w3s-2)*24), uncompacted lanes
    # Final lane compaction as one tiny constant MXU matmul (no gather).
    o_ref[0] = jnp.dot(p2, sel_ref[...], preferred_element_type=jnp.float32)


# --------------------- Hoisted, once-per-model preparation -------------------

def _band_weights(w, w_in):
    """(3,3,Cin,Cout) conv weight -> (3, w_in*Cin, (w_in-2)*Cout) banded matrices.

    band[kh, wi*Cin+ci, ow*Cout+co] = w[kh, wi-ow, ci, co]  if 0 <= wi-ow <= 2.
    """
    _, _, cin, cout = w.shape
    w_out = w_in - 2
    wi = jnp.arange(w_in)[:, None]
    ow = jnp.arange(w_out)[None, :]
    d = wi - ow
    valid = ((d >= 0) & (d <= 2)).astype(w.dtype)
    g = w[:, jnp.clip(d, 0, 2), :, :]                     # (3, w_in, w_out, cin, cout)
    g = g * valid[None, :, :, None, None]
    g = jnp.transpose(g, (0, 1, 3, 2, 4))                 # (3, w_in, cin, w_out, cout)
    return g.reshape(3, w_in * cin, w_out * cout)


def _expand_band_rows(band, w_logical, cin, expanded_k, lane_stride):
    """Scatter banded rows wi*cin+ci into rows wi*lane_stride+ci of a zero matrix.

    Lets the banded conv read the UNcompacted output of the W-direction pool
    (lane_stride = 3*cin for a stride-3 pool); unused lanes hit zero rows.
    """
    rows = (jnp.arange(w_logical)[:, None] * lane_stride
            + jnp.arange(cin)[None, :]).reshape(-1)
    out = jnp.zeros((band.shape[0], expanded_k, band.shape[2]), band.dtype)
    return out.at[:, rows, :].set(band)


def _pool_w_selection(w_out, c, expanded_k):
    """(expanded_k, w_out*c) 0/1 matrix mapping uncompacted lane 3*ow*c+ci -> ow*c+ci."""
    src = (jnp.arange(w_out)[:, None] * (3 * c)
           + jnp.arange(c)[None, :]).reshape(-1)
    sel = jnp.zeros((expanded_k, w_out * c), jnp.float32)
    return sel.at[src, jnp.arange(w_out * c)].set(1.0)


def _tile_bias(b, w_out):
    return jnp.tile(b, w_out).reshape(1, w_out * b.shape[0])


def prepare_params(params, input_hw):
    """Build all kernel-side constants ONCE (perf-review #1).

    Returns (w1b, b1t, w2b, b2t, w3b, b3t, sel) device arrays that are passed
    directly to feature_extractor_fwd on every call.
    """
    (w1, b1), (w2, b2), (w3, b3) = params
    h, w = input_hw
    del h
    c2, c3 = w2.shape[3], w3.shape[3]

    w1s = w - 2                       # width after conv1
    w2s = w1s - 2                     # width after conv2
    wp1 = w2s // 3                    # width after pool1 (floor)
    w3s = wp1 - 2                     # width after conv3
    wp2 = w3s // 3                    # width after pool2 (floor)

    k2 = (w2s - 2) * c2               # uncompacted lane count fed to conv3
    k3 = (w3s - 2) * c3               # uncompacted lane count fed to final compaction

    w1b = _band_weights(w1, w)                                   # (3, w,       w1s*12)
    w2b = _band_weights(w2, w1s)                                 # (3, w1s*12,  w2s*12)
    w3b = _expand_band_rows(_band_weights(w3, wp1),              # (3, k2,      w3s*24)
                            wp1, c2, k2, 3 * c2)
    sel = _pool_w_selection(wp2, c3, k3)                         # (k3, wp2*24)

    b1t = _tile_bias(b1, w1s)
    b2t = _tile_bias(b2, w2s)
    b3t = _tile_bias(b3, w3s)
    return (w1b, b1t, w2b, b2t, w3b, b3t, sel)


# ------------------------------ Forward wrapper -------------------------------

def _const_spec(shape):
    """Full-array, grid-invariant operand; single-buffered when supported (#2)."""
    index_map = lambda i: (0,) * len(shape)
    if _HAS_PIPELINE_MODE:
        return pl.BlockSpec(shape, index_map, pipeline_mode=pl.Buffered(1))
    return pl.BlockSpec(shape, index_map)


@jax.jit
def feature_extractor_fwd(x_nchw, prepared):
    """Forward pass matching the PyTorch FeatureExtractor.

    x_nchw:   (N, 1, H, W) float32
    prepared: output of prepare_params(params, (H, W))
    returns:  (N, 24, H_out, W_out) float32  (NCHW, same as PyTorch)
    """
    w1b, b1t, w2b, b2t, w3b, b3t, sel = prepared
    n, cin, h, w = x_nchw.shape
    assert cin == 1

    c2 = b2t.shape[1] // (w - 4)
    c3 = b3t.shape[1] // ((w - 4) // 3 - 2)
    hp1 = (h - 4) // 3
    wp1 = (w - 4) // 3
    hp2 = (hp1 - 2) // 3
    wp2 = (wp1 - 2) // 3

    x = x_nchw.reshape(n, h, w)       # Cin == 1: pure reshape, no transpose

    kernel = functools.partial(_fused_kernel, c2=c2, c3=c3, hp1=hp1, hp2=hp2)
    out_slab = pl.pallas_call(
        kernel,
        out_shape=jax.ShapeDtypeStruct((n, hp2, wp2 * c3), jnp.float32),
        # Perf-review #5: one batch element per grid step; stack batch rows
        # into the matmul M dimension only if N grows well beyond 2.
        grid=(n,),
        in_specs=[
            pl.BlockSpec((1, h, w), lambda i: (i, 0, 0)),
            _const_spec(w1b.shape),
            _const_spec(b1t.shape),
            _const_spec(w2b.shape),
            _const_spec(b2t.shape),
            _const_spec(w3b.shape),
            _const_spec(b3t.shape),
            _const_spec(sel.shape),
        ],
        out_specs=pl.BlockSpec((1, hp2, wp2 * c3), lambda i: (i, 0, 0)),
        compiler_params=pltpu.CompilerParams(
            # Perf-review #4: batch axis is independent -> "parallel".
            # TODO(synk): on v7x verify with xprof that both TensorCores take
            # grid steps; if one idles, switch to pltpu.CORE_PARALLEL.
            dimension_semantics=("parallel",)),
    )(x, w1b, b1t, w2b, b2t, w3b, b3t, sel)

    out = out_slab.reshape(n, hp2, wp2, c3)         # (N, 3, 3, 24)
    return jnp.transpose(out, (0, 3, 1, 2))         # -> NCHW (N, 24, 3, 3)


# --------------------------- Parameter init ----------------------------------

def init_params(key):
    """Deterministic init. Weight layout: (kh, kw, Cin, Cout); bias: (Cout,)."""
    def conv_init(k, cin, cout):
        kw_key, kb_key = jax.random.split(k)
        fan_in = cin * 3 * 3
        bound = 1.0 / jnp.sqrt(fan_in)
        wgt = jax.random.uniform(kw_key, (3, 3, cin, cout), jnp.float32,
                                 -bound, bound)
        b = jax.random.uniform(kb_key, (cout,), jnp.float32, -bound, bound)
        return wgt, b

    k1, k2, k3 = jax.random.split(key, 3)
    return (conv_init(k1, 1, 12), conv_init(k2, 12, 12), conv_init(k3, 12, 24))


# --------------------------- Pure-JAX reference -------------------------------

def _ref_forward(x_nchw, params):
    h = x_nchw
    for i, (w, b) in enumerate(params):
        w_oihw = jnp.transpose(w, (3, 2, 0, 1))
        h = lax.conv_general_dilated(h, w_oihw, (1, 1), "VALID",
                                     dimension_numbers=("NCHW", "OIHW", "NCHW"))
        h = jnp.maximum(h + b[None, :, None, None], 0.0)
        if i in (1, 2):  # MaxPool2d(3) after 2nd and 3rd conv blocks
            h = lax.reduce_window(h, -jnp.inf, lax.max,
                                  (1, 1, 3, 3), (1, 1, 3, 3), "VALID")
    return h


# ------------------------------- Main -----------------------------------------

if __name__ == "__main__":
    key = jax.random.PRNGKey(0)
    k_param, k_x = jax.random.split(key)

    params = init_params(k_param)
    x = jax.random.normal(k_x, (2, 1, 40, 40), jnp.float32)

    # Hoisted once-per-model preparation (perf-review #1).
    prepared = prepare_params(params, input_hw=(40, 40))

    out = feature_extractor_fwd(x, prepared)
    out = jax.block_until_ready(out)

    ref = _ref_forward(x, params)
    assert out.shape == ref.shape == (2, 24, 3, 3), (out.shape, ref.shape)
    assert jnp.allclose(out, ref, atol=1e-3, rtol=1e-3), \
        float(jnp.max(jnp.abs(out - ref)))

    print("KERNEL_OK")
</pallas_src>

<mosaic_0001>
module attributes {stable_mosaic.version = 11 : i64} {
  func.func @_fused_kernel(%arg0: i32, %arg1: memref<1x40x40xf32, #tpu.memory_space<vmem>>, %arg2: memref<3x40x456xf32, #tpu.memory_space<vmem>>, %arg3: memref<1x456xf32, #tpu.memory_space<vmem>>, %arg4: memref<3x456x432xf32, #tpu.memory_space<vmem>>, %arg5: memref<1x432xf32, #tpu.memory_space<vmem>>, %arg6: memref<3x408x240xf32, #tpu.memory_space<vmem>>, %arg7: memref<1x240xf32, #tpu.memory_space<vmem>>, %arg8: memref<192x72xf32, #tpu.memory_space<vmem>>, %arg9: memref<1x3x72xf32, #tpu.memory_space<vmem>>) attributes {dimension_semantics = [#tpu.dimension_semantics<parallel>], iteration_bounds = array<i64: 2>, scalar_prefetch = 0 : i64, scratch_operands = 0 : i64, tpu.core_type = #tpu.core_type<tc>, window_params = [{transform_indices = @transform_0, window_bounds = array<i64: 1, 40, 40>}, {pipeline_mode = #tpu.pipeline_mode<synchronous>, transform_indices = @transform_1, window_bounds = array<i64: 3, 40, 456>}, {pipeline_mode = #tpu.pipeline_mode<synchronous>, transform_indices = @transform_2, window_bounds = array<i64: 1, 456>}, {pipeline_mode = #tpu.pipeline_mode<synchronous>, transform_indices = @transform_3, window_bounds = array<i64: 3, 456, 432>}, {pipeline_mode = #tpu.pipeline_mode<synchronous>, transform_indices = @transform_4, window_bounds = array<i64: 1, 432>}, {pipeline_mode = #tpu.pipeline_mode<synchronous>, transform_indices = @transform_5, window_bounds = array<i64: 3, 408, 240>}, {pipeline_mode = #tpu.pipeline_mode<synchronous>, transform_indices = @transform_6, window_bounds = array<i64: 1, 240>}, {pipeline_mode = #tpu.pipeline_mode<synchronous>, transform_indices = @transform_7, window_bounds = array<i64: 192, 72>}, {transform_indices = @transform_8, window_bounds = array<i64: 1, 3, 72>}]} {
    %c0 = arith.constant 0 : index
    %c0_0 = arith.constant 0 : index
    %c0_1 = arith.constant 0 : index
    %0 = vector.load %arg1[%c0, %c0_0, %c0_1] : memref<1x40x40xf32, #tpu.memory_space<vmem>>, vector<1x40x40xf32>
    %1 = vector.shape_cast %0 : vector<1x40x40xf32> to vector<40x40xf32>
    %2 = vector.extract_strided_slice %1 {offsets = [0, 0], sizes = [38, 40], strides = [1, 1]} : vector<40x40xf32> to vector<38x40xf32>
    %c0_2 = arith.constant 0 : index
    %c0_3 = arith.constant 0 : index
    %c0_4 = arith.constant 0 : index
    %3 = vector.load %arg2[%c0_2, %c0_3, %c0_4] : memref<3x40x456xf32, #tpu.memory_space<vmem>>, vector<1x40x456xf32>
    %4 = vector.shape_cast %3 : vector<1x40x456xf32> to vector<40x456xf32>
    %cst = arith.constant dense<0.000000e+00> : vector<38x456xf32>
    %5 = tpu.matmul %2, %4, %cst {dimension_numbers = #tpu.dot_dimension_numbers<[1], [0], [0], [1], [0, 0, 1, 1], [], []>} : vector<38x40xf32>, vector<40x456xf32>, vector<38x456xf32> -> vector<38x456xf32>
    %6 = vector.extract_strided_slice %1 {offsets = [1, 0], sizes = [38, 40], strides = [1, 1]} : vector<40x40xf32> to vector<38x40xf32>
    %c1 = arith.constant 1 : index
    %c0_5 = arith.constant 0 : index
    %c0_6 = arith.constant 0 : index
    %7 = vector.load %arg2[%c1, %c0_5, %c0_6] : memref<3x40x456xf32, #tpu.memory_space<vmem>>, vector<1x40x456xf32>
    %8 = vector.shape_cast %7 : vector<1x40x456xf32> to vector<40x456xf32>
    %cst_7 = arith.constant dense<0.000000e+00> : vector<38x456xf32>
    %9 = tpu.matmul %6, %8, %cst_7 {dimension_numbers = #tpu.dot_dimension_numbers<[1], [0], [0], [1], [0, 0, 1, 1], [], []>} : vector<38x40xf32>, vector<40x456xf32>, vector<38x456xf32> -> vector<38x456xf32>
    %10 = arith.addf %5, %9 : vector<38x456xf32>
    %11 = vector.extract_strided_slice %1 {offsets = [2, 0], sizes = [38, 40], strides = [1, 1]} : vector<40x40xf32> to vector<38x40xf32>
    %c2 = arith.constant 2 : index
    %c0_8 = arith.constant 0 : index
    %c0_9 = arith.constant 0 : index
    %12 = vector.load %arg2[%c2, %c0_8, %c0_9] : memref<3x40x456xf32, #tpu.memory_space<vmem>>, vector<1x40x456xf32>
    %13 = vector.shape_cast %12 : vector<1x40x456xf32> to vector<40x456xf32>
    %cst_10 = arith.constant dense<0.000000e+00> : vector<38x456xf32>
    %14 = tpu.matmul %11, %13, %cst_10 {dimension_numbers = #tpu.dot_dimension_numbers<[1], [0], [0], [1], [0, 0, 1, 1], [], []>} : vector<38x40xf32>, vector<40x456xf32>, vector<38x456xf32> -> vector<38x456xf32>
    %15 = arith.addf %10, %14 : vector<38x456xf32>
    %c0_11 = arith.constant 0 : index
    %c0_12 = arith.constant 0 : index
    %16 = vector.load %arg3[%c0_11, %c0_12] : memref<1x456xf32, #tpu.memory_space<vmem>>, vector<1x456xf32>
    %17 = vector.broadcast %16 : vector<1x456xf32> to vector<38x456xf32>
    %18 = arith.addf %15, %17 : vector<38x456xf32>
    %cst_13 = arith.constant 0.000000e+00 : f32
    %19 = vector.broadcast %cst_13 : f32 to vector<38x456xf32>
    %20 = arith.maximumf %18, %19 : vector<38x456xf32>
    %21 = vector.extract_strided_slice %20 {offsets = [0, 0], sizes = [36, 456], strides = [1, 1]} : vector<38x456xf32> to vector<36x456xf32>
    %c0_14 = arith.constant 0 : index
    %c0_15 = arith.constant 0 : index
    %c0_16 = arith.constant 0 : index
    %22 = vector.load %arg4[%c0_14, %c0_15, %c0_16] : memref<3x456x432xf32, #tpu.memory_space<vmem>>, vector<1x456x432xf32>
    %23 = vector.shape_cast %22 : vector<1x456x432xf32> to vector<456x432xf32>
    %cst_17 = arith.constant dense<0.000000e+00> : vector<36x432xf32>
    %24 = tpu.matmul %21, %23, %cst_17 {dimension_numbers = #tpu.dot_dimension_numbers<[1], [0], [0], [1], [0, 0, 1, 1], [], []>} : vector<36x456xf32>, vector<456x432xf32>, vector<36x432xf32> -> vector<36x432xf32>
    %25 = vector.extract_strided_slice %20 {offsets = [1, 0], sizes = [36, 456], strides = [1, 1]} : vector<38x456xf32> to vector<36x456xf32>
    %c1_18 = arith.constant 1 : index
    %c0_19 = arith.constant 0 : index
    %c0_20 = arith.constant 0 : index
    %26 = vector.load %arg4[%c1_18, %c0_19, %c0_20] : memref<3x456x432xf32, #tpu.memory_space<vmem>>, vector<1x456x432xf32>
    %27 = vector.shape_cast %26 : vector<1x456x432xf32> to vector<456x432xf32>
    %cst_21 = arith.constant dense<0.000000e+00> : vector<36x432xf32>
    %28 = tpu.matmul %25, %27, %cst_21 {dimension_numbers = #tpu.dot_dimension_numbers<[1], [0], [0], [1], [0, 0, 1, 1], [], []>} : vector<36x456xf32>, vector<456x432xf32>, vector<36x432xf32> -> vector<36x432xf32>
    %29 = arith.addf %24, %28 : vector<36x432xf32>
    %30 = vector.extract_strided_slice %20 {offsets = [2, 0], sizes = [36, 456], strides = [1, 1]} : vector<38x456xf32> to vector<36x456xf32>
    %c2_22 = arith.constant 2 : index
    %c0_23 = arith.constant 0 : index
    %c0_24 = arith.constant 0 : index
    %31 = vector.load %arg4[%c2_22, %c0_23, %c0_24] : memref<3x456x432xf32, #tpu.memory_space<vmem>>, vector<1x456x432xf32>
    %32 = vector.shape_cast %31 : vector<1x456x432xf32> to vector<456x432xf32>
    %cst_25 = arith.constant dense<0.000000e+00> : vector<36x432xf32>
    %33 = tpu.matmul %30, %32, %cst_25 {dimension_numbers = #tpu.dot_dimension_numbers<[1], [0], [0], [1], [0, 0, 1, 1], [], []>} : vector<36x456xf32>, vector<456x432xf32>, vector<36x432xf32> -> vector<36x432xf32>
    %34 = arith.addf %29, %33 : vector<36x432xf32>
    %c0_26 = arith.constant 0 : index
    %c0_27 = arith.constant 0 : index
    %35 = vector.load %arg5[%c0_26, %c0_27] : memref<1x432xf32, #tpu.memory_space<vmem>>, vector<1x432xf32>
    %36 = vector.broadcast %35 : vector<1x432xf32> to vector<36x432xf32>
    %37 = arith.addf %34, %36 : vector<36x432xf32>
    %cst_28 = arith.constant 0.000000e+00 : f32
    %38 = vector.broadcast %cst_28 : f32 to vector<36x432xf32>
    %39 = arith.maximumf %37, %38 : vector<36x432xf32>
    %40 = vector.shape_cast %39 : vector<36x432xf32> to vector<12x3x432xf32>
    %cst_29 = arith.constant dense<0xFF800000> : vector<12x432xf32>
    %41 = vector.multi_reduction <maximumf>, %40, %cst_29 [1] : vector<12x3x432xf32> to vector<12x432xf32>
    %42 = vector.extract_strided_slice %41 {offsets = [0, 0], sizes = [12, 408], strides = [1, 1]} : vector<12x432xf32> to vector<12x408xf32>
    %43 = vector.extract_strided_slice %41 {offsets = [0, 12], sizes = [12, 408], strides = [1, 1]} : vector<12x432xf32> to vector<12x408xf32>
    %44 = vector.extract_strided_slice %41 {offsets = [0, 24], sizes = [12, 408], strides = [1, 1]} : vector<12x432xf32> to vector<12x408xf32>
    %45 = arith.maximumf %42, %43 : vector<12x408xf32>
    %46 = arith.maximumf %45, %44 : vector<12x408xf32>
    %47 = vector.extract_strided_slice %46 {offsets = [0, 0], sizes = [10, 408], strides = [1, 1]} : vector<12x408xf32> to vector<10x408xf32>
    %c0_30 = arith.constant 0 : index
    %c0_31 = arith.constant 0 : index
    %c0_32 = arith.constant 0 : index
    %48 = vector.load %arg6[%c0_30, %c0_31, %c0_32] : memref<3x408x240xf32, #tpu.memory_space<vmem>>, vector<1x408x240xf32>
    %49 = vector.shape_cast %48 : vector<1x408x240xf32> to vector<408x240xf32>
    %cst_33 = arith.constant dense<0.000000e+00> : vector<10x240xf32>
    %50 = tpu.matmul %47, %49, %cst_33 {dimension_numbers = #tpu.dot_dimension_numbers<[1], [0], [0], [1], [0, 0, 1, 1], [], []>} : vector<10x408xf32>, vector<408x240xf32>, vector<10x240xf32> -> vector<10x240xf32>
    %51 = vector.extract_strided_slice %46 {offsets = [1, 0], sizes = [10, 408], strides = [1, 1]} : vector<12x408xf32> to vector<10x408xf32>
    %c1_34 = arith.constant 1 : index
    %c0_35 = arith.constant 0 : index
    %c0_36 = arith.constant 0 : index
    %52 = vector.load %arg6[%c1_34, %c0_35, %c0_36] : memref<3x408x240xf32, #tpu.memory_space<vmem>>, vector<1x408x240xf32>
    %53 = vector.shape_cast %52 : vector<1x408x240xf32> to vector<408x240xf32>
    %cst_37 = arith.constant dense<0.000000e+00> : vector<10x240xf32>
    %54 = tpu.matmul %51, %53, %cst_37 {dimension_numbers = #tpu.dot_dimension_numbers<[1], [0], [0], [1], [0, 0, 1, 1], [], []>} : vector<10x408xf32>, vector<408x240xf32>, vector<10x240xf32> -> vector<10x240xf32>
    %55 = arith.addf %50, %54 : vector<10x240xf32>
    %56 = vector.extract_strided_slice %46 {offsets = [2, 0], sizes = [10, 408], strides = [1, 1]} : vector<12x408xf32> to vector<10x408xf32>
    %c2_38 = arith.constant 2 : index
    %c0_39 = arith.constant 0 : index
    %c0_40 = arith.constant 0 : index
    %57 = vector.load %arg6[%c2_38, %c0_39, %c0_40] : memref<3x408x240xf32, #tpu.memory_space<vmem>>, vector<1x408x240xf32>
    %58 = vector.shape_cast %57 : vector<1x408x240xf32> to vector<408x240xf32>
    %cst_41 = arith.constant dense<0.000000e+00> : vector<10x240xf32>
    %59 = tpu.matmul %56, %58, %cst_41 {dimension_numbers = #tpu.dot_dimension_numbers<[1], [0], [0], [1], [0, 0, 1, 1], [], []>} : vector<10x408xf32>, vector<408x240xf32>, vector<10x240xf32> -> vector<10x240xf32>
    %60 = arith.addf %55, %59 : vector<10x240xf32>
    %c0_42 = arith.constant 0 : index
    %c0_43 = arith.constant 0 : index
    %61 = vector.load %arg7[%c0_42, %c0_43] : memref<1x240xf32, #tpu.memory_space<vmem>>, vector<1x240xf32>
    %62 = vector.broadcast %61 : vector<1x240xf32> to vector<10x240xf32>
    %63 = arith.addf %60, %62 : vector<10x240xf32>
    %cst_44 = arith.constant 0.000000e+00 : f32
    %64 = vector.broadcast %cst_44 : f32 to vector<10x240xf32>
    %65 = arith.maximumf %63, %64 : vector<10x240xf32>
    %66 = vector.extract_strided_slice %65 {offsets = [0, 0], sizes = [9, 240], strides = [1, 1]} : vector<10x240xf32> to vector<9x240xf32>
    %67 = vector.shape_cast %66 : vector<9x240xf32> to vector<3x3x240xf32>
    %cst_45 = arith.constant dense<0xFF800000> : vector<3x240xf32>
    %68 = vector.multi_reduction <maximumf>, %67, %cst_45 [1] : vector<3x3x240xf32> to vector<3x240xf32>
    %69 = vector.extract_strided_slice %68 {offsets = [0, 0], sizes = [3, 192], strides = [1, 1]} : vector<3x240xf32> to vector<3x192xf32>
    %70 = vector.extract_strided_slice %68 {offsets = [0, 24], sizes = [3, 192], strides = [1, 1]} : vector<3x240xf32> to vector<3x192xf32>
    %71 = vector.extract_strided_slice %68 {offsets = [0, 48], sizes = [3, 192], strides = [1, 1]} : vector<3x240xf32> to vector<3x192xf32>
    %72 = arith.maximumf %69, %70 : vector<3x192xf32>
    %73 = arith.maximumf %72, %71 : vector<3x192xf32>
    %c0_46 = arith.constant 0 : index
    %c0_47 = arith.constant 0 : index
    %74 = vector.load %arg8[%c0_46, %c0_47] : memref<192x72xf32, #tpu.memory_space<vmem>>, vector<192x72xf32>
    %cst_48 = arith.constant dense<0.000000e+00> : vector<3x72xf32>
    %75 = tpu.matmul %73, %74, %cst_48 {dimension_numbers = #tpu.dot_dimension_numbers<[1], [0], [0], [1], [0, 0, 1, 1], [], []>} : vector<3x192xf32>, vector<192x72xf32>, vector<3x72xf32> -> vector<3x72xf32>
    %c0_49 = arith.constant 0 : index
    %c0_50 = arith.constant 0 : index
    %c0_51 = arith.constant 0 : index
    %76 = vector.load %arg9[%c0_49, %c0_50, %c0_51] : memref<1x3x72xf32, #tpu.memory_space<vmem>>, vector<1x3x72xf32>
    %77 = vector.shape_cast %76 : vector<1x3x72xf32> to vector<3x72xf32>
    %78 = vector.shape_cast %75 : vector<3x72xf32> to vector<1x3x72xf32>
    tpu.vector_store %arg9[%c0_49, %c0_50, %c0_51], %78 {strides = array<i32>} : memref<1x3x72xf32, #tpu.memory_space<vmem>>, vector<1x3x72xf32>,
    return
  }
  func.func @transform_0(%arg0: i32) -> (i32, i32, i32) {
    %c0_i32 = arith.constant 0 : i32
    %c0_i32_0 = arith.constant 0 : i32
    %c0_i32_1 = arith.constant 0 : i32
    return %arg0, %c0_i32, %c0_i32_0 : i32, i32, i32
  }
  func.func @transform_1(%arg0: i32) -> (i32, i32, i32) {
    %c0_i32 = arith.constant 0 : i32
    %c0_i32_0 = arith.constant 0 : i32
    %c0_i32_1 = arith.constant 0 : i32
    %c0_i32_2 = arith.constant 0 : i32
    return %c0_i32, %c0_i32_0, %c0_i32_1 : i32, i32, i32
  }
  func.func @transform_2(%arg0: i32) -> (i32, i32) {
    %c0_i32 = arith.constant 0 : i32
    %c0_i32_0 = arith.constant 0 : i32
    %c0_i32_1 = arith.constant 0 : i32
    return %c0_i32, %c0_i32_0 : i32, i32
  }
  func.func @transform_3(%arg0: i32) -> (i32, i32, i32) {
    %c0_i32 = arith.constant 0 : i32
    %c0_i32_0 = arith.constant 0 : i32
    %c0_i32_1 = arith.constant 0 : i32
    %c0_i32_2 = arith.constant 0 : i32
    return %c0_i32, %c0_i32_0, %c0_i32_1 : i32, i32, i32
  }
  func.func @transform_4(%arg0: i32) -> (i32, i32) {
    %c0_i32 = arith.constant 0 : i32
    %c0_i32_0 = arith.constant 0 : i32
    %c0_i32_1 = arith.constant 0 : i32
    return %c0_i32, %c0_i32_0 : i32, i32
  }
  func.func @transform_5(%arg0: i32) -> (i32, i32, i32) {
    %c0_i32 = arith.constant 0 : i32
    %c0_i32_0 = arith.constant 0 : i32
    %c0_i32_1 = arith.constant 0 : i32
    %c0_i32_2 = arith.constant 0 : i32
    return %c0_i32, %c0_i32_0, %c0_i32_1 : i32, i32, i32
  }
  func.func @transform_6(%arg0: i32) -> (i32, i32) {
    %c0_i32 = arith.constant 0 : i32
    %c0_i32_0 = arith.constant 0 : i32
    %c0_i32_1 = arith.constant 0 : i32
    return %c0_i32, %c0_i32_0 : i32, i32
  }
  func.func @transform_7(%arg0: i32) -> (i32, i32) {
    %c0_i32 = arith.constant 0 : i32
    %c0_i32_0 = arith.constant 0 : i32
    %c0_i32_1 = arith.constant 0 : i32
    return %c0_i32, %c0_i32_0 : i32, i32
  }
  func.func @transform_8(%arg0: i32) -> (i32, i32, i32) {
    %c0_i32 = arith.constant 0 : i32
    %c0_i32_0 = arith.constant 0 : i32
    %c0_i32_1 = arith.constant 0 : i32
    return %arg0, %c0_i32, %c0_i32_0 : i32, i32, i32
  }
}

</mosaic_0001>

<llo_original>
// kernel: feature_extractor_fwd.1
$region0: #{feature_extractor_fwd.1}
  #allocation0 [shape = 'u32[]', space=smem, size = 0x4, offset = 0x4, fixed_abs, tag = 'smem constant byte address 0x4 - core index']
  #allocation1 [shape = 'u32[144,128]{1,0:T(1,128)}', space=vmem, size = 0x12000, scoped, tag = 'internal scratch']
  %s0 = inlined_call_operand.vmem [shape: f32[2,40,40], index: 0, kind: input, shape index: {}]
  %s1 = inlined_call_operand.vmem [shape: f32[3,40,456], index: 1, kind: input, shape index: {}]
  %s2 = inlined_call_operand.vmem [shape: f32[1,456], index: 2, kind: input, shape index: {}]
  %s3 = inlined_call_operand.vmem [shape: f32[3,456,432], index: 3, kind: input, shape index: {}]
  %s4 = inlined_call_operand.vmem [shape: f32[1,432], index: 4, kind: input, shape index: {}]
  %s5 = inlined_call_operand.vmem [shape: f32[3,408,240], index: 5, kind: input, shape index: {}]
  %s6 = inlined_call_operand.vmem [shape: f32[1,240], index: 6, kind: input, shape index: {}]
  %s7 = inlined_call_operand.vmem [shape: f32[192,72], index: 7, kind: input, shape index: {}]
  %s8 = inlined_call_operand.vmem [shape: f32[2,3,72], index: 8, kind: output, shape index: {}]
  %s9 = sld [smem:[#allocation0]]
  $region65: #{feature_extractor_fwd.1} parent=0
    _
  %s11 = ssub.s32 1, %s9
  %s12 = scalar_select 0, %s11, %s9
  loop: start=0, step=1, limit=4
  $region2: #{feature_extractor_fwd.1} parent=0 // loop_pre_header
    _
  $region3: #{feature_extractor_fwd.1} parent=0 // loop_header
    %s14 = sphi 0, %s18
    %p15 = scmp.ge.s32.totalorder %s14, 4
    %s24 = sphi 0, %s26
    %s27 = sphi 0, %s24
    %s28 = sphi 0, %s27
    %s44 = sphi 0, %s28
    %s48 = sphi 0, %s48
    %s50 = sphi 0, %s48
    %s51 = sphi 0, %s50
    %s65 = sphi 0, %s51
    %s69 = sphi 0, %s69
    %s71 = sphi 0, %s69
    %s72 = sphi 0, %s71
    %s86 = sphi 0, %s72
    %s90 = sphi 0, %s90
    %s92 = sphi 0, %s90
    %s93 = sphi 0, %s92
    %s107 = sphi 0, %s93
    %s111 = sphi 0, %s111
    %s113 = sphi 0, %s111
    %s114 = sphi 0, %s113
    %s128 = sphi 0, %s114
    %s132 = sphi 0, %s132
    %s134 = sphi 0, %s132
    %s135 = sphi 0, %s134
    %s149 = sphi 0, %s135
    %s153 = sphi 0, %s153
    %s155 = sphi 0, %s153
    %s156 = sphi 0, %s155
    %s170 = sphi 0, %s156
    %s174 = sphi 0, %s174
    %s176 = sphi 0, %s174
    %s177 = sphi 0, %s176
    %s191 = sphi 0, %s177
    %s197 = sphi 0, %s199
    %s200 = sphi 0, %s197
    %s201 = sphi 0, %s200
    %s217 = sphi 0, %s201
  $region4: #{feature_extractor_fwd.1} parent=0 // loop_header_branch
    %17 = sbr.rel (%p15) target = $region8
  $region5: #{feature_extractor_fwd.1} parent=0 // loop_body
    %s19 = ssub.s32 %s14, 1
    %s20 = ssub.s32 %s14, 2
    %s21 = sadd.s32 %s14, 1
    %s22 = ssub.s32 %s14, %s21
    %p23 = scmp.eq.s32.totalorder %s22, 0
    %s25 = sadd.s32 %s24, 1
    %s26 = scalar_select %p23, %s24, %s25
    %p29 = pneg %p23
    %p30 = scmp.eq.s32.totalorder %s14, 1
    %p31 = por %p29, %p30
    %p32 = scmp.ne.s32.totalorder %s24, %s27
    %p33 = scmp.eq.s32.totalorder %s14, 0
    %p34 = por %p32, %p33
    %p35 = scmp.ne.s32.totalorder %s24, %s27
    %p36 = scmp.eq.s32.totalorder %s19, 1
    %p37 = por %p35, %p36
    %p38 = scmp.ne.s32.totalorder %s27, %s28
    %p39 = scmp.eq.s32.totalorder %s19, 0
    %p40 = por %p38, %p39
    %p41 = scmp.ne.s32.totalorder %s27, %s28
    %p42 = scmp.eq.s32.totalorder %s20, 1
    %p43 = por %p41, %p42
    %p45 = scmp.ne.s32.totalorder %s28, %s44
    %p46 = scmp.eq.s32.totalorder %s20, 0
    %p47 = por %p45, %p46
    %s49 = sadd.s32 %s48, 1
    %p52 = scmp.eq.s32.totalorder %s14, 1
    %p53 = scmp.ne.s32.totalorder %s48, %s50
    %p54 = scmp.eq.s32.totalorder %s14, 0
    %p55 = por %p53, %p54
    %p56 = scmp.ne.s32.totalorder %s48, %s50
    %p57 = scmp.eq.s32.totalorder %s19, 1
    %p58 = por %p56, %p57
    %p59 = scmp.ne.s32.totalorder %s50, %s51
    %p60 = scmp.eq.s32.totalorder %s19, 0
    %p61 = por %p59, %p60
    %p62 = scmp.ne.s32.totalorder %s50, %s51
    %p63 = scmp.eq.s32.totalorder %s20, 1
    %p64 = por %p62, %p63
    %p66 = scmp.ne.s32.totalorder %s51, %s65
    %p67 = scmp.eq.s32.totalorder %s20, 0
    %p68 = por %p66, %p67
    %s70 = sadd.s32 %s69, 1
    %p73 = scmp.eq.s32.totalorder %s14, 1
    %p74 = scmp.ne.s32.totalorder %s69, %s71
    %p75 = scmp.eq.s32.totalorder %s14, 0
    %p76 = por %p74, %p75
    %p77 = scmp.ne.s32.totalorder %s69, %s71
    %p78 = scmp.eq.s32.totalorder %s19, 1
    %p79 = por %p77, %p78
    %p80 = scmp.ne.s32.totalorder %s71, %s72
    %p81 = scmp.eq.s32.totalorder %s19, 0
    %p82 = por %p80, %p81
    %p83 = scmp.ne.s32.totalorder %s71, %s72
    %p84 = scmp.eq.s32.totalorder %s20, 1
    %p85 = por %p83, %p84
    %p87 = scmp.ne.s32.totalorder %s72, %s86
    %p88 = scmp.eq.s32.totalorder %s20, 0
    %p89 = por %p87, %p88
    %s91 = sadd.s32 %s90, 1
    %p94 = scmp.eq.s32.totalorder %s14, 1
    %p95 = scmp.ne.s32.totalorder %s90, %s92
    %p96 = scmp.eq.s32.totalorder %s14, 0
    %p97 = por %p95, %p96
    %p98 = scmp.ne.s32.totalorder %s90, %s92
    %p99 = scmp.eq.s32.totalorder %s19, 1
    %p100 = por %p98, %p99
    %p101 = scmp.ne.s32.totalorder %s92, %s93
    %p102 = scmp.eq.s32.totalorder %s19, 0
    %p103 = por %p101, %p102
    %p104 = scmp.ne.s32.totalorder %s92, %s93
    %p105 = scmp.eq.s32.totalorder %s20, 1
    %p106 = por %p104, %p105
    %p108 = scmp.ne.s32.totalorder %s93, %s107
    %p109 = scmp.eq.s32.totalorder %s20, 0
    %p110 = por %p108, %p109
    %s112 = sadd.s32 %s111, 1
    %p115 = scmp.eq.s32.totalorder %s14, 1
    %p116 = scmp.ne.s32.totalorder %s111, %s113
    %p117 = scmp.eq.s32.totalorder %s14, 0
    %p118 = por %p116, %p117
    %p119 = scmp.ne.s32.totalorder %s111, %s113
    %p120 = scmp.eq.s32.totalorder %s19, 1
    %p121 = por %p119, %p120
    %p122 = scmp.ne.s32.totalorder %s113, %s114
    %p123 = scmp.eq.s32.totalorder %s19, 0
    %p124 = por %p122, %p123
    %p125 = scmp.ne.s32.totalorder %s113, %s114
    %p126 = scmp.eq.s32.totalorder %s20, 1
    %p127 = por %p125, %p126
    %p129 = scmp.ne.s32.totalorder %s114, %s128
    %p130 = scmp.eq.s32.totalorder %s20, 0
    %p131 = por %p129, %p130
    %s133 = sadd.s32 %s132, 1
    %p136 = scmp.eq.s32.totalorder %s14, 1
    %p137 = scmp.ne.s32.totalorder %s132, %s134
    %p138 = scmp.eq.s32.totalorder %s14, 0
    %p139 = por %p137, %p138
    %p140 = scmp.ne.s32.totalorder %s132, %s134
    %p141 = scmp.eq.s32.totalorder %s19, 1
    %p142 = por %p140, %p141
    %p143 = scmp.ne.s32.totalorder %s134, %s135
    %p144 = scmp.eq.s32.totalorder %s19, 0
    %p145 = por %p143, %p144
    %p146 = scmp.ne.s32.totalorder %s134, %s135
    %p147 = scmp.eq.s32.totalorder %s20, 1
    %p148 = por %p146, %p147
    %p150 = scmp.ne.s32.totalorder %s135, %s149
    %p151 = scmp.eq.s32.totalorder %s20, 0
    %p152 = por %p150, %p151
    %s154 = sadd.s32 %s153, 1
    %p157 = scmp.eq.s32.totalorder %s14, 1
    %p158 = scmp.ne.s32.totalorder %s153, %s155
    %p159 = scmp.eq.s32.totalorder %s14, 0
    %p160 = por %p158, %p159
    %p161 = scmp.ne.s32.totalorder %s153, %s155
    %p162 = scmp.eq.s32.totalorder %s19, 1
    %p163 = por %p161, %p162
    %p164 = scmp.ne.s32.totalorder %s155, %s156
    %p165 = scmp.eq.s32.totalorder %s19, 0
    %p166 = por %p164, %p165
    %p167 = scmp.ne.s32.totalorder %s155, %s156
    %p168 = scmp.eq.s32.totalorder %s20, 1
    %p169 = por %p167, %p168
    %p171 = scmp.ne.s32.totalorder %s156, %s170
    %p172 = scmp.eq.s32.totalorder %s20, 0
    %p173 = por %p171, %p172
    %s175 = sadd.s32 %s174, 1
    %p178 = scmp.eq.s32.totalorder %s14, 1
    %p179 = scmp.ne.s32.totalorder %s174, %s176
    %p180 = scmp.eq.s32.totalorder %s14, 0
    %p181 = por %p179, %p180
    %p182 = scmp.ne.s32.totalorder %s174, %s176
    %p183 = scmp.eq.s32.totalorder %s19, 1
    %p184 = por %p182, %p183
    %p185 = scmp.ne.s32.totalorder %s176, %s177
    %p186 = scmp.eq.s32.totalorder %s19, 0
    %p187 = por %p185, %p186
    %p188 = scmp.ne.s32.totalorder %s176, %s177
    %p189 = scmp.eq.s32.totalorder %s20, 1
    %p190 = por %p188, %p189
    %p192 = scmp.ne.s32.totalorder %s177, %s191
    %p193 = scmp.eq.s32.totalorder %s20, 0
    %p194 = por %p192, %p193
    %s195 = ssub.s32 %s14, %s21
    %p196 = scmp.eq.s32.totalorder %s195, 0
    %s198 = sadd.s32 %s197, 1
    %s199 = scalar_select %p196, %s197, %s198
    %p202 = pneg %p196
    %p203 = scmp.eq.s32.totalorder %s14, 1
    %p204 = por %p202, %p203
    %p205 = scmp.ne.s32.totalorder %s197, %s200
    %p206 = scmp.eq.s32.totalorder %s14, 0
    %p207 = por %p205, %p206
    %p208 = scmp.ne.s32.totalorder %s197, %s200
    %p209 = scmp.eq.s32.totalorder %s19, 1
    %p210 = por %p208, %p209
    %p211 = scmp.ne.s32.totalorder %s200, %s201
    %p212 = scmp.eq.s32.totalorder %s19, 0
    %p213 = por %p211, %p212
    %p214 = scmp.ne.s32.totalorder %s200, %s201
    %p215 = scmp.eq.s32.totalorder %s20, 1
    %p216 = por %p214, %p215
    %p218 = scmp.ne.s32.totalorder %s201, %s217
    %p219 = scmp.eq.s32.totalorder %s20, 0
    %p220 = por %p218, %p219
    %p221 = scmp.le.s32.totalorder 1, %s14
    %p222 = scmp.lt.s32.totalorder %s14, 3
    %p223 = pnand %p221, %p222
    %p224 = pneg %p223
    // Predicated region
    $region9: #{feature_extractor_fwd.1} parent=5 // pred_check
      _
    $region10: #{feature_extractor_fwd.1} parent=5 // pred_check_branch
      %226 = sbr.rel (%p223) target = $region12
    $region11: #{feature_extractor_fwd.1} parent=5 // pred_region
      %s227 = ssub.s32 %s14, 1
      // Predicated region
      $region13: #{feature_extractor_fwd.1} parent=11 // pred_check
        %p228 = pneg %p61
      $region14: #{feature_extractor_fwd.1} parent=11 // pred_check_branch
        %230 = sbr.rel (%p228) target = $region16
      $region15: #{feature_extractor_fwd.1} parent=11 // pred_region
        _
      $region16: #{feature_extractor_fwd.1} parent=11 // pred_fallthru
        _
      // Predicated region
      $region17: #{feature_extractor_fwd.1} parent=11 // pred_check
        %p231 = pneg %p82
      $region18: #{feature_extractor_fwd.1} parent=11 // pred_check_branch
        %233 = sbr.rel (%p231) target = $region20
      $region19: #{feature_extractor_fwd.1} parent=11 // pred_region
        _
      $region20: #{feature_extractor_fwd.1} parent=11 // pred_fallthru
        _
      // Predicated region
      $region21: #{feature_extractor_fwd.1} parent=11 // pred_check
        %p234 = pneg %p103
      $region22: #{feature_extractor_fwd.1} parent=11 // pred_check_branch
        %236 = sbr.rel (%p234) target = $region24
      $region23: #{feature_extractor_fwd.1} parent=11 // pred_region
        _
      $region24: #{feature_extractor_fwd.1} parent=11 // pred_fallthru
        _
      // Predicated region
      $region25: #{feature_extractor_fwd.1} parent=11 // pred_check
        %p237 = pneg %p124
      $region26: #{feature_extractor_fwd.1} parent=11 // pred_check_branch
        %239 = sbr.rel (%p237) target = $region28
      $region27: #{feature_extractor_fwd.1} parent=11 // pred_region
        _
      $region28: #{feature_extractor_fwd.1} parent=11 // pred_fallthru
        _
      // Predicated region
      $region29: #{feature_extractor_fwd.1} parent=11 // pred_check
        %p240 = pneg %p145
      $region30: #{feature_extractor_fwd.1} parent=11 // pred_check_branch
        %242 = sbr.rel (%p240) target = $region32
      $region31: #{feature_extractor_fwd.1} parent=11 // pred_region
        _
      $region32: #{feature_extractor_fwd.1} parent=11 // pred_fallthru
        _
      // Predicated region
      $region33: #{feature_extractor_fwd.1} parent=11 // pred_check
        %p243 = pneg %p166
      $region34: #{feature_extractor_fwd.1} parent=11 // pred_check_branch
        %245 = sbr.rel (%p243) target = $region36
      $region35: #{feature_extractor_fwd.1} parent=11 // pred_region
        _
      $region36: #{feature_extractor_fwd.1} parent=11 // pred_fallthru
        _
      // Predicated region
      $region37: #{feature_extractor_fwd.1} parent=11 // pred_check
        %p246 = pneg %p187
      $region38: #{feature_extractor_fwd.1} parent=11 // pred_check_branch
        %248 = sbr.rel (%p246) target = $region40
      $region39: #{feature_extractor_fwd.1} parent=11 // pred_region
        _
      $region40: #{feature_extractor_fwd.1} parent=11 // pred_fallthru
        _
    $region12: #{feature_extractor_fwd.1} parent=5 // pred_fallthru
      _
    %p249 = scmp.lt.s32.totalorder %s14, 2
    // Predicated region
    $region41: #{feature_extractor_fwd.1} parent=5 // pred_check
      %p250 = pneg %p249
    $region42: #{feature_extractor_fwd.1} parent=5 // pred_check_branch
      %252 = sbr.rel (%p250) target = $region44
    $region43: #{feature_extractor_fwd.1} parent=5 // pred_region
      // Predicated region
      $region45: #{feature_extractor_fwd.1} parent=43 // pred_check
        %p253 = pneg %p34
      $region46: #{feature_extractor_fwd.1} parent=43 // pred_check_branch
        %255 = sbr.rel (%p253) target = $region48
      $region47: #{feature_extractor_fwd.1} parent=43 // pred_region
        %p256 = scmp.lt.s32.totalorder %s14, 1
        %s257 = scalar_select %p256, %s14, 1
        %s258 = smul.addr %s257, 5
        %s259 = smul.addr %s258, 8
        %s260 = scalar_lea.vmem %s0, %s259
      $region48: #{feature_extractor_fwd.1} parent=43 // pred_fallthru
        _
    $region44: #{feature_extractor_fwd.1} parent=5 // pred_fallthru
      _
    %p261 = scmp.le.s32.totalorder 1, %s14
    %p262 = scmp.lt.s32.totalorder %s14, 3
    %p263 = pnand %p261, %p262
    %p264 = pneg %p263
    // Predicated region
    $region49: #{feature_extractor_fwd.1} parent=5 // pred_check
      _
    $region50: #{feature_extractor_fwd.1} parent=5 // pred_check_branch
      %266 = sbr.rel (%p263) target = $region52
    $region51: #{feature_extractor_fwd.1} parent=5 // pred_region
      %s267 = ssub.s32 %s14, 1
      %p268 = scmp.lt.s32.totalorder %s19, 1
      %s269 = scalar_select %p268, %s19, 1
      %s270 = smul.addr %s269, 5
      %s271 = smul.addr %s270, 8
      %s272 = scalar_lea.vmem %s0, %s271
      %p273 = pneg %p40
      %p274 = pneg %p37
      %p275 = pneg %p61
      %p276 = pneg %p58
      %p277 = pneg %p82
      %p278 = pneg %p79
      %p279 = pneg %p103
      %p280 = pneg %p100
      %p281 = pneg %p124
      %p282 = pneg %p121
      %p283 = pneg %p145
      %p284 = pneg %p142
      %p285 = pneg %p166
      %p286 = pneg %p163
      %p287 = pneg %p187
      %p288 = pneg %p184
      %p289 = pneg %p213
      %p290 = pneg %p210
      %p291 = scmp.lt.s32.totalorder %s19, 1
      %s292 = scalar_select %p291, %s19, 1
      %s293 = smul.addr %s292, 4
      %s294 = scalar_lea.vmem %s8, %s293
      %p295 = scmp.lt.s32.totalorder %s19, 1
      %s296 = scalar_select %p295, %s19, 1
      %s297 = smul.addr %s296, 5
      %s298 = smul.addr %s297, 8
      %s299 = scalar_lea.vmem %s0, %s298
      %p300 = scmp.lt.s32.totalorder %s19, 1
      %s301 = scalar_select %p300, %s19, 1
      %s302 = smul.addr %s301, 4
      %s303 = scalar_lea.vmem %s8, %s302
      %v304 = vld [vmem:[%s299] sm:$0xff]
      %v305 = vld [vmem:[%s299 + $0x8] sm:$0xff]
      %v306 = vld [vmem:[%s299 + $0x10] sm:$0xff]
      %v307 = vld [vmem:[%s299 + $0x18] sm:$0xff]
      %v308 = vld [vmem:[%s299 + $0x20] sm:$0xff]
      %v309 = vld [vmem:[%s1] sm:$0xff]
      %v310 = vld [vmem:[%s1 + $0x8] sm:$0xff]
      %v311 = vld [vmem:[%s1 + $0x10] sm:$0xff]
      %v312 = vld [vmem:[%s1 + $0x18] sm:$0xff]
      %v313 = vld [vmem:[%s1 + $0x20] sm:$0xff]
      %v314 = vld [vmem:[%s1 + $0x28] sm:$0xff]
      %v315 = vld [vmem:[%s1 + $0x30] sm:$0xff]
      %v316 = vld [vmem:[%s1 + $0x38] sm:$0xff]
      %v317 = vld [vmem:[%s1 + $0x40] sm:$0xff]
      %v318 = vld [vmem:[%s1 + $0x48] sm:$0xff]
      %v319 = vld [vmem:[%s1 + $0x50] sm:$0xff]
      %v320 = vld [vmem:[%s1 + $0x58] sm:$0xff]
      %v321 = vld [vmem:[%s1 + $0x60] sm:$0xff]
      %v322 = vld [vmem:[%s1 + $0x68] sm:$0xff]
      %v323 = vld [vmem:[%s1 + $0x70] sm:$0xff]
      %v324 = vld [vmem:[%s1 + $0x78] sm:$0xff]
      %v325 = vld [vmem:[%s1 + $0x80] sm:$0xff]
      %v326 = vld [vmem:[%s1 + $0x88] sm:$0xff]
      %v327 = vld [vmem:[%s1 + $0x90] sm:$0xff]
      %v328 = vld [vmem:[%s1 + $0x98] sm:$0xff]
      %s329 = scalar_lea.vmem %s1, 160
      %v330 = vld [vmem:[%s329] sm:$0xff]
      %v331 = vld [vmem:[%s329 + $0x8] sm:$0xff]
      %v332 = vld [vmem:[%s329 + $0x10] sm:$0xff]
      %v333 = vld [vmem:[%s329 + $0x18] sm:$0xff]
      %v334 = vld [vmem:[%s329 + $0x20] sm:$0xff]
      %v335 = vld [vmem:[%s329 + $0x28] sm:$0xff]
      %v336 = vld [vmem:[%s329 + $0x30] sm:$0xff]
      %v337 = vld [vmem:[%s329 + $0x38] sm:$0xff]
      %v338 = vld [vmem:[%s329 + $0x40] sm:$0xff]
      %v339 = vld [vmem:[%s329 + $0x48] sm:$0xff]
      %v340 = vld [vmem:[%s329 + $0x50] sm:$0xff]
      %v341 = vld [vmem:[%s329 + $0x58] sm:$0xff]
      %v342 = vld [vmem:[%s329 + $0x60] sm:$0xff]
      %v343 = vld [vmem:[%s329 + $0x68] sm:$0xff]
      %v344 = vld [vmem:[%s329 + $0x70] sm:$0xff]
      %v345 = vld [vmem:[%s329 + $0x78] sm:$0xff]
      %v346 = vld [vmem:[%s329 + $0x80] sm:$0xff]
      %v347 = vld [vmem:[%s329 + $0x88] sm:$0xff]
      %v348 = vld [vmem:[%s329 + $0x90] sm:$0xff]
      %v349 = vld [vmem:[%s329 + $0x98] sm:$0xff]
      %vm355 = vcmask 1046528
      %v356 = vrot.slane %v304, 1
      %v357 = vrot.slane %v305, 1
      %v358 = vsel %vm355, %v356, %v357
      %v359 = vrot.slane %v306, 1
      %v360 = vsel %vm355, %v357, %v359
      %v361 = vrot.slane %v307, 1
      %v362 = vsel %vm355, %v359, %v361
      %v363 = vrot.slane %v308, 1
      %v364 = vsel %vm355, %v361, %v363
      %vm365 = vcmask 326656
      %v366 = vsel %vm365, %v358, 0
      %v368 = vsel %vm365, %v360, 0
      %v370 = vsel %vm365, %v362, 0
      %v372 = vsel %vm365, %v364, 0
      %v374 = vsel %vm365, %v363, 0
      %376 = vmatprep.subr.mxu0 0.0
      %377 = vmatpush1.msra.mxu0 0.0
      %378 = vmatprep.subr.mxu0 0.0
      %379 = vmatpush1.msra.mxu0 0.0
      %380 = vmatprep.subr.mxu0 0.0
      %381 = vmatpush1.msra.mxu0 0.0
      %382 = vmatprep.subr.mxu0 0.0
      %383 = vmatpush1.msra.mxu0 0.0
      %384 = vmatprep.subr.mxu0 0.0
      %385 = vmatpush1.msra.mxu0 0.0
      %386 = vmatprep.subr.mxu0 0.0
      %387 = vmatpush1.msra.mxu0 0.0
      %388 = vmatprep.subr.mxu0 0.0
      %389 = vmatpush1.msra.mxu0 0.0
      %390 = vmatprep.subr.mxu0 0.0
      %391 = vmatpush1.msra.mxu0 0.0
      %392 = vmatprep.subr.mxu0 0.0
      %393 = vmatpush1.msra.mxu0 0.0
      %394 = vmatprep.subr.mxu0 0.0
      %395 = vmatpush1.msra.mxu0 0.0
      %396 = vmatprep.subr.mxu0 0.0
      %397 = vmatpush1.msra.mxu0 0.0
      %398 = vmatprep.subr.mxu0 %v347
      %399 = vmatpush1.msra.mxu0 %v346
      %400 = vmatprep.subr.mxu0 %v343
      %401 = vmatpush1.msra.mxu0 %v342
      %402 = vmatprep.subr.mxu0 %v339
      %403 = vmatpush1.msra.mxu0 %v338
      %404 = vmatprep.subr.mxu0 %v335
      %405 = vmatpush1.msra.mxu0 %v334
      %406 = vmatprep.subr.mxu0 %v331
      %407 = vmatpush1.msra.mxu0 %v330
      %408 = vmatprep.subr.mxu0 0.0
      %409 = vmatpush2.msra.mxu0 0.0
      %410 = vmatprep.subr.mxu0 0.0
      %411 = vmatpush2.msra.mxu0 0.0
      %412 = vmatprep.subr.mxu0 0.0
      %413 = vmatpush2.msra.mxu0 0.0
      %414 = vmatprep.subr.mxu0 0.0
      %415 = vmatpush2.msra.mxu0 0.0
      %416 = vmatprep.subr.mxu0 0.0
      %417 = vmatpush2.msra.mxu0 0.0
      %418 = vmatprep.subr.mxu0 0.0
      %419 = vmatpush2.msra.mxu0 0.0
      %420 = vmatprep.subr.mxu0 0.0
      %421 = vmatpush2.msra.mxu0 0.0
      %422 = vmatprep.subr.mxu0 0.0
      %423 = vmatpush2.msra.mxu0 0.0
      %424 = vmatprep.subr.mxu0 0.0
      %425 = vmatpush2.msra.mxu0 0.0
      %426 = vmatprep.subr.mxu0 0.0
      %427 = vmatpush2.msra.mxu0 0.0
      %428 = vmatprep.subr.mxu0 0.0
      %429 = vmatpush2.msra.mxu0 0.0
      %430 = vmatprep.subr.mxu0 0.0
      %431 = vmatpush2.msra.mxu0 0.0
      %432 = vmatprep.subr.mxu0 0.0
      %433 = vmatpush2.msra.mxu0 0.0
      %434 = vmatprep.subr.mxu0 0.0
      %435 = vmatpush2.msra.mxu0 0.0
      %436 = vmatprep.subr.mxu0 0.0
      %437 = vmatpush2.msra.mxu0 0.0
      %438 = vmatprep.subr.mxu0 0.0
      %439 = vmatpush2.msra.mxu0 0.0
      %440 = vmatprep.mubr.f32.mxu0 0.0
      %441 = vmatmul.mubr.f32.gmra.mxu0 %v366
      %v442 = vpop.f32.mrf.mxu0
      %v443 = vadd.f32 0.0, %v442
      %v444 = vpop.f32.mrf.mxu0
      %v445 = vadd.f32 0.0, %v444
      %446 = vmatprep.mubr.f32.mxu0 0.0
      %447 = vmatmul.mubr.f32.gmra.mxu0 %v368
      %v448 = vpop.f32.mrf.mxu0
      %v449 = vadd.f32 0.0, %v448
      %v450 = vpop.f32.mrf.mxu0
      %v451 = vadd.f32 0.0, %v450
      %452 = vmatprep.mubr.f32.mxu0 0.0
      %453 = vmatmul.mubr.f32.gmra.mxu0 %v370
      %v454 = vpop.f32.mrf.mxu0
      %v455 = vadd.f32 0.0, %v454
      %v456 = vpop.f32.mrf.mxu0
      %v457 = vadd.f32 0.0, %v456
      %458 = vmatprep.mubr.f32.mxu0 0.0
      %459 = vmatmul.mubr.f32.gmra.mxu0 %v372
      %v460 = vpop.f32.mrf.mxu0
      %v461 = vadd.f32 0.0, %v460
      %v462 = vpop.f32.mrf.mxu0
      %v463 = vadd.f32 0.0, %v462
      %464 = vmatprep.mubr.f32.mxu0 0.0
      %465 = vmatmul.mubr.f32.gmra.mxu0 %v374
      %v466 = vpop.f32.mrf.mxu0
      %v467 = vadd.f32 0.0, %v466
      %v468 = vpop.f32.mrf.mxu0
      %v469 = vadd.f32 0.0, %v468
      %470 = vdwg.mxu0
      %471 = vmatprep.subr.mxu0 0.0
      %472 = vmatpush1.msra.mxu0 0.0
      %473 = vmatprep.subr.mxu0 0.0
      %474 = vmatpush1.msra.mxu0 0.0
      %475 = vmatprep.subr.mxu0 0.0
      %476 = vmatpush1.msra.mxu0 0.0
      %477 = vmatprep.subr.mxu0 0.0
      %478 = vmatpush1.msra.mxu0 0.0
      %479 = vmatprep.subr.mxu0 0.0
      %480 = vmatpush1.msra.mxu0 0.0
      %481 = vmatprep.subr.mxu0 0.0
      %482 = vmatpush1.msra.mxu0 0.0
      %483 = vmatprep.subr.mxu0 0.0
      %484 = vmatpush1.msra.mxu0 0.0
      %485 = vmatprep.subr.mxu0 0.0
      %486 = vmatpush1.msra.mxu0 0.0
      %487 = vmatprep.subr.mxu0 0.0
      %488 = vmatpush1.msra.mxu0 0.0
      %489 = vmatprep.subr.mxu0 0.0
      %490 = vmatpush1.msra.mxu0 0.0
      %491 = vmatprep.subr.mxu0 0.0
      %492 = vmatpush1.msra.mxu0 0.0
      %493 = vmatprep.subr.mxu0 %v349
      %494 = vmatpush1.msra.mxu0 %v348
      %495 = vmatprep.subr.mxu0 %v345
      %496 = vmatpush1.msra.mxu0 %v344
      %497 = vmatprep.subr.mxu0 %v341
      %498 = vmatpush1.msra.mxu0 %v340
      %499 = vmatprep.subr.mxu0 %v337
      %500 = vmatpush1.msra.mxu0 %v336
      %501 = vmatprep.subr.mxu0 %v333
      %502 = vmatpush1.msra.mxu0 %v332
      %503 = vmatprep.subr.mxu0 0.0
      %504 = vmatpush2.msra.mxu0 0.0
      %505 = vmatprep.subr.mxu0 0.0
      %506 = vmatpush2.msra.mxu0 0.0
      %507 = vmatprep.subr.mxu0 0.0
      %508 = vmatpush2.msra.mxu0 0.0
      %509 = vmatprep.subr.mxu0 0.0
      %510 = vmatpush2.msra.mxu0 0.0
      %511 = vmatprep.subr.mxu0 0.0
      %512 = vmatpush2.msra.mxu0 0.0
      %513 = vmatprep.subr.mxu0 0.0
      %514 = vmatpush2.msra.mxu0 0.0
      %515 = vmatprep.subr.mxu0 0.0
      %516 = vmatpush2.msra.mxu0 0.0
      %517 = vmatprep.subr.mxu0 0.0
      %518 = vmatpush2.msra.mxu0 0.0
      %519 = vmatprep.subr.mxu0 0.0
      %520 = vmatpush2.msra.mxu0 0.0
      %521 = vmatprep.subr.mxu0 0.0
      %522 = vmatpush2.msra.mxu0 0.0
      %523 = vmatprep.subr.mxu0 0.0
      %524 = vmatpush2.msra.mxu0 0.0
      %525 = vmatprep.subr.mxu0 0.0
      %526 = vmatpush2.msra.mxu0 0.0
      %527 = vmatprep.subr.mxu0 0.0
      %528 = vmatpush2.msra.mxu0 0.0
      %529 = vmatprep.subr.mxu0 0.0
      %530 = vmatpush2.msra.mxu0 0.0
      %531 = vmatprep.subr.mxu0 0.0
      %532 = vmatpush2.msra.mxu0 0.0
      %533 = vmatprep.subr.mxu0 0.0
      %534 = vmatpush2.msra.mxu0 0.0
      %535 = vmatprep.mubr.f32.mxu0 0.0
      %536 = vmatmul.mubr.f32.gmra.mxu0 %v366
      %v537 = vpop.f32.mrf.mxu0
      %v538 = vadd.f32 0.0, %v537
      %v539 = vpop.f32.mrf.mxu0
      %v540 = vadd.f32 0.0, %v539
      %541 = vmatprep.mubr.f32.mxu0 0.0
      %542 = vmatmul.mubr.f32.gmra.mxu0 %v368
      %v543 = vpop.f32.mrf.mxu0
      %v544 = vadd.f32 0.0, %v543
      %v545 = vpop.f32.mrf.mxu0
      %v546 = vadd.f32 0.0, %v545
      %547 = vmatprep.mubr.f32.mxu0 0.0
      %548 = vmatmul.mubr.f32.gmra.mxu0 %v370
      %v549 = vpop.f32.mrf.mxu0
      %v550 = vadd.f32 0.0, %v549
      %v551 = vpop.f32.mrf.mxu0
      %v552 = vadd.f32 0.0, %v551
      %553 = vmatprep.mubr.f32.mxu0 0.0
      %554 = vmatmul.mubr.f32.gmra.mxu0 %v372
      %v555 = vpop.f32.mrf.mxu0
      %v556 = vadd.f32 0.0, %v555
      %v557 = vpop.f32.mrf.mxu0
      %v558 = vadd.f32 0.0, %v557
      %559 = vmatprep.mubr.f32.mxu0 0.0
      %560 = vmatmul.mubr.f32.gmra.mxu0 %v374
      %v561 = vpop.f32.mrf.mxu0
      %v562 = vadd.f32 0.0, %v561
      %v563 = vpop.f32.mrf.mxu0
      %v564 = vadd.f32 0.0, %v563
      %565 = vdwg.mxu0
      %v566 = vsel %vm365, %v304, 0
      %v568 = vsel %vm365, %v305, 0
      %v570 = vsel %vm365, %v306, 0
      %v572 = vsel %vm365, %v307, 0
      %v574 = vsel %vm365, %v308, 0
      %576 = vmatprep.subr.mxu0 0.0
      %577 = vmatpush1.msra.mxu0 0.0
      %578 = vmatprep.subr.mxu0 0.0
      %579 = vmatpush1.msra.mxu0 0.0
      %580 = vmatprep.subr.mxu0 0.0
      %581 = vmatpush1.msra.mxu0 0.0
      %582 = vmatprep.subr.mxu0 0.0
      %583 = vmatpush1.msra.mxu0 0.0
      %584 = vmatprep.subr.mxu0 0.0
      %585 = vmatpush1.msra.mxu0 0.0
      %586 = vmatprep.subr.mxu0 0.0
      %587 = vmatpush1.msra.mxu0 0.0
      %588 = vmatprep.subr.mxu0 0.0
      %589 = vmatpush1.msra.mxu0 0.0
      %590 = vmatprep.subr.mxu0 0.0
      %591 = vmatpush1.msra.mxu0 0.0
      %592 = vmatprep.subr.mxu0 0.0
      %593 = vmatpush1.msra.mxu0 0.0
      %594 = vmatprep.subr.mxu0 0.0
      %595 = vmatpush1.msra.mxu0 0.0
      %596 = vmatprep.subr.mxu0 0.0
      %597 = vmatpush1.msra.mxu0 0.0
      %598 = vmatprep.subr.mxu0 %v326
      %599 = vmatpush1.msra.mxu0 %v325
      %600 = vmatprep.subr.mxu0 %v322
      %601 = vmatpush1.msra.mxu0 %v321
      %602 = vmatprep.subr.mxu0 %v318
      %603 = vmatpush1.msra.mxu0 %v317
      %604 = vmatprep.subr.mxu0 %v314
      %605 = vmatpush1.msra.mxu0 %v313
      %606 = vmatprep.subr.mxu0 %v310
      %607 = vmatpush1.msra.mxu0 %v309
      %608 = vmatprep.subr.mxu0 0.0
      %609 = vmatpush2.msra.mxu0 0.0
      %610 = vmatprep.subr.mxu0 0.0
      %611 = vmatpush2.msra.mxu0 0.0
      %612 = vmatprep.subr.mxu0 0.0
      %613 = vmatpush2.msra.mxu0 0.0
      %614 = vmatprep.subr.mxu0 0.0
      %615 = vmatpush2.msra.mxu0 0.0
      %616 = vmatprep.subr.mxu0 0.0
      %617 = vmatpush2.msra.mxu0 0.0
      %618 = vmatprep.subr.mxu0 0.0
      %619 = vmatpush2.msra.mxu0 0.0
      %620 = vmatprep.subr.mxu0 0.0
      %621 = vmatpush2.msra.mxu0 0.0
      %622 = vmatprep.subr.mxu0 0.0
      %623 = vmatpush2.msra.mxu0 0.0
      %624 = vmatprep.subr.mxu0 0.0
      %625 = vmatpush2.msra.mxu0 0.0
      %626 = vmatprep.subr.mxu0 0.0
      %627 = vmatpush2.msra.mxu0 0.0
      %628 = vmatprep.subr.mxu0 0.0
      %629 = vmatpush2.msra.mxu0 0.0
      %630 = vmatprep.subr.mxu0 0.0
      %631 = vmatpush2.msra.mxu0 0.0
      %632 = vmatprep.subr.mxu0 0.0
      %633 = vmatpush2.msra.mxu0 0.0
      %634 = vmatprep.subr.mxu0 0.0
      %635 = vmatpush2.msra.mxu0 0.0
      %636 = vmatprep.subr.mxu0 0.0
      %637 = vmatpush2.msra.mxu0 0.0
      %638 = vmatprep.subr.mxu0 0.0
      %639 = vmatpush2.msra.mxu0 0.0
      %640 = vmatprep.mubr.f32.mxu0 0.0
      %641 = vmatmul.mubr.f32.gmra.mxu0 %v566
      %v642 = vpop.f32.mrf.mxu0
      %v643 = vadd.f32 %v443, %v642
      %v644 = vpop.f32.mrf.mxu0
      %v645 = vadd.f32 %v445, %v644
      %646 = vmatprep.mubr.f32.mxu0 0.0
      %647 = vmatmul.mubr.f32.gmra.mxu0 %v568
      %v648 = vpop.f32.mrf.mxu0
      %v649 = vadd.f32 %v449, %v648
      %v650 = vpop.f32.mrf.mxu0
      %v651 = vadd.f32 %v451, %v650
      %652 = vmatprep.mubr.f32.mxu0 0.0
      %653 = vmatmul.mubr.f32.gmra.mxu0 %v570
      %v654 = vpop.f32.mrf.mxu0
      %v655 = vadd.f32 %v455, %v654
      %v656 = vpop.f32.mrf.mxu0
      %v657 = vadd.f32 %v457, %v656
      %658 = vmatprep.mubr.f32.mxu0 0.0
      %659 = vmatmul.mubr.f32.gmra.mxu0 %v572
      %v660 = vpop.f32.mrf.mxu0
      %v661 = vadd.f32 %v461, %v660
      %v662 = vpop.f32.mrf.mxu0
      %v663 = vadd.f32 %v463, %v662
      %664 = vmatprep.mubr.f32.mxu0 0.0
      %665 = vmatmul.mubr.f32.gmra.mxu0 %v574
      %v666 = vpop.f32.mrf.mxu0
      %v667 = vadd.f32 %v467, %v666
      %v668 = vpop.f32.mrf.mxu0
      %v669 = vadd.f32 %v469, %v668
      %670 = vdwg.mxu0
      %671 = vmatprep.subr.mxu0 0.0
      %672 = vmatpush1.msra.mxu0 0.0
      %673 = vmatprep.subr.mxu0 0.0
      %674 = vmatpush1.msra.mxu0 0.0
      %675 = vmatprep.subr.mxu0 0.0
      %676 = vmatpush1.msra.mxu0 0.0
      %677 = vmatprep.subr.mxu0 0.0
      %678 = vmatpush1.msra.mxu0 0.0
      %679 = vmatprep.subr.mxu0 0.0
      %680 = vmatpush1.msra.mxu0 0.0
      %681 = vmatprep.subr.mxu0 0.0
      %682 = vmatpush1.msra.mxu0 0.0
      %683 = vmatprep.subr.mxu0 0.0
      %684 = vmatpush1.msra.mxu0 0.0
      %685 = vmatprep.subr.mxu0 0.0
      %686 = vmatpush1.msra.mxu0 0.0
      %687 = vmatprep.subr.mxu0 0.0
      %688 = vmatpush1.msra.mxu0 0.0
      %689 = vmatprep.subr.mxu0 0.0
      %690 = vmatpush1.msra.mxu0 0.0
      %691 = vmatprep.subr.mxu0 0.0
      %692 = vmatpush1.msra.mxu0 0.0
      %693 = vmatprep.subr.mxu0 %v328
      %694 = vmatpush1.msra.mxu0 %v327
      %695 = vmatprep.subr.mxu0 %v324
      %696 = vmatpush1.msra.mxu0 %v323
      %697 = vmatprep.subr.mxu0 %v320
      %698 = vmatpush1.msra.mxu0 %v319
      %699 = vmatprep.subr.mxu0 %v316
      %700 = vmatpush1.msra.mxu0 %v315
      %701 = vmatprep.subr.mxu0 %v312
      %702 = vmatpush1.msra.mxu0 %v311
      %703 = vmatprep.subr.mxu0 0.0
      %704 = vmatpush2.msra.mxu0 0.0
      %705 = vmatprep.subr.mxu0 0.0
      %706 = vmatpush2.msra.mxu0 0.0
      %707 = vmatprep.subr.mxu0 0.0
      %708 = vmatpush2.msra.mxu0 0.0
      %709 = vmatprep.subr.mxu0 0.0
      %710 = vmatpush2.msra.mxu0 0.0
      %711 = vmatprep.subr.mxu0 0.0
      %712 = vmatpush2.msra.mxu0 0.0
      %713 = vmatprep.subr.mxu0 0.0
      %714 = vmatpush2.msra.mxu0 0.0
      %715 = vmatprep.subr.mxu0 0.0
      %716 = vmatpush2.msra.mxu0 0.0
      %717 = vmatprep.subr.mxu0 0.0
      %718 = vmatpush2.msra.mxu0 0.0
      %719 = vmatprep.subr.mxu0 0.0
      %720 = vmatpush2.msra.mxu0 0.0
      %721 = vmatprep.subr.mxu0 0.0
      %722 = vmatpush2.msra.mxu0 0.0
      %723 = vmatprep.subr.mxu0 0.0
      %724 = vmatpush2.msra.mxu0 0.0
      %725 = vmatprep.subr.mxu0 0.0
      %726 = vmatpush2.msra.mxu0 0.0
      %727 = vmatprep.subr.mxu0 0.0
      %728 = vmatpush2.msra.mxu0 0.0
      %729 = vmatprep.subr.mxu0 0.0
      %730 = vmatpush2.msra.mxu0 0.0
      %731 = vmatprep.subr.mxu0 0.0
      %732 = vmatpush2.msra.mxu0 0.0
      %733 = vmatprep.subr.mxu0 0.0
      %734 = vmatpush2.msra.mxu0 0.0
      %735 = vmatprep.mubr.f32.mxu0 0.0
      %736 = vmatmul.mubr.f32.gmra.mxu0 %v566
      %v737 = vpop.f32.mrf.mxu0
      %v738 = vadd.f32 %v538, %v737
      %v739 = vpop.f32.mrf.mxu0
      %v740 = vadd.f32 %v540, %v739
      %741 = vmatprep.mubr.f32.mxu0 0.0
      %742 = vmatmul.mubr.f32.gmra.mxu0 %v568
      %v743 = vpop.f32.mrf.mxu0
      %v744 = vadd.f32 %v544, %v743
      %v745 = vpop.f32.mrf.mxu0
      %v746 = vadd.f32 %v546, %v745
      %747 = vmatprep.mubr.f32.mxu0 0.0
      %748 = vmatmul.mubr.f32.gmra.mxu0 %v570
      %v749 = vpop.f32.mrf.mxu0
      %v750 = vadd.f32 %v550, %v749
      %v751 = vpop.f32.mrf.mxu0
      %v752 = vadd.f32 %v552, %v751
      %753 = vmatprep.mubr.f32.mxu0 0.0
      %754 = vmatmul.mubr.f32.gmra.mxu0 %v572
      %v755 = vpop.f32.mrf.mxu0
      %v756 = vadd.f32 %v556, %v755
      %v757 = vpop.f32.mrf.mxu0
      %v758 = vadd.f32 %v558, %v757
      %759 = vmatprep.mubr.f32.mxu0 0.0
      %760 = vmatmul.mubr.f32.gmra.mxu0 %v574
      %v761 = vpop.f32.mrf.mxu0
      %v762 = vadd.f32 %v562, %v761
      %v763 = vpop.f32.mrf.mxu0
      %v764 = vadd.f32 %v564, %v763
      %765 = vdwg.mxu0
      %s766 = scalar_lea.vmem %s1, 320
      %v767 = vld [vmem:[%s766] sm:$0xff]
      %v768 = vld [vmem:[%s766 + $0x8] sm:$0xff]
      %v769 = vld [vmem:[%s766 + $0x10] sm:$0xff]
      %v770 = vld [vmem:[%s766 + $0x18] sm:$0xff]
      %v771 = vld [vmem:[%s766 + $0x20] sm:$0xff]
      %v772 = vld [vmem:[%s766 + $0x28] sm:$0xff]
      %v773 = vld [vmem:[%s766 + $0x30] sm:$0xff]
      %v774 = vld [vmem:[%s766 + $0x38] sm:$0xff]
      %v775 = vld [vmem:[%s766 + $0x40] sm:$0xff]
      %v776 = vld [vmem:[%s766 + $0x48] sm:$0xff]
      %v777 = vld [vmem:[%s766 + $0x50] sm:$0xff]
      %v778 = vld [vmem:[%s766 + $0x58] sm:$0xff]
      %v779 = vld [vmem:[%s766 + $0x60] sm:$0xff]
      %v780 = vld [vmem:[%s766 + $0x68] sm:$0xff]
      %v781 = vld [vmem:[%s766 + $0x70] sm:$0xff]
      %v782 = vld [vmem:[%s766 + $0x78] sm:$0xff]
      %v783 = vld [vmem:[%s766 + $0x80] sm:$0xff]
      %v784 = vld [vmem:[%s766 + $0x88] sm:$0xff]
      %v785 = vld [vmem:[%s766 + $0x90] sm:$0xff]
      %v786 = vld [vmem:[%s766 + $0x98] sm:$0xff]
      %vm787 = vcmask 1045504
      %v788 = vrot.slane %v304, 2
      %v789 = vrot.slane %v305, 2
      %v790 = vsel %vm787, %v788, %v789
      %v791 = vrot.slane %v306, 2
      %v792 = vsel %vm787, %v789, %v791
      %v793 = vrot.slane %v307, 2
      %v794 = vsel %vm787, %v791, %v793
      %v795 = vrot.slane %v308, 2
      %v796 = vsel %vm787, %v793, %v795
      %v797 = vsel %vm365, %v790, 0
      %v799 = vsel %vm365, %v792, 0
      %v801 = vsel %vm365, %v794, 0
      %v803 = vsel %vm365, %v796, 0
      %v805 = vsel %vm365, %v795, 0
      %807 = vmatprep.subr.mxu0 0.0
      %808 = vmatpush1.msra.mxu0 0.0
      %809 = vmatprep.subr.mxu0 0.0
      %810 = vmatpush1.msra.mxu0 0.0
      %811 = vmatprep.subr.mxu0 0.0
      %812 = vmatpush1.msra.mxu0 0.0
      %813 = vmatprep.subr.mxu0 0.0
      %814 = vmatpush1.msra.mxu0 0.0
      %815 = vmatprep.subr.mxu0 0.0
      %816 = vmatpush1.msra.mxu0 0.0
      %817 = vmatprep.subr.mxu0 0.0
      %818 = vmatpush1.msra.mxu0 0.0
      %819 = vmatprep.subr.mxu0 0.0
      %820 = vmatpush1.msra.mxu0 0.0
      %821 = vmatprep.subr.mxu0 0.0
      %822 = vmatpush1.msra.mxu0 0.0
      %823 = vmatprep.subr.mxu0 0.0
      %824 = vmatpush1.msra.mxu0 0.0
      %825 = vmatprep.subr.mxu0 0.0
      %826 = vmatpush1.msra.mxu0 0.0
      %827 = vmatprep.subr.mxu0 0.0
      %828 = vmatpush1.msra.mxu0 0.0
      %829 = vmatprep.subr.mxu0 %v784
      %830 = vmatpush1.msra.mxu0 %v783
      %831 = vmatprep.subr.mxu0 %v780
      %832 = vmatpush1.msra.mxu0 %v779
      %833 = vmatprep.subr.mxu0 %v776
      %834 = vmatpush1.msra.mxu0 %v775
      %835 = vmatprep.subr.mxu0 %v772
      %836 = vmatpush1.msra.mxu0 %v771
      %837 = vmatprep.subr.mxu0 %v768
      %838 = vmatpush1.msra.mxu0 %v767
      %839 = vmatprep.subr.mxu0 0.0
      %840 = vmatpush2.msra.mxu0 0.0
      %841 = vmatprep.subr.mxu0 0.0
      %842 = vmatpush2.msra.mxu0 0.0
      %843 = vmatprep.subr.mxu0 0.0
      %844 = vmatpush2.msra.mxu0 0.0
      %845 = vmatprep.subr.mxu0 0.0
      %846 = vmatpush2.msra.mxu0 0.0
      %847 = vmatprep.subr.mxu0 0.0
      %848 = vmatpush2.msra.mxu0 0.0
      %849 = vmatprep.subr.mxu0 0.0
      %850 = vmatpush2.msra.mxu0 0.0
      %851 = vmatprep.subr.mxu0 0.0
      %852 = vmatpush2.msra.mxu0 0.0
      %853 = vmatprep.subr.mxu0 0.0
      %854 = vmatpush2.msra.mxu0 0.0
      %855 = vmatprep.subr.mxu0 0.0
      %856 = vmatpush2.msra.mxu0 0.0
      %857 = vmatprep.subr.mxu0 0.0
      %858 = vmatpush2.msra.mxu0 0.0
      %859 = vmatprep.subr.mxu0 0.0
      %860 = vmatpush2.msra.mxu0 0.0
      %861 = vmatprep.subr.mxu0 0.0
      %862 = vmatpush2.msra.mxu0 0.0
      %863 = vmatprep.subr.mxu0 0.0
      %864 = vmatpush2.msra.mxu0 0.0
      %865 = vmatprep.subr.mxu0 0.0
      %866 = vmatpush2.msra.mxu0 0.0
      %867 = vmatprep.subr.mxu0 0.0
      %868 = vmatpush2.msra.mxu0 0.0
      %869 = vmatprep.subr.mxu0 0.0
      %870 = vmatpush2.msra.mxu0 0.0
      %871 = vmatprep.mubr.f32.mxu0 0.0
      %872 = vmatmul.mubr.f32.gmra.mxu0 %v797
      %v873 = vpop.f32.mrf.mxu0
      %v874 = vadd.f32 0.0, %v873
      %v875 = vpop.f32.mrf.mxu0
      %v876 = vadd.f32 0.0, %v875
      %877 = vmatprep.mubr.f32.mxu0 0.0
      %878 = vmatmul.mubr.f32.gmra.mxu0 %v799
      %v879 = vpop.f32.mrf.mxu0
      %v880 = vadd.f32 0.0, %v879
      %v881 = vpop.f32.mrf.mxu0
      %v882 = vadd.f32 0.0, %v881
      %883 = vmatprep.mubr.f32.mxu0 0.0
      %884 = vmatmul.mubr.f32.gmra.mxu0 %v801
      %v885 = vpop.f32.mrf.mxu0
      %v886 = vadd.f32 0.0, %v885
      %v887 = vpop.f32.mrf.mxu0
      %v888 = vadd.f32 0.0, %v887
      %889 = vmatprep.mubr.f32.mxu0 0.0
      %890 = vmatmul.mubr.f32.gmra.mxu0 %v803
      %v891 = vpop.f32.mrf.mxu0
      %v892 = vadd.f32 0.0, %v891
      %v893 = vpop.f32.mrf.mxu0
      %v894 = vadd.f32 0.0, %v893
      %895 = vmatprep.mubr.f32.mxu0 0.0
      %896 = vmatmul.mubr.f32.gmra.mxu0 %v805
      %v897 = vpop.f32.mrf.mxu0
      %v898 = vadd.f32 0.0, %v897
      %v899 = vpop.f32.mrf.mxu0
      %v900 = vadd.f32 0.0, %v899
      %901 = vdwg.mxu0
      %902 = vmatprep.subr.mxu0 0.0
      %903 = vmatpush1.msra.mxu0 0.0
      %904 = vmatprep.subr.mxu0 0.0
      %905 = vmatpush1.msra.mxu0 0.0
      %906 = vmatprep.subr.mxu0 0.0
      %907 = vmatpush1.msra.mxu0 0.0
      %908 = vmatprep.subr.mxu0 0.0
      %909 = vmatpush1.msra.mxu0 0.0
      %910 = vmatprep.subr.mxu0 0.0
      %911 = vmatpush1.msra.mxu0 0.0
      %912 = vmatprep.subr.mxu0 0.0
      %913 = vmatpush1.msra.mxu0 0.0
      %914 = vmatprep.subr.mxu0 0.0
      %915 = vmatpush1.msra.mxu0 0.0
      %916 = vmatprep.subr.mxu0 0.0
      %917 = vmatpush1.msra.mxu0 0.0
      %918 = vmatprep.subr.mxu0 0.0
      %919 = vmatpush1.msra.mxu0 0.0
      %920 = vmatprep.subr.mxu0 0.0
      %921 = vmatpush1.msra.mxu0 0.0
      %922 = vmatprep.subr.mxu0 0.0
      %923 = vmatpush1.msra.mxu0 0.0
      %924 = vmatprep.subr.mxu0 %v786
      %925 = vmatpush1.msra.mxu0 %v785
      %926 = vmatprep.subr.mxu0 %v782
      %927 = vmatpush1.msra.mxu0 %v781
      %928 = vmatprep.subr.mxu0 %v778
      %929 = vmatpush1.msra.mxu0 %v777
      %930 = vmatprep.subr.mxu0 %v774
      %931 = vmatpush1.msra.mxu0 %v773
      %932 = vmatprep.subr.mxu0 %v770
      %933 = vmatpush1.msra.mxu0 %v769
      %934 = vmatprep.subr.mxu0 0.0
      %935 = vmatpush2.msra.mxu0 0.0
      %936 = vmatprep.subr.mxu0 0.0
      %937 = vmatpush2.msra.mxu0 0.0
      %938 = vmatprep.subr.mxu0 0.0
      %939 = vmatpush2.msra.mxu0 0.0
      %940 = vmatprep.subr.mxu0 0.0
      %941 = vmatpush2.msra.mxu0 0.0
      %942 = vmatprep.subr.mxu0 0.0
      %943 = vmatpush2.msra.mxu0 0.0
      %944 = vmatprep.subr.mxu0 0.0
      %945 = vmatpush2.msra.mxu0 0.0
      %946 = vmatprep.subr.mxu0 0.0
      %947 = vmatpush2.msra.mxu0 0.0
      %948 = vmatprep.subr.mxu0 0.0
      %949 = vmatpush2.msra.mxu0 0.0
      %950 = vmatprep.subr.mxu0 0.0
      %951 = vmatpush2.msra.mxu0 0.0
      %952 = vmatprep.subr.mxu0 0.0
      %953 = vmatpush2.msra.mxu0 0.0
      %954 = vmatprep.subr.mxu0 0.0
      %955 = vmatpush2.msra.mxu0 0.0
      %956 = vmatprep.subr.mxu0 0.0
      %957 = vmatpush2.msra.mxu0 0.0
      %958 = vmatprep.subr.mxu0 0.0
      %959 = vmatpush2.msra.mxu0 0.0
      %960 = vmatprep.subr.mxu0 0.0
      %961 = vmatpush2.msra.mxu0 0.0
      %962 = vmatprep.subr.mxu0 0.0
      %963 = vmatpush2.msra.mxu0 0.0
      %964 = vmatprep.subr.mxu0 0.0
      %965 = vmatpush2.msra.mxu0 0.0
      %966 = vmatprep.mubr.f32.mxu0 0.0
      %967 = vmatmul.mubr.f32.gmra.mxu0 %v797
      %v968 = vpop.f32.mrf.mxu0
      %v969 = vadd.f32 0.0, %v968
      %v970 = vpop.f32.mrf.mxu0
      %v971 = vadd.f32 0.0, %v970
      %972 = vmatprep.mubr.f32.mxu0 0.0
      %973 = vmatmul.mubr.f32.gmra.mxu0 %v799
      %v974 = vpop.f32.mrf.mxu0
      %v975 = vadd.f32 0.0, %v974
      %v976 = vpop.f32.mrf.mxu0
      %v977 = vadd.f32 0.0, %v976
      %978 = vmatprep.mubr.f32.mxu0 0.0
      %979 = vmatmul.mubr.f32.gmra.mxu0 %v801
      %v980 = vpop.f32.mrf.mxu0
      %v981 = vadd.f32 0.0, %v980
      %v982 = vpop.f32.mrf.mxu0
      %v983 = vadd.f32 0.0, %v982
      %984 = vmatprep.mubr.f32.mxu0 0.0
      %985 = vmatmul.mubr.f32.gmra.mxu0 %v803
      %v986 = vpop.f32.mrf.mxu0
      %v987 = vadd.f32 0.0, %v986
      %v988 = vpop.f32.mrf.mxu0
      %v989 = vadd.f32 0.0, %v988
      %990 = vmatprep.mubr.f32.mxu0 0.0
      %991 = vmatmul.mubr.f32.gmra.mxu0 %v805
      %v992 = vpop.f32.mrf.mxu0
      %v993 = vadd.f32 0.0, %v992
      %v994 = vpop.f32.mrf.mxu0
      %v995 = vadd.f32 0.0, %v994
      %996 = vdwg.mxu0
      %v997 = vadd.f32 %v643, %v874
      %v998 = vadd.f32 %v645, %v876
      %v999 = vadd.f32 %v738, %v969
      %v1000 = vadd.f32 %v740, %v971
      %v1001 = vadd.f32 %v649, %v880
      %v1002 = vadd.f32 %v651, %v882
      %v1003 = vadd.f32 %v744, %v975
      %v1004 = vadd.f32 %v746, %v977
      %v1005 = vadd.f32 %v655, %v886
      %v1006 = vadd.f32 %v657, %v888
      %v1007 = vadd.f32 %v750, %v981
      %v1008 = vadd.f32 %v752, %v983
      %v1009 = vadd.f32 %v661, %v892
      %v1010 = vadd.f32 %v663, %v894
      %v1011 = vadd.f32 %v756, %v987
      %v1012 = vadd.f32 %v758, %v989
      %v1013 = vadd.f32 %v667, %v898
      %v1014 = vadd.f32 %v669, %v900
      %v1015 = vadd.f32 %v762, %v993
      %v1016 = vadd.f32 %v764, %v995
      %v1017 = vld [vmem:[%s2] sm:$0xf]
      %v1019 = vlaneseq
      %v1020 = vshrl.u32 %v1019, 7
      %v1021 = vsub.s32 0, %v1020
      %v1022 = vrot.slane %v1017, %v1021
      %v1023 = vlaneseq
      %v1024 = vshrl.u32 %v1023, 7
      %v1025 = vsub.s32 1, %v1024
      %v1026 = vrot.slane %v1017, %v1025
      %v1027 = vlaneseq
      %v1028 = vshrl.u32 %v1027, 7
      %v1029 = vsub.s32 2, %v1028
      %v1030 = vrot.slane %v1017, %v1029
      %v1031 = vlaneseq
      %v1032 = vshrl.u32 %v1031, 7
      %v1033 = vsub.s32 3, %v1032
      %v1034 = vrot.slane %v1017, %v1033
      %v1039 = vadd.f32 %v997, %v1022
      %v1040 = vadd.f32 %v998, %v1026
      %v1041 = vadd.f32 %v999, %v1030
      %v1042 = vadd.f32 %v1000, %v1034
      %v1043 = vadd.f32 %v1001, %v1022
      %v1044 = vadd.f32 %v1002, %v1026
      %v1045 = vadd.f32 %v1003, %v1030
      %v1046 = vadd.f32 %v1004, %v1034
      %v1047 = vadd.f32 %v1005, %v1022
      %v1048 = vadd.f32 %v1006, %v1026
      %v1049 = vadd.f32 %v1007, %v1030
      %v1050 = vadd.f32 %v1008, %v1034
      %v1051 = vadd.f32 %v1009, %v1022
      %v1052 = vadd.f32 %v1010, %v1026
      %v1053 = vadd.f32 %v1011, %v1030
      %v1054 = vadd.f32 %v1012, %v1034
      %v1055 = vadd.f32 %v1013, %v1022
      %v1056 = vadd.f32 %v1014, %v1026
      %v1057 = vadd.f32 %v1015, %v1030
      %v1058 = vadd.f32 %v1016, %v1034
      %v1059 = vmax.f32 %v1039, 0.0
      %v1060 = vmax.f32 %v1040, 0.0
      %v1061 = vmax.f32 %v1041, 0.0
      %v1062 = vmax.f32 %v1042, 0.0
      %v1063 = vmax.f32 %v1043, 0.0
      %v1064 = vmax.f32 %v1044, 0.0
      %v1065 = vmax.f32 %v1045, 0.0
      %v1066 = vmax.f32 %v1046, 0.0
      %v1067 = vmax.f32 %v1047, 0.0
      %v1068 = vmax.f32 %v1048, 0.0
      %v1069 = vmax.f32 %v1049, 0.0
      %v1070 = vmax.f32 %v1050, 0.0
      %v1071 = vmax.f32 %v1051, 0.0
      %v1072 = vmax.f32 %v1052, 0.0
      %v1073 = vmax.f32 %v1053, 0.0
      %v1074 = vmax.f32 %v1054, 0.0
      %v1075 = vmax.f32 %v1055, 0.0
      %v1076 = vmax.f32 %v1056, 0.0
      %v1077 = vmax.f32 %v1057, 0.0
      %v1078 = vmax.f32 %v1058, 0.0
      %v1079 = vld [vmem:[%s3] sm:$0xff]
      %v1080 = vld [vmem:[%s3 + $0x8] sm:$0xff]
      %v1081 = vld [vmem:[%s3 + $0x10] sm:$0xff]
      %v1082 = vld [vmem:[%s3 + $0x18] sm:$0xff]
      %v1083 = vld [vmem:[%s3 + $0x20] sm:$0xff]
      %v1084 = vld [vmem:[%s3 + $0x28] sm:$0xff]
      %v1085 = vld [vmem:[%s3 + $0x30] sm:$0xff]
      %v1086 = vld [vmem:[%s3 + $0x38] sm:$0xff]
      %v1087 = vld [vmem:[%s3 + $0x40] sm:$0xff]
      %v1088 = vld [vmem:[%s3 + $0x48] sm:$0xff]
      %v1089 = vld [vmem:[%s3 + $0x50] sm:$0xff]
      %v1090 = vld [vmem:[%s3 + $0x58] sm:$0xff]
      %v1091 = vld [vmem:[%s3 + $0x60] sm:$0xff]
      %v1092 = vld [vmem:[%s3 + $0x68] sm:$0xff]
      %v1093 = vld [vmem:[%s3 + $0x70] sm:$0xff]
      %v1094 = vld [vmem:[%s3 + $0x78] sm:$0xff]
      %v1095 = vld [vmem:[%s3 + $0x80] sm:$0xff]
      %v1096 = vld [vmem:[%s3 + $0x88] sm:$0xff]
      %v1097 = vld [vmem:[%s3 + $0x90] sm:$0xff]
      %v1098 = vld [vmem:[%s3 + $0x98] sm:$0xff]
      %v1099 = vld [vmem:[%s3 + $0xa0] sm:$0xff]
      %v1100 = vld [vmem:[%s3 + $0xa8] sm:$0xff]
      %v1101 = vld [vmem:[%s3 + $0xb0] sm:$0xff]
      %v1102 = vld [vmem:[%s3 + $0xb8] sm:$0xff]
      %v1103 = vld [vmem:[%s3 + $0xc0] sm:$0xff]
      %v1104 = vld [vmem:[%s3 + $0xc8] sm:$0xff]
      %v1105 = vld [vmem:[%s3 + $0xd0] sm:$0xff]
      %v1106 = vld [vmem:[%s3 + $0xd8] sm:$0xff]
      %v1107 = vld [vmem:[%s3 + $0xe0] sm:$0xff]
      %v1108 = vld [vmem:[%s3 + $0xe8] sm:$0xff]
      %v1109 = vld [vmem:[%s3 + $0xf0] sm:$0xff]
      %v1110 = vld [vmem:[%s3 + $0xf8] sm:$0xff]
      %v1111 = vld [vmem:[%s3 + $0x100] sm:$0xff]
      %v1112 = vld [vmem:[%s3 + $0x108] sm:$0xff]
      %v1113 = vld [vmem:[%s3 + $0x110] sm:$0xff]
      %v1114 = vld [vmem:[%s3 + $0x118] sm:$0xff]
      %v1115 = vld [vmem:[%s3 + $0x120] sm:$0xff]
      %v1116 = vld [vmem:[%s3 + $0x128] sm:$0xff]
      %v1117 = vld [vmem:[%s3 + $0x130] sm:$0xff]
      %v1118 = vld [vmem:[%s3 + $0x138] sm:$0xff]
      %v1119 = vld [vmem:[%s3 + $0x140] sm:$0xff]
      %v1120 = vld [vmem:[%s3 + $0x148] sm:$0xff]
      %v1121 = vld [vmem:[%s3 + $0x150] sm:$0xff]
      %v1122 = vld [vmem:[%s3 + $0x158] sm:$0xff]
      %v1123 = vld [vmem:[%s3 + $0x160] sm:$0xff]
      %v1124 = vld [vmem:[%s3 + $0x168] sm:$0xff]
      %v1125 = vld [vmem:[%s3 + $0x170] sm:$0xff]
      %v1126 = vld [vmem:[%s3 + $0x178] sm:$0xff]
      %v1127 = vld [vmem:[%s3 + $0x180] sm:$0xff]
      %v1128 = vld [vmem:[%s3 + $0x188] sm:$0xff]
      %v1129 = vld [vmem:[%s3 + $0x190] sm:$0xff]
      %v1130 = vld [vmem:[%s3 + $0x198] sm:$0xff]
      %v1131 = vld [vmem:[%s3 + $0x1a0] sm:$0xff]
      %v1132 = vld [vmem:[%s3 + $0x1a8] sm:$0xff]
      %v1133 = vld [vmem:[%s3 + $0x1b0] sm:$0xff]
      %v1134 = vld [vmem:[%s3 + $0x1b8] sm:$0xff]
      %v1135 = vld [vmem:[%s3 + $0x1c0] sm:$0xff]
      %v1136 = vld [vmem:[%s3 + $0x1c8] sm:$0xff]
      %v1137 = vld [vmem:[%s3 + $0x1d0] sm:$0xff]
      %v1138 = vld [vmem:[%s3 + $0x1d8] sm:$0xff]
      %v1139 = vld [vmem:[%s3 + $0x1e0] sm:$0xff]
      %v1140 = vld [vmem:[%s3 + $0x1e8] sm:$0xff]
      %v1141 = vld [vmem:[%s3 + $0x1f0] sm:$0xff]
      %v1142 = vld [vmem:[%s3 + $0x1f8] sm:$0xff]
      %v1143 = vld [vmem:[%s3 + $0x200] sm:$0xff]
      %v1144 = vld [vmem:[%s3 + $0x208] sm:$0xff]
      %v1145 = vld [vmem:[%s3 + $0x210] sm:$0xff]
      %v1146 = vld [vmem:[%s3 + $0x218] sm:$0xff]
      %v1147 = vld [vmem:[%s3 + $0x220] sm:$0xff]
      %v1148 = vld [vmem:[%s3 + $0x228] sm:$0xff]
      %v1149 = vld [vmem:[%s3 + $0x230] sm:$0xff]
      %v1150 = vld [vmem:[%s3 + $0x238] sm:$0xff]
      %v1151 = vld [vmem:[%s3 + $0x240] sm:$0xff]
      %v1152 = vld [vmem:[%s3 + $0x248] sm:$0xff]
      %v1153 = vld [vmem:[%s3 + $0x250] sm:$0xff]
      %v1154 = vld [vmem:[%s3 + $0x258] sm:$0xff]
      %v1155 = vld [vmem:[%s3 + $0x260] sm:$0xff]
      %v1156 = vld [vmem:[%s3 + $0x268] sm:$0xff]
      %v1157 = vld [vmem:[%s3 + $0x270] sm:$0xff]
      %v1158 = vld [vmem:[%s3 + $0x278] sm:$0xff]
      %v1159 = vld [vmem:[%s3 + $0x280] sm:$0xff]
      %v1160 = vld [vmem:[%s3 + $0x288] sm:$0xff]
      %v1161 = vld [vmem:[%s3 + $0x290] sm:$0xff]
      %v1162 = vld [vmem:[%s3 + $0x298] sm:$0xff]
      %v1163 = vld [vmem:[%s3 + $0x2a0] sm:$0xff]
      %v1164 = vld [vmem:[%s3 + $0x2a8] sm:$0xff]
      %v1165 = vld [vmem:[%s3 + $0x2b0] sm:$0xff]
      %v1166 = vld [vmem:[%s3 + $0x2b8] sm:$0xff]
      %v1167 = vld [vmem:[%s3 + $0x2c0] sm:$0xff]
      %v1168 = vld [vmem:[%s3 + $0x2c8] sm:$0xff]
      %v1169 = vld [vmem:[%s3 + $0x2d0] sm:$0xff]
      %v1170 = vld [vmem:[%s3 + $0x2d8] sm:$0xff]
      %v1171 = vld [vmem:[%s3 + $0x2e0] sm:$0xff]
      %v1172 = vld [vmem:[%s3 + $0x2e8] sm:$0xff]
      %v1173 = vld [vmem:[%s3 + $0x2f0] sm:$0xff]
      %v1174 = vld [vmem:[%s3 + $0x2f8] sm:$0xff]
      %v1175 = vld [vmem:[%s3 + $0x300] sm:$0xff]
      %v1176 = vld [vmem:[%s3 + $0x308] sm:$0xff]
      %v1177 = vld [vmem:[%s3 + $0x310] sm:$0xff]
      %v1178 = vld [vmem:[%s3 + $0x318] sm:$0xff]
      %v1179 = vld [vmem:[%s3 + $0x320] sm:$0xff]
      %v1180 = vld [vmem:[%s3 + $0x328] sm:$0xff]
      %v1181 = vld [vmem:[%s3 + $0x330] sm:$0xff]
      %v1182 = vld [vmem:[%s3 + $0x338] sm:$0xff]
      %v1183 = vld [vmem:[%s3 + $0x340] sm:$0xff]
      %v1184 = vld [vmem:[%s3 + $0x348] sm:$0xff]
      %v1185 = vld [vmem:[%s3 + $0x350] sm:$0xff]
      %v1186 = vld [vmem:[%s3 + $0x358] sm:$0xff]
      %v1187 = vld [vmem:[%s3 + $0x360] sm:$0xff]
      %v1188 = vld [vmem:[%s3 + $0x368] sm:$0xff]
      %v1189 = vld [vmem:[%s3 + $0x370] sm:$0xff]
      %v1190 = vld [vmem:[%s3 + $0x378] sm:$0xff]
      %v1191 = vld [vmem:[%s3 + $0x380] sm:$0xff]
      %v1192 = vld [vmem:[%s3 + $0x388] sm:$0xff]
      %v1193 = vld [vmem:[%s3 + $0x390] sm:$0xff]
      %v1194 = vld [vmem:[%s3 + $0x398] sm:$0xff]
      %v1195 = vld [vmem:[%s3 + $0x3a0] sm:$0xff]
      %v1196 = vld [vmem:[%s3 + $0x3a8] sm:$0xff]
      %v1197 = vld [vmem:[%s3 + $0x3b0] sm:$0xff]
      %v1198 = vld [vmem:[%s3 + $0x3b8] sm:$0xff]
      %v1199 = vld [vmem:[%s3 + $0x3c0] sm:$0xff]
      %v1200 = vld [vmem:[%s3 + $0x3c8] sm:$0xff]
      %v1201 = vld [vmem:[%s3 + $0x3d0] sm:$0xff]
      %v1202 = vld [vmem:[%s3 + $0x3d8] sm:$0xff]
      %v1203 = vld [vmem:[%s3 + $0x3e0] sm:$0xff]
      %v1204 = vld [vmem:[%s3 + $0x3e8] sm:$0xff]
      %v1205 = vld [vmem:[%s3 + $0x3f0] sm:$0xff]
      %v1206 = vld [vmem:[%s3 + $0x3f8] sm:$0xff]
      %v1207 = vld [vmem:[%s3 + $0x400] sm:$0xff]
      %v1208 = vld [vmem:[%s3 + $0x408] sm:$0xff]
      %v1209 = vld [vmem:[%s3 + $0x410] sm:$0xff]
      %v1210 = vld [vmem:[%s3 + $0x418] sm:$0xff]
      %v1211 = vld [vmem:[%s3 + $0x420] sm:$0xff]
      %v1212 = vld [vmem:[%s3 + $0x428] sm:$0xff]
      %v1213 = vld [vmem:[%s3 + $0x430] sm:$0xff]
      %v1214 = vld [vmem:[%s3 + $0x438] sm:$0xff]
      %v1215 = vld [vmem:[%s3 + $0x440] sm:$0xff]
      %v1216 = vld [vmem:[%s3 + $0x448] sm:$0xff]
      %v1217 = vld [vmem:[%s3 + $0x450] sm:$0xff]
      %v1218 = vld [vmem:[%s3 + $0x458] sm:$0xff]
      %v1219 = vld [vmem:[%s3 + $0x460] sm:$0xff]
      %v1220 = vld [vmem:[%s3 + $0x468] sm:$0xff]
      %v1221 = vld [vmem:[%s3 + $0x470] sm:$0xff]
      %v1222 = vld [vmem:[%s3 + $0x478] sm:$0xff]
      %v1223 = vld [vmem:[%s3 + $0x480] sm:$0xff]
      %v1224 = vld [vmem:[%s3 + $0x488] sm:$0xff]
      %v1225 = vld [vmem:[%s3 + $0x490] sm:$0xff]
      %v1226 = vld [vmem:[%s3 + $0x498] sm:$0xff]
      %v1227 = vld [vmem:[%s3 + $0x4a0] sm:$0xff]
      %v1228 = vld [vmem:[%s3 + $0x4a8] sm:$0xff]
      %v1229 = vld [vmem:[%s3 + $0x4b0] sm:$0xff]
      %v1230 = vld [vmem:[%s3 + $0x4b8] sm:$0xff]
      %v1231 = vld [vmem:[%s3 + $0x4c0] sm:$0xff]
      %v1232 = vld [vmem:[%s3 + $0x4c8] sm:$0xff]
      %v1233 = vld [vmem:[%s3 + $0x4d0] sm:$0xff]
      %v1234 = vld [vmem:[%s3 + $0x4d8] sm:$0xff]
      %v1235 = vld [vmem:[%s3 + $0x4e0] sm:$0xff]
      %v1236 = vld [vmem:[%s3 + $0x4e8] sm:$0xff]
      %v1237 = vld [vmem:[%s3 + $0x4f0] sm:$0xff]
      %v1238 = vld [vmem:[%s3 + $0x4f8] sm:$0xff]
      %v1239 = vld [vmem:[%s3 + $0x500] sm:$0xff]
      %v1240 = vld [vmem:[%s3 + $0x508] sm:$0xff]
      %v1241 = vld [vmem:[%s3 + $0x510] sm:$0xff]
      %v1242 = vld [vmem:[%s3 + $0x518] sm:$0xff]
      %v1243 = vld [vmem:[%s3 + $0x520] sm:$0xff]
      %v1244 = vld [vmem:[%s3 + $0x528] sm:$0xff]
      %v1245 = vld [vmem:[%s3 + $0x530] sm:$0xff]
      %v1246 = vld [vmem:[%s3 + $0x538] sm:$0xff]
      %v1247 = vld [vmem:[%s3 + $0x540] sm:$0xff]
      %v1248 = vld [vmem:[%s3 + $0x548] sm:$0xff]
      %v1249 = vld [vmem:[%s3 + $0x550] sm:$0xff]
      %v1250 = vld [vmem:[%s3 + $0x558] sm:$0xff]
      %v1251 = vld [vmem:[%s3 + $0x560] sm:$0xff]
      %v1252 = vld [vmem:[%s3 + $0x568] sm:$0xff]
      %v1253 = vld [vmem:[%s3 + $0x570] sm:$0xff]
      %v1254 = vld [vmem:[%s3 + $0x578] sm:$0xff]
      %v1255 = vld [vmem:[%s3 + $0x580] sm:$0xff]
      %v1256 = vld [vmem:[%s3 + $0x588] sm:$0xff]
      %v1257 = vld [vmem:[%s3 + $0x590] sm:$0xff]
      %v1258 = vld [vmem:[%s3 + $0x598] sm:$0xff]
      %v1259 = vld [vmem:[%s3 + $0x5a0] sm:$0xff]
      %v1260 = vld [vmem:[%s3 + $0x5a8] sm:$0xff]
      %v1261 = vld [vmem:[%s3 + $0x5b0] sm:$0xff]
      %v1262 = vld [vmem:[%s3 + $0x5b8] sm:$0xff]
      %v1263 = vld [vmem:[%s3 + $0x5c0] sm:$0xff]
      %v1264 = vld [vmem:[%s3 + $0x5c8] sm:$0xff]
      %v1265 = vld [vmem:[%s3 + $0x5d0] sm:$0xff]
      %v1266 = vld [vmem:[%s3 + $0x5d8] sm:$0xff]
      %v1267 = vld [vmem:[%s3 + $0x5e0] sm:$0xff]
      %v1268 = vld [vmem:[%s3 + $0x5e8] sm:$0xff]
      %v1269 = vld [vmem:[%s3 + $0x5f0] sm:$0xff]
      %v1270 = vld [vmem:[%s3 + $0x5f8] sm:$0xff]
      %v1271 = vld [vmem:[%s3 + $0x600] sm:$0xff]
      %v1272 = vld [vmem:[%s3 + $0x608] sm:$0xff]
      %v1273 = vld [vmem:[%s3 + $0x610] sm:$0xff]
      %v1274 = vld [vmem:[%s3 + $0x618] sm:$0xff]
      %v1275 = vld [vmem:[%s3 + $0x620] sm:$0xff]
      %v1276 = vld [vmem:[%s3 + $0x628] sm:$0xff]
      %v1277 = vld [vmem:[%s3 + $0x630] sm:$0xff]
      %v1278 = vld [vmem:[%s3 + $0x638] sm:$0xff]
      %v1279 = vld [vmem:[%s3 + $0x640] sm:$0xff]
      %v1280 = vld [vmem:[%s3 + $0x648] sm:$0xff]
      %v1281 = vld [vmem:[%s3 + $0x650] sm:$0xff]
      %v1282 = vld [vmem:[%s3 + $0x658] sm:$0xff]
      %v1283 = vld [vmem:[%s3 + $0x660] sm:$0xff]
      %v1284 = vld [vmem:[%s3 + $0x668] sm:$0xff]
      %v1285 = vld [vmem:[%s3 + $0x670] sm:$0xff]
      %v1286 = vld [vmem:[%s3 + $0x678] sm:$0xff]
      %v1287 = vld [vmem:[%s3 + $0x680] sm:$0xff]
      %v1288 = vld [vmem:[%s3 + $0x688] sm:$0xff]
      %v1289 = vld [vmem:[%s3 + $0x690] sm:$0xff]
      %v1290 = vld [vmem:[%s3 + $0x698] sm:$0xff]
      %v1291 = vld [vmem:[%s3 + $0x6a0] sm:$0xff]
      %v1292 = vld [vmem:[%s3 + $0x6a8] sm:$0xff]
      %v1293 = vld [vmem:[%s3 + $0x6b0] sm:$0xff]
      %v1294 = vld [vmem:[%s3 + $0x6b8] sm:$0xff]
      %v1295 = vld [vmem:[%s3 + $0x6c0] sm:$0xff]
      %v1296 = vld [vmem:[%s3 + $0x6c8] sm:$0xff]
      %v1297 = vld [vmem:[%s3 + $0x6d0] sm:$0xff]
      %v1298 = vld [vmem:[%s3 + $0x6d8] sm:$0xff]
      %v1299 = vld [vmem:[%s3 + $0x6e0] sm:$0xff]
      %v1300 = vld [vmem:[%s3 + $0x6e8] sm:$0xff]
      %v1301 = vld [vmem:[%s3 + $0x6f0] sm:$0xff]
      %v1302 = vld [vmem:[%s3 + $0x6f8] sm:$0xff]
      %v1303 = vld [vmem:[%s3 + $0x700] sm:$0xff]
      %v1304 = vld [vmem:[%s3 + $0x708] sm:$0xff]
      %v1305 = vld [vmem:[%s3 + $0x710] sm:$0xff]
      %v1306 = vld [vmem:[%s3 + $0x718] sm:$0xff]
      %s1307 = scalar_lea.vmem %s3, 1824
      %v1308 = vld [vmem:[%s1307] sm:$0xff]
      %v1309 = vld [vmem:[%s1307 + $0x8] sm:$0xff]
      %v1310 = vld [vmem:[%s1307 + $0x10] sm:$0xff]
      %v1311 = vld [vmem:[%s1307 + $0x18] sm:$0xff]
      %v1312 = vld [vmem:[%s1307 + $0x20] sm:$0xff]
      %v1313 = vld [vmem:[%s1307 + $0x28] sm:$0xff]
      %v1314 = vld [vmem:[%s1307 + $0x30] sm:$0xff]
      %v1315 = vld [vmem:[%s1307 + $0x38] sm:$0xff]
      %v1316 = vld [vmem:[%s1307 + $0x40] sm:$0xff]
      %v1317 = vld [vmem:[%s1307 + $0x48] sm:$0xff]
      %v1318 = vld [vmem:[%s1307 + $0x50] sm:$0xff]
      %v1319 = vld [vmem:[%s1307 + $0x58] sm:$0xff]
      %v1320 = vld [vmem:[%s1307 + $0x60] sm:$0xff]
      %v1321 = vld [vmem:[%s1307 + $0x68] sm:$0xff]
      %v1322 = vld [vmem:[%s1307 + $0x70] sm:$0xff]
      %v1323 = vld [vmem:[%s1307 + $0x78] sm:$0xff]
      %v1324 = vld [vmem:[%s1307 + $0x80] sm:$0xff]
      %v1325 = vld [vmem:[%s1307 + $0x88] sm:$0xff]
      %v1326 = vld [vmem:[%s1307 + $0x90] sm:$0xff]
      %v1327 = vld [vmem:[%s1307 + $0x98] sm:$0xff]
      %v1328 = vld [vmem:[%s1307 + $0xa0] sm:$0xff]
      %v1329 = vld [vmem:[%s1307 + $0xa8] sm:$0xff]
      %v1330 = vld [vmem:[%s1307 + $0xb0] sm:$0xff]
      %v1331 = vld [vmem:[%s1307 + $0xb8] sm:$0xff]
      %v1332 = vld [vmem:[%s1307 + $0xc0] sm:$0xff]
      %v1333 = vld [vmem:[%s1307 + $0xc8] sm:$0xff]
      %v1334 = vld [vmem:[%s1307 + $0xd0] sm:$0xff]
      %v1335 = vld [vmem:[%s1307 + $0xd8] sm:$0xff]
      %v1336 = vld [vmem:[%s1307 + $0xe0] sm:$0xff]
      %v1337 = vld [vmem:[%s1307 + $0xe8] sm:$0xff]
      %v1338 = vld [vmem:[%s1307 + $0xf0] sm:$0xff]
      %v1339 = vld [vmem:[%s1307 + $0xf8] sm:$0xff]
      %v1340 = vld [vmem:[%s1307 + $0x100] sm:$0xff]
      %v1341 = vld [vmem:[%s1307 + $0x108] sm:$0xff]
      %v1342 = vld [vmem:[%s1307 + $0x110] sm:$0xff]
      %v1343 = vld [vmem:[%s1307 + $0x118] sm:$0xff]
      %v1344 = vld [vmem:[%s1307 + $0x120] sm:$0xff]
      %v1345 = vld [vmem:[%s1307 + $0x128] sm:$0xff]
      %v1346 = vld [vmem:[%s1307 + $0x130] sm:$0xff]
      %v1347 = vld [vmem:[%s1307 + $0x138] sm:$0xff]
      %v1348 = vld [vmem:[%s1307 + $0x140] sm:$0xff]
      %v1349 = vld [vmem:[%s1307 + $0x148] sm:$0xff]
      %v1350 = vld [vmem:[%s1307 + $0x150] sm:$0xff]
      %v1351 = vld [vmem:[%s1307 + $0x158] sm:$0xff]
      %v1352 = vld [vmem:[%s1307 + $0x160] sm:$0xff]
      %v1353 = vld [vmem:[%s1307 + $0x168] sm:$0xff]
      %v1354 = vld [vmem:[%s1307 + $0x170] sm:$0xff]
      %v1355 = vld [vmem:[%s1307 + $0x178] sm:$0xff]
      %v1356 = vld [vmem:[%s1307 + $0x180] sm:$0xff]
      %v1357 = vld [vmem:[%s1307 + $0x188] sm:$0xff]
      %v1358 = vld [vmem:[%s1307 + $0x190] sm:$0xff]
      %v1359 = vld [vmem:[%s1307 + $0x198] sm:$0xff]
      %v1360 = vld [vmem:[%s1307 + $0x1a0] sm:$0xff]
      %v1361 = vld [vmem:[%s1307 + $0x1a8] sm:$0xff]
      %v1362 = vld [vmem:[%s1307 + $0x1b0] sm:$0xff]
      %v1363 = vld [vmem:[%s1307 + $0x1b8] sm:$0xff]
      %v1364 = vld [vmem:[%s1307 + $0x1c0] sm:$0xff]
      %v1365 = vld [vmem:[%s1307 + $0x1c8] sm:$0xff]
      %v1366 = vld [vmem:[%s1307 + $0x1d0] sm:$0xff]
      %v1367 = vld [vmem:[%s1307 + $0x1d8] sm:$0xff]
      %v1368 = vld [vmem:[%s1307 + $0x1e0] sm:$0xff]
      %v1369 = vld [vmem:[%s1307 + $0x1e8] sm:$0xff]
      %v1370 = vld [vmem:[%s1307 + $0x1f0] sm:$0xff]
      %v1371 = vld [vmem:[%s1307 + $0x1f8] sm:$0xff]
      %v1372 = vld [vmem:[%s1307 + $0x200] sm:$0xff]
      %v1373 = vld [vmem:[%s1307 + $0x208] sm:$0xff]
      %v1374 = vld [vmem:[%s1307 + $0x210] sm:$0xff]
      %v1375 = vld [vmem:[%s1307 + $0x218] sm:$0xff]
      %v1376 = vld [vmem:[%s1307 + $0x220] sm:$0xff]
      %v1377 = vld [vmem:[%s1307 + $0x228] sm:$0xff]
      %v1378 = vld [vmem:[%s1307 + $0x230] sm:$0xff]
      %v1379 = vld [vmem:[%s1307 + $0x238] sm:$0xff]
      %v1380 = vld [vmem:[%s1307 + $0x240] sm:$0xff]
      %v1381 = vld [vmem:[%s1307 + $0x248] sm:$0xff]
      %v1382 = vld [vmem:[%s1307 + $0x250] sm:$0xff]
      %v1383 = vld [vmem:[%s1307 + $0x258] sm:$0xff]
      %v1384 = vld [vmem:[%s1307 + $0x260] sm:$0xff]
      %v1385 = vld [vmem:[%s1307 + $0x268] sm:$0xff]
      %v1386 = vld [vmem:[%s1307 + $0x270] sm:$0xff]
      %v1387 = vld [vmem:[%s1307 + $0x278] sm:$0xff]
      %v1388 = vld [vmem:[%s1307 + $0x280] sm:$0xff]
      %v1389 = vld [vmem:[%s1307 + $0x288] sm:$0xff]
      %v1390 = vld [vmem:[%s1307 + $0x290] sm:$0xff]
      %v1391 = vld [vmem:[%s1307 + $0x298] sm:$0xff]
      %v1392 = vld [vmem:[%s1307 + $0x2a0] sm:$0xff]
      %v1393 = vld [vmem:[%s1307 + $0x2a8] sm:$0xff]
      %v1394 = vld [vmem:[%s1307 + $0x2b0] sm:$0xff]
      %v1395 = vld [vmem:[%s1307 + $0x2b8] sm:$0xff]
      %v1396 = vld [vmem:[%s1307 + $0x2c0] sm:$0xff]
      %v1397 = vld [vmem:[%s1307 + $0x2c8] sm:$0xff]
      %v1398 = vld [vmem:[%s1307 + $0x2d0] sm:$0xff]
      %v1399 = vld [vmem:[%s1307 + $0x2d8] sm:$0xff]
      %v1400 = vld [vmem:[%s1307 + $0x2e0] sm:$0xff]
      %v1401 = vld [vmem:[%s1307 + $0x2e8] sm:$0xff]
      %v1402 = vld [vmem:[%s1307 + $0x2f0] sm:$0xff]
      %v1403 = vld [vmem:[%s1307 + $0x2f8] sm:$0xff]
      %v1404 = vld [vmem:[%s1307 + $0x300] sm:$0xff]
      %v1405 = vld [vmem:[%s1307 + $0x308] sm:$0xff]
      %v1406 = vld [vmem:[%s1307 + $0x310] sm:$0xff]
      %v1407 = vld [vmem:[%s1307 + $0x318] sm:$0xff]
      %v1408 = vld [vmem:[%s1307 + $0x320] sm:$0xff]
      %v1409 = vld [vmem:[%s1307 + $0x328] sm:$0xff]
      %v1410 = vld [vmem:[%s1307 + $0x330] sm:$0xff]
      %v1411 = vld [vmem:[%s1307 + $0x338] sm:$0xff]
      %v1412 = vld [vmem:[%s1307 + $0x340] sm:$0xff]
      %v1413 = vld [vmem:[%s1307 + $0x348] sm:$0xff]
      %v1414 = vld [vmem:[%s1307 + $0x350] sm:$0xff]
      %v1415 = vld [vmem:[%s1307 + $0x358] sm:$0xff]
      %v1416 = vld [vmem:[%s1307 + $0x360] sm:$0xff]
      %v1417 = vld [vmem:[%s1307 + $0x368] sm:$0xff]
      %v1418 = vld [vmem:[%s1307 + $0x370] sm:$0xff]
      %v1419 = vld [vmem:[%s1307 + $0x378] sm:$0xff]
      %v1420 = vld [vmem:[%s1307 + $0x380] sm:$0xff]
      %v1421 = vld [vmem:[%s1307 + $0x388] sm:$0xff]
      %v1422 = vld [vmem:[%s1307 + $0x390] sm:$0xff]
      %v1423 = vld [vmem:[%s1307 + $0x398] sm:$0xff]
      %v1424 = vld [vmem:[%s1307 + $0x3a0] sm:$0xff]
      %v1425 = vld [vmem:[%s1307 + $0x3a8] sm:$0xff]
      %v1426 = vld [vmem:[%s1307 + $0x3b0] sm:$0xff]
      %v1427 = vld [vmem:[%s1307 + $0x3b8] sm:$0xff]
      %v1428 = vld [vmem:[%s1307 + $0x3c0] sm:$0xff]
      %v1429 = vld [vmem:[%s1307 + $0x3c8] sm:$0xff]
      %v1430 = vld [vmem:[%s1307 + $0x3d0] sm:$0xff]
      %v1431 = vld [vmem:[%s1307 + $0x3d8] sm:$0xff]
      %v1432 = vld [vmem:[%s1307 + $0x3e0] sm:$0xff]
      %v1433 = vld [vmem:[%s1307 + $0x3e8] sm:$0xff]
      %v1434 = vld [vmem:[%s1307 + $0x3f0] sm:$0xff]
      %v1435 = vld [vmem:[%s1307 + $0x3f8] sm:$0xff]
      %v1436 = vld [vmem:[%s1307 + $0x400] sm:$0xff]
      %v1437 = vld [vmem:[%s1307 + $0x408] sm:$0xff]
      %v1438 = vld [vmem:[%s1307 + $0x410] sm:$0xff]
      %v1439 = vld [vmem:[%s1307 + $0x418] sm:$0xff]
      %v1440 = vld [vmem:[%s1307 + $0x420] sm:$0xff]
      %v1441 = vld [vmem:[%s1307 + $0x428] sm:$0xff]
      %v1442 = vld [vmem:[%s1307 + $0x430] sm:$0xff]
      %v1443 = vld [vmem:[%s1307 + $0x438] sm:$0xff]
      %v1444 = vld [vmem:[%s1307 + $0x440] sm:$0xff]
      %v1445 = vld [vmem:[%s1307 + $0x448] sm:$0xff]
      %v1446 = vld [vmem:[%s1307 + $0x450] sm:$0xff]
      %v1447 = vld [vmem:[%s1307 + $0x458] sm:$0xff]
      %v1448 = vld [vmem:[%s1307 + $0x460] sm:$0xff]
      %v1449 = vld [vmem:[%s1307 + $0x468] sm:$0xff]
      %v1450 = vld [vmem:[%s1307 + $0x470] sm:$0xff]
      %v1451 = vld [vmem:[%s1307 + $0x478] sm:$0xff]
      %v1452 = vld [vmem:[%s1307 + $0x480] sm:$0xff]
      %v1453 = vld [vmem:[%s1307 + $0x488] sm:$0xff]
      %v1454 = vld [vmem:[%s1307 + $0x490] sm:$0xff]
      %v1455 = vld [vmem:[%s1307 + $0x498] sm:$0xff]
      %v1456 = vld [vmem:[%s1307 + $0x4a0] sm:$0xff]
      %v1457 = vld [vmem:[%s1307 + $0x4a8] sm:$0xff]
      %v1458 = vld [vmem:[%s1307 + $0x4b0] sm:$0xff]
      %v1459 = vld [vmem:[%s1307 + $0x4b8] sm:$0xff]
      %v1460 = vld [vmem:[%s1307 + $0x4c0] sm:$0xff]
      %v1461 = vld [vmem:[%s1307 + $0x4c8] sm:$0xff]
      %v1462 = vld [vmem:[%s1307 + $0x4d0] sm:$0xff]
      %v1463 = vld [vmem:[%s1307 + $0x4d8] sm:$0xff]
      %v1464 = vld [vmem:[%s1307 + $0x4e0] sm:$0xff]
      %v1465 = vld [vmem:[%s1307 + $0x4e8] sm:$0xff]
      %v1466 = vld [vmem:[%s1307 + $0x4f0] sm:$0xff]
      %v1467 = vld [vmem:[%s1307 + $0x4f8] sm:$0xff]
      %v1468 = vld [vmem:[%s1307 + $0x500] sm:$0xff]
      %v1469 = vld [vmem:[%s1307 + $0x508] sm:$0xff]
      %v1470 = vld [vmem:[%s1307 + $0x510] sm:$0xff]
      %v1471 = vld [vmem:[%s1307 + $0x518] sm:$0xff]
      %v1472 = vld [vmem:[%s1307 + $0x520] sm:$0xff]
      %v1473 = vld [vmem:[%s1307 + $0x528] sm:$0xff]
      %v1474 = vld [vmem:[%s1307 + $0x530] sm:$0xff]
      %v1475 = vld [vmem:[%s1307 + $0x538] sm:$0xff]
      %v1476 = vld [vmem:[%s1307 + $0x540] sm:$0xff]
      %v1477 = vld [vmem:[%s1307 + $0x548] sm:$0xff]
      %v1478 = vld [vmem:[%s1307 + $0x550] sm:$0xff]
      %v1479 = vld [vmem:[%s1307 + $0x558] sm:$0xff]
      %v1480 = vld [vmem:[%s1307 + $0x560] sm:$0xff]
      %v1481 = vld [vmem:[%s1307 + $0x568] sm:$0xff]
      %v1482 = vld [vmem:[%s1307 + $0x570] sm:$0xff]
      %v1483 = vld [vmem:[%s1307 + $0x578] sm:$0xff]
      %v1484 = vld [vmem:[%s1307 + $0x580] sm:$0xff]
      %v1485 = vld [vmem:[%s1307 + $0x588] sm:$0xff]
      %v1486 = vld [vmem:[%s1307 + $0x590] sm:$0xff]
      %v1487 = vld [vmem:[%s1307 + $0x598] sm:$0xff]
      %v1488 = vld [vmem:[%s1307 + $0x5a0] sm:$0xff]
      %v1489 = vld [vmem:[%s1307 + $0x5a8] sm:$0xff]
      %v1490 = vld [vmem:[%s1307 + $0x5b0] sm:$0xff]
      %v1491 = vld [vmem:[%s1307 + $0x5b8] sm:$0xff]
      %v1492 = vld [vmem:[%s1307 + $0x5c0] sm:$0xff]
      %v1493 = vld [vmem:[%s1307 + $0x5c8] sm:$0xff]
      %v1494 = vld [vmem:[%s1307 + $0x5d0] sm:$0xff]
      %v1495 = vld [vmem:[%s1307 + $0x5d8] sm:$0xff]
      %v1496 = vld [vmem:[%s1307 + $0x5e0] sm:$0xff]
      %v1497 = vld [vmem:[%s1307 + $0x5e8] sm:$0xff]
      %v1498 = vld [vmem:[%s1307 + $0x5f0] sm:$0xff]
      %v1499 = vld [vmem:[%s1307 + $0x5f8] sm:$0xff]
      %v1500 = vld [vmem:[%s1307 + $0x600] sm:$0xff]
      %v1501 = vld [vmem:[%s1307 + $0x608] sm:$0xff]
      %v1502 = vld [vmem:[%s1307 + $0x610] sm:$0xff]
      %v1503 = vld [vmem:[%s1307 + $0x618] sm:$0xff]
      %v1504 = vld [vmem:[%s1307 + $0x620] sm:$0xff]
      %v1505 = vld [vmem:[%s1307 + $0x628] sm:$0xff]
      %v1506 = vld [vmem:[%s1307 + $0x630] sm:$0xff]
      %v1507 = vld [vmem:[%s1307 + $0x638] sm:$0xff]
      %v1508 = vld [vmem:[%s1307 + $0x640] sm:$0xff]
      %v1509 = vld [vmem:[%s1307 + $0x648] sm:$0xff]
      %v1510 = vld [vmem:[%s1307 + $0x650] sm:$0xff]
      %v1511 = vld [vmem:[%s1307 + $0x658] sm:$0xff]
      %v1512 = vld [vmem:[%s1307 + $0x660] sm:$0xff]
      %v1513 = vld [vmem:[%s1307 + $0x668] sm:$0xff]
      %v1514 = vld [vmem:[%s1307 + $0x670] sm:$0xff]
      %v1515 = vld [vmem:[%s1307 + $0x678] sm:$0xff]
      %v1516 = vld [vmem:[%s1307 + $0x680] sm:$0xff]
      %v1517 = vld [vmem:[%s1307 + $0x688] sm:$0xff]
      %v1518 = vld [vmem:[%s1307 + $0x690] sm:$0xff]
      %v1519 = vld [vmem:[%s1307 + $0x698] sm:$0xff]
      %v1520 = vld [vmem:[%s1307 + $0x6a0] sm:$0xff]
      %v1521 = vld [vmem:[%s1307 + $0x6a8] sm:$0xff]
      %v1522 = vld [vmem:[%s1307 + $0x6b0] sm:$0xff]
      %v1523 = vld [vmem:[%s1307 + $0x6b8] sm:$0xff]
      %v1524 = vld [vmem:[%s1307 + $0x6c0] sm:$0xff]
      %v1525 = vld [vmem:[%s1307 + $0x6c8] sm:$0xff]
      %v1526 = vld [vmem:[%s1307 + $0x6d0] sm:$0xff]
      %v1527 = vld [vmem:[%s1307 + $0x6d8] sm:$0xff]
      %v1528 = vld [vmem:[%s1307 + $0x6e0] sm:$0xff]
      %v1529 = vld [vmem:[%s1307 + $0x6e8] sm:$0xff]
      %v1530 = vld [vmem:[%s1307 + $0x6f0] sm:$0xff]
      %v1531 = vld [vmem:[%s1307 + $0x6f8] sm:$0xff]
      %v1532 = vld [vmem:[%s1307 + $0x700] sm:$0xff]
      %v1533 = vld [vmem:[%s1307 + $0x708] sm:$0xff]
      %v1534 = vld [vmem:[%s1307 + $0x710] sm:$0xff]
      %v1535 = vld [vmem:[%s1307 + $0x718] sm:$0xff]
      %v1556 = vrot.slane %v1059, 1
      %v1557 = vrot.slane %v1063, 1
      %v1558 = vsel %vm355, %v1556, %v1557
      %v1559 = vrot.slane %v1060, 1
      %v1560 = vrot.slane %v1064, 1
      %v1561 = vsel %vm355, %v1559, %v1560
      %v1562 = vrot.slane %v1061, 1
      %v1563 = vrot.slane %v1065, 1
      %v1564 = vsel %vm355, %v1562, %v1563
      %v1565 = vrot.slane %v1062, 1
      %v1566 = vrot.slane %v1066, 1
      %v1567 = vsel %vm355, %v1565, %v1566
      %v1568 = vrot.slane %v1067, 1
      %v1569 = vsel %vm355, %v1557, %v1568
      %v1570 = vrot.slane %v1068, 1
      %v1571 = vsel %vm355, %v1560, %v1570
      %v1572 = vrot.slane %v1069, 1
      %v1573 = vsel %vm355, %v1563, %v1572
      %v1574 = vrot.slane %v1070, 1
      %v1575 = vsel %vm355, %v1566, %v1574
      %v1576 = vrot.slane %v1071, 1
      %v1577 = vsel %vm355, %v1568, %v1576
      %v1578 = vrot.slane %v1072, 1
      %v1579 = vsel %vm355, %v1570, %v1578
      %v1580 = vrot.slane %v1073, 1
      %v1581 = vsel %vm355, %v1572, %v1580
      %v1582 = vrot.slane %v1074, 1
      %v1583 = vsel %vm355, %v1574, %v1582
      %v1584 = vrot.slane %v1075, 1
      %v1585 = vsel %vm355, %v1576, %v1584
      %v1586 = vrot.slane %v1076, 1
      %v1587 = vsel %vm355, %v1578, %v1586
      %v1588 = vrot.slane %v1077, 1
      %v1589 = vsel %vm355, %v1580, %v1588
      %v1590 = vrot.slane %v1078, 1
      %v1591 = vsel %vm355, %v1582, %v1590
      %vm1607 = vcmask 588800
      %v1608 = vsel %vm1607, %v1567, 0
      %v1610 = vsel %vm1607, %v1575, 0
      %v1612 = vsel %vm1607, %v1583, 0
      %v1614 = vsel %vm1607, %v1591, 0
      %v1616 = vsel %vm1607, %v1590, 0
      %1618 = vmatprep.subr.mxu0 %v1369
      %1619 = vmatpush1.msra.mxu0 %v1368
      %1620 = vmatprep.subr.mxu0 %v1365
      %1621 = vmatpush1.msra.mxu0 %v1364
      %1622 = vmatprep.subr.mxu0 %v1361
      %1623 = vmatpush1.msra.mxu0 %v1360
      %1624 = vmatprep.subr.mxu0 %v1357
      %1625 = vmatpush1.msra.mxu0 %v1356
      %1626 = vmatprep.subr.mxu0 %v1353
      %1627 = vmatpush1.msra.mxu0 %v1352
      %1628 = vmatprep.subr.mxu0 %v1349
      %1629 = vmatpush1.msra.mxu0 %v1348
      %1630 = vmatprep.subr.mxu0 %v1345
      %1631 = vmatpush1.msra.mxu0 %v1344
      %1632 = vmatprep.subr.mxu0 %v1341
      %1633 = vmatpush1.msra.mxu0 %v1340
      %1634 = vmatprep.subr.mxu0 %v1337
      %1635 = vmatpush1.msra.mxu0 %v1336
      %1636 = vmatprep.subr.mxu0 %v1333
      %1637 = vmatpush1.msra.mxu0 %v1332
      %1638 = vmatprep.subr.mxu0 %v1329
      %1639 = vmatpush1.msra.mxu0 %v1328
      %1640 = vmatprep.subr.mxu0 %v1325
      %1641 = vmatpush1.msra.mxu0 %v1324
      %1642 = vmatprep.subr.mxu0 %v1321
      %1643 = vmatpush1.msra.mxu0 %v1320
      %1644 = vmatprep.subr.mxu0 %v1317
      %1645 = vmatpush1.msra.mxu0 %v1316
      %1646 = vmatprep.subr.mxu0 %v1313
      %1647 = vmatpush1.msra.mxu0 %v1312
      %1648 = vmatprep.subr.mxu0 %v1309
      %1649 = vmatpush1.msra.mxu0 %v1308
      %1650 = vmatprep.subr.mxu0 %v1433
      %1651 = vmatpush2.msra.mxu0 %v1432
      %1652 = vmatprep.subr.mxu0 %v1429
      %1653 = vmatpush2.msra.mxu0 %v1428
      %1654 = vmatprep.subr.mxu0 %v1425
      %1655 = vmatpush2.msra.mxu0 %v1424
      %1656 = vmatprep.subr.mxu0 %v1421
      %1657 = vmatpush2.msra.mxu0 %v1420
      %1658 = vmatprep.subr.mxu0 %v1417
      %1659 = vmatpush2.msra.mxu0 %v1416
      %1660 = vmatprep.subr.mxu0 %v1413
      %1661 = vmatpush2.msra.mxu0 %v1412
      %1662 = vmatprep.subr.mxu0 %v1409
      %1663 = vmatpush2.msra.mxu0 %v1408
      %1664 = vmatprep.subr.mxu0 %v1405
      %1665 = vmatpush2.msra.mxu0 %v1404
      %1666 = vmatprep.subr.mxu0 %v1401
      %1667 = vmatpush2.msra.mxu0 %v1400
      %1668 = vmatprep.subr.mxu0 %v1397
      %1669 = vmatpush2.msra.mxu0 %v1396
      %1670 = vmatprep.subr.mxu0 %v1393
      %1671 = vmatpush2.msra.mxu0 %v1392
      %1672 = vmatprep.subr.mxu0 %v1389
      %1673 = vmatpush2.msra.mxu0 %v1388
      %1674 = vmatprep.subr.mxu0 %v1385
      %1675 = vmatpush2.msra.mxu0 %v1384
      %1676 = vmatprep.subr.mxu0 %v1381
      %1677 = vmatpush2.msra.mxu0 %v1380
      %1678 = vmatprep.subr.mxu0 %v1377
      %1679 = vmatpush2.msra.mxu0 %v1376
      %1680 = vmatprep.subr.mxu0 %v1373
      %1681 = vmatpush2.msra.mxu0 %v1372
      %1682 = vmatprep.mubr.f32.mxu0 %v1561
      %1683 = vmatmul.mubr.f32.gmra.mxu0 %v1558
      %v1684 = vpop.f32.mrf.mxu0
      %v1685 = vadd.f32 0.0, %v1684
      %v1686 = vpop.f32.mrf.mxu0
      %v1687 = vadd.f32 0.0, %v1686
      %1688 = vmatprep.mubr.f32.mxu0 %v1571
      %1689 = vmatmul.mubr.f32.gmra.mxu0 %v1569
      %v1690 = vpop.f32.mrf.mxu0
      %v1691 = vadd.f32 0.0, %v1690
      %v1692 = vpop.f32.mrf.mxu0
      %v1693 = vadd.f32 0.0, %v1692
      %1694 = vmatprep.mubr.f32.mxu0 %v1579
      %1695 = vmatmul.mubr.f32.gmra.mxu0 %v1577
      %v1696 = vpop.f32.mrf.mxu0
      %v1697 = vadd.f32 0.0, %v1696
      %v1698 = vpop.f32.mrf.mxu0
      %v1699 = vadd.f32 0.0, %v1698
      %1700 = vmatprep.mubr.f32.mxu0 %v1587
      %1701 = vmatmul.mubr.f32.gmra.mxu0 %v1585
      %v1702 = vpop.f32.mrf.mxu0
      %v1703 = vadd.f32 0.0, %v1702
      %v1704 = vpop.f32.mrf.mxu0
      %v1705 = vadd.f32 0.0, %v1704
      %1706 = vmatprep.mubr.f32.mxu0 %v1586
      %1707 = vmatmul.mubr.f32.gmra.mxu0 %v1584
      %v1708 = vpop.f32.mrf.mxu0
      %v1709 = vadd.f32 0.0, %v1708
      %v1710 = vpop.f32.mrf.mxu0
      %v1711 = vadd.f32 0.0, %v1710
      %1712 = vdwg.mxu0
      %1713 = vmatprep.subr.mxu0 %v1497
      %1714 = vmatpush1.msra.mxu0 %v1496
      %1715 = vmatprep.subr.mxu0 %v1493
      %1716 = vmatpush1.msra.mxu0 %v1492
      %1717 = vmatprep.subr.mxu0 %v1489
      %1718 = vmatpush1.msra.mxu0 %v1488
      %1719 = vmatprep.subr.mxu0 %v1485
      %1720 = vmatpush1.msra.mxu0 %v1484
      %1721 = vmatprep.subr.mxu0 %v1481
      %1722 = vmatpush1.msra.mxu0 %v1480
      %1723 = vmatprep.subr.mxu0 %v1477
      %1724 = vmatpush1.msra.mxu0 %v1476
      %1725 = vmatprep.subr.mxu0 %v1473
      %1726 = vmatpush1.msra.mxu0 %v1472
      %1727 = vmatprep.subr.mxu0 %v1469
      %1728 = vmatpush1.msra.mxu0 %v1468
      %1729 = vmatprep.subr.mxu0 %v1465
      %1730 = vmatpush1.msra.mxu0 %v1464
      %1731 = vmatprep.subr.mxu0 %v1461
      %1732 = vmatpush1.msra.mxu0 %v1460
      %1733 = vmatprep.subr.mxu0 %v1457
      %1734 = vmatpush1.msra.mxu0 %v1456
      %1735 = vmatprep.subr.mxu0 %v1453
      %1736 = vmatpush1.msra.mxu0 %v1452
      %1737 = vmatprep.subr.mxu0 %v1449
      %1738 = vmatpush1.msra.mxu0 %v1448
      %1739 = vmatprep.subr.mxu0 %v1445
      %1740 = vmatpush1.msra.mxu0 %v1444
      %1741 = vmatprep.subr.mxu0 %v1441
      %1742 = vmatpush1.msra.mxu0 %v1440
      %1743 = vmatprep.subr.mxu0 %v1437
      %1744 = vmatpush1.msra.mxu0 %v1436
      %1745 = vmatprep.subr.mxu0 0.0
      %1746 = vmatpush2.msra.mxu0 0.0
      %1747 = vmatprep.subr.mxu0 0.0
      %1748 = vmatpush2.msra.mxu0 0.0
      %1749 = vmatprep.subr.mxu0 0.0
      %1750 = vmatpush2.msra.mxu0 0.0
      %1751 = vmatprep.subr.mxu0 0.0
      %1752 = vmatpush2.msra.mxu0 0.0
      %1753 = vmatprep.subr.mxu0 0.0
      %1754 = vmatpush2.msra.mxu0 0.0
      %1755 = vmatprep.subr.mxu0 0.0
      %1756 = vmatpush2.msra.mxu0 0.0
      %1757 = vmatprep.subr.mxu0 0.0
      %1758 = vmatpush2.msra.mxu0 0.0
      %1759 = vmatprep.subr.mxu0 %v1533
      %1760 = vmatpush2.msra.mxu0 %v1532
      %1761 = vmatprep.subr.mxu0 %v1529
      %1762 = vmatpush2.msra.mxu0 %v1528
      %1763 = vmatprep.subr.mxu0 %v1525
      %1764 = vmatpush2.msra.mxu0 %v1524
      %1765 = vmatprep.subr.mxu0 %v1521
      %1766 = vmatpush2.msra.mxu0 %v1520
      %1767 = vmatprep.subr.mxu0 %v1517
      %1768 = vmatpush2.msra.mxu0 %v1516
      %1769 = vmatprep.subr.mxu0 %v1513
      %1770 = vmatpush2.msra.mxu0 %v1512
      %1771 = vmatprep.subr.mxu0 %v1509
      %1772 = vmatpush2.msra.mxu0 %v1508
      %1773 = vmatprep.subr.mxu0 %v1505
      %1774 = vmatpush2.msra.mxu0 %v1504
      %1775 = vmatprep.subr.mxu0 %v1501
      %1776 = vmatpush2.msra.mxu0 %v1500
      %1777 = vmatprep.mubr.f32.mxu0 %v1608
      %1778 = vmatmul.mubr.f32.gmra.mxu0 %v1564
      %v1779 = vpop.f32.mrf.mxu0
      %v1780 = vadd.f32 %v1685, %v1779
      %v1781 = vpop.f32.mrf.mxu0
      %v1782 = vadd.f32 %v1687, %v1781
      %1783 = vmatprep.mubr.f32.mxu0 %v1610
      %1784 = vmatmul.mubr.f32.gmra.mxu0 %v1573
      %v1785 = vpop.f32.mrf.mxu0
      %v1786 = vadd.f32 %v1691, %v1785
      %v1787 = vpop.f32.mrf.mxu0
      %v1788 = vadd.f32 %v1693, %v1787
      %1789 = vmatprep.mubr.f32.mxu0 %v1612
      %1790 = vmatmul.mubr.f32.gmra.mxu0 %v1581
      %v1791 = vpop.f32.mrf.mxu0
      %v1792 = vadd.f32 %v1697, %v1791
      %v1793 = vpop.f32.mrf.mxu0
      %v1794 = vadd.f32 %v1699, %v1793
      %1795 = vmatprep.mubr.f32.mxu0 %v1614
      %1796 = vmatmul.mubr.f32.gmra.mxu0 %v1589
      %v1797 = vpop.f32.mrf.mxu0
      %v1798 = vadd.f32 %v1703, %v1797
      %v1799 = vpop.f32.mrf.mxu0
      %v1800 = vadd.f32 %v1705, %v1799
      %1801 = vmatprep.mubr.f32.mxu0 %v1616
      %1802 = vmatmul.mubr.f32.gmra.mxu0 %v1588
      %v1803 = vpop.f32.mrf.mxu0
      %v1804 = vadd.f32 %v1709, %v1803
      %v1805 = vpop.f32.mrf.mxu0
      %v1806 = vadd.f32 %v1711, %v1805
      %1807 = vdwg.mxu0
      %1808 = vmatprep.subr.mxu0 %v1371
      %1809 = vmatpush1.msra.mxu0 %v1370
      %1810 = vmatprep.subr.mxu0 %v1367
      %1811 = vmatpush1.msra.mxu0 %v1366
      %1812 = vmatprep.subr.mxu0 %v1363
      %1813 = vmatpush1.msra.mxu0 %v1362
      %1814 = vmatprep.subr.mxu0 %v1359
      %1815 = vmatpush1.msra.mxu0 %v1358
      %1816 = vmatprep.subr.mxu0 %v1355
      %1817 = vmatpush1.msra.mxu0 %v1354
      %1818 = vmatprep.subr.mxu0 %v1351
      %1819 = vmatpush1.msra.mxu0 %v1350
      %1820 = vmatprep.subr.mxu0 %v1347
      %1821 = vmatpush1.msra.mxu0 %v1346
      %1822 = vmatprep.subr.mxu0 %v1343
      %1823 = vmatpush1.msra.mxu0 %v1342
      %1824 = vmatprep.subr.mxu0 %v1339
      %1825 = vmatpush1.msra.mxu0 %v1338
      %1826 = vmatprep.subr.mxu0 %v1335
      %1827 = vmatpush1.msra.mxu0 %v1334
      %1828 = vmatprep.subr.mxu0 %v1331
      %1829 = vmatpush1.msra.mxu0 %v1330
      %1830 = vmatprep.subr.mxu0 %v1327
      %1831 = vmatpush1.msra.mxu0 %v1326
      %1832 = vmatprep.subr.mxu0 %v1323
      %1833 = vmatpush1.msra.mxu0 %v1322
      %1834 = vmatprep.subr.mxu0 %v1319
      %1835 = vmatpush1.msra.mxu0 %v1318
      %1836 = vmatprep.subr.mxu0 %v1315
      %1837 = vmatpush1.msra.mxu0 %v1314
      %1838 = vmatprep.subr.mxu0 %v1311
      %1839 = vmatpush1.msra.mxu0 %v1310
      %1840 = vmatprep.subr.mxu0 %v1435
      %1841 = vmatpush2.msra.mxu0 %v1434
      %1842 = vmatprep.subr.mxu0 %v1431
      %1843 = vmatpush2.msra.mxu0 %v1430
      %1844 = vmatprep.subr.mxu0 %v1427
      %1845 = vmatpush2.msra.mxu0 %v1426
      %1846 = vmatprep.subr.mxu0 %v1423
      %1847 = vmatpush2.msra.mxu0 %v1422
      %1848 = vmatprep.subr.mxu0 %v1419
      %1849 = vmatpush2.msra.mxu0 %v1418
      %1850 = vmatprep.subr.mxu0 %v1415
      %1851 = vmatpush2.msra.mxu0 %v1414
      %1852 = vmatprep.subr.mxu0 %v1411
      %1853 = vmatpush2.msra.mxu0 %v1410
      %1854 = vmatprep.subr.mxu0 %v1407
      %1855 = vmatpush2.msra.mxu0 %v1406
      %1856 = vmatprep.subr.mxu0 %v1403
      %1857 = vmatpush2.msra.mxu0 %v1402
      %1858 = vmatprep.subr.mxu0 %v1399
      %1859 = vmatpush2.msra.mxu0 %v1398
      %1860 = vmatprep.subr.mxu0 %v1395
      %1861 = vmatpush2.msra.mxu0 %v1394
      %1862 = vmatprep.subr.mxu0 %v1391
      %1863 = vmatpush2.msra.mxu0 %v1390
      %1864 = vmatprep.subr.mxu0 %v1387
      %1865 = vmatpush2.msra.mxu0 %v1386
      %1866 = vmatprep.subr.mxu0 %v1383
      %1867 = vmatpush2.msra.mxu0 %v1382
      %1868 = vmatprep.subr.mxu0 %v1379
      %1869 = vmatpush2.msra.mxu0 %v1378
      %1870 = vmatprep.subr.mxu0 %v1375
      %1871 = vmatpush2.msra.mxu0 %v1374
      %1872 = vmatprep.mubr.f32.mxu0 %v1561
      %1873 = vmatmul.mubr.f32.gmra.mxu0 %v1558
      %v1874 = vpop.f32.mrf.mxu0
      %v1875 = vadd.f32 0.0, %v1874
      %v1876 = vpop.f32.mrf.mxu0
      %v1877 = vadd.f32 0.0, %v1876
      %1878 = vmatprep.mubr.f32.mxu0 %v1571
      %1879 = vmatmul.mubr.f32.gmra.mxu0 %v1569
      %v1880 = vpop.f32.mrf.mxu0
      %v1881 = vadd.f32 0.0, %v1880
      %v1882 = vpop.f32.mrf.mxu0
      %v1883 = vadd.f32 0.0, %v1882
      %1884 = vmatprep.mubr.f32.mxu0 %v1579
      %1885 = vmatmul.mubr.f32.gmra.mxu0 %v1577
      %v1886 = vpop.f32.mrf.mxu0
      %v1887 = vadd.f32 0.0, %v1886
      %v1888 = vpop.f32.mrf.mxu0
      %v1889 = vadd.f32 0.0, %v1888
      %1890 = vmatprep.mubr.f32.mxu0 %v1587
      %1891 = vmatmul.mubr.f32.gmra.mxu0 %v1585
      %v1892 = vpop.f32.mrf.mxu0
      %v1893 = vadd.f32 0.0, %v1892
      %v1894 = vpop.f32.mrf.mxu0
      %v1895 = vadd.f32 0.0, %v1894
      %1896 = vmatprep.mubr.f32.mxu0 %v1586
      %1897 = vmatmul.mubr.f32.gmra.mxu0 %v1584
      %v1898 = vpop.f32.mrf.mxu0
      %v1899 = vadd.f32 0.0, %v1898
      %v1900 = vpop.f32.mrf.mxu0
      %v1901 = vadd.f32 0.0, %v1900
      %1902 = vdwg.mxu0
      %1903 = vmatprep.subr.mxu0 %v1499
      %1904 = vmatpush1.msra.mxu0 %v1498
      %1905 = vmatprep.subr.mxu0 %v1495
      %1906 = vmatpush1.msra.mxu0 %v1494
      %1907 = vmatprep.subr.mxu0 %v1491
      %1908 = vmatpush1.msra.mxu0 %v1490
      %1909 = vmatprep.subr.mxu0 %v1487
      %1910 = vmatpush1.msra.mxu0 %v1486
      %1911 = vmatprep.subr.mxu0 %v1483
      %1912 = vmatpush1.msra.mxu0 %v1482
      %1913 = vmatprep.subr.mxu0 %v1479
      %1914 = vmatpush1.msra.mxu0 %v1478
      %1915 = vmatprep.subr.mxu0 %v1475
      %1916 = vmatpush1.msra.mxu0 %v1474
      %1917 = vmatprep.subr.mxu0 %v1471
      %1918 = vmatpush1.msra.mxu0 %v1470
      %1919 = vmatprep.subr.mxu0 %v1467
      %1920 = vmatpush1.msra.mxu0 %v1466
      %1921 = vmatprep.subr.mxu0 %v1463
      %1922 = vmatpush1.msra.mxu0 %v1462
      %1923 = vmatprep.subr.mxu0 %v1459
      %1924 = vmatpush1.msra.mxu0 %v1458
      %1925 = vmatprep.subr.mxu0 %v1455
      %1926 = vmatpush1.msra.mxu0 %v1454
      %1927 = vmatprep.subr.mxu0 %v1451
      %1928 = vmatpush1.msra.mxu0 %v1450
      %1929 = vmatprep.subr.mxu0 %v1447
      %1930 = vmatpush1.msra.mxu0 %v1446
      %1931 = vmatprep.subr.mxu0 %v1443
      %1932 = vmatpush1.msra.mxu0 %v1442
      %1933 = vmatprep.subr.mxu0 %v1439
      %1934 = vmatpush1.msra.mxu0 %v1438
      %1935 = vmatprep.subr.mxu0 0.0
      %1936 = vmatpush2.msra.mxu0 0.0
      %1937 = vmatprep.subr.mxu0 0.0
      %1938 = vmatpush2.msra.mxu0 0.0
      %1939 = vmatprep.subr.mxu0 0.0
      %1940 = vmatpush2.msra.mxu0 0.0
      %1941 = vmatprep.subr.mxu0 0.0
      %1942 = vmatpush2.msra.mxu0 0.0
      %1943 = vmatprep.subr.mxu0 0.0
      %1944 = vmatpush2.msra.mxu0 0.0
      %1945 = vmatprep.subr.mxu0 0.0
      %1946 = vmatpush2.msra.mxu0 0.0
      %1947 = vmatprep.subr.mxu0 0.0
      %1948 = vmatpush2.msra.mxu0 0.0
      %1949 = vmatprep.subr.mxu0 %v1535
      %1950 = vmatpush2.msra.mxu0 %v1534
      %1951 = vmatprep.subr.mxu0 %v1531
      %1952 = vmatpush2.msra.mxu0 %v1530
      %1953 = vmatprep.subr.mxu0 %v1527
      %1954 = vmatpush2.msra.mxu0 %v1526
      %1955 = vmatprep.subr.mxu0 %v1523
      %1956 = vmatpush2.msra.mxu0 %v1522
      %1957 = vmatprep.subr.mxu0 %v1519
      %1958 = vmatpush2.msra.mxu0 %v1518
      %1959 = vmatprep.subr.mxu0 %v1515
      %1960 = vmatpush2.msra.mxu0 %v1514
      %1961 = vmatprep.subr.mxu0 %v1511
      %1962 = vmatpush2.msra.mxu0 %v1510
      %1963 = vmatprep.subr.mxu0 %v1507
      %1964 = vmatpush2.msra.mxu0 %v1506
      %1965 = vmatprep.subr.mxu0 %v1503
      %1966 = vmatpush2.msra.mxu0 %v1502
      %1967 = vmatprep.mubr.f32.mxu0 %v1608
      %1968 = vmatmul.mubr.f32.gmra.mxu0 %v1564
      %v1969 = vpop.f32.mrf.mxu0
      %v1970 = vadd.f32 %v1875, %v1969
      %v1971 = vpop.f32.mrf.mxu0
      %v1972 = vadd.f32 %v1877, %v1971
      %1973 = vmatprep.mubr.f32.mxu0 %v1610
      %1974 = vmatmul.mubr.f32.gmra.mxu0 %v1573
      %v1975 = vpop.f32.mrf.mxu0
      %v1976 = vadd.f32 %v1881, %v1975
      %v1977 = vpop.f32.mrf.mxu0
      %v1978 = vadd.f32 %v1883, %v1977
      %1979 = vmatprep.mubr.f32.mxu0 %v1612
      %1980 = vmatmul.mubr.f32.gmra.mxu0 %v1581
      %v1981 = vpop.f32.mrf.mxu0
      %v1982 = vadd.f32 %v1887, %v1981
      %v1983 = vpop.f32.mrf.mxu0
      %v1984 = vadd.f32 %v1889, %v1983
      %1985 = vmatprep.mubr.f32.mxu0 %v1614
      %1986 = vmatmul.mubr.f32.gmra.mxu0 %v1589
      %v1987 = vpop.f32.mrf.mxu0
      %v1988 = vadd.f32 %v1893, %v1987
      %v1989 = vpop.f32.mrf.mxu0
      %v1990 = vadd.f32 %v1895, %v1989
      %1991 = vmatprep.mubr.f32.mxu0 %v1616
      %1992 = vmatmul.mubr.f32.gmra.mxu0 %v1588
      %v1993 = vpop.f32.mrf.mxu0
      %v1994 = vadd.f32 %v1899, %v1993
      %v1995 = vpop.f32.mrf.mxu0
      %v1996 = vadd.f32 %v1901, %v1995
      %1997 = vdwg.mxu0
      %v1998 = vsel %vm1607, %v1062, 0
      %v2000 = vsel %vm1607, %v1066, 0
      %v2002 = vsel %vm1607, %v1070, 0
      %v2004 = vsel %vm1607, %v1074, 0
      %v2006 = vsel %vm1607, %v1078, 0
      %2008 = vmatprep.subr.mxu0 %v1140
      %2009 = vmatpush1.msra.mxu0 %v1139
      %2010 = vmatprep.subr.mxu0 %v1136
      %2011 = vmatpush1.msra.mxu0 %v1135
      %2012 = vmatprep.subr.mxu0 %v1132
      %2013 = vmatpush1.msra.mxu0 %v1131
      %2014 = vmatprep.subr.mxu0 %v1128
      %2015 = vmatpush1.msra.mxu0 %v1127
      %2016 = vmatprep.subr.mxu0 %v1124
      %2017 = vmatpush1.msra.mxu0 %v1123
      %2018 = vmatprep.subr.mxu0 %v1120
      %2019 = vmatpush1.msra.mxu0 %v1119
      %2020 = vmatprep.subr.mxu0 %v1116
      %2021 = vmatpush1.msra.mxu0 %v1115
      %2022 = vmatprep.subr.mxu0 %v1112
      %2023 = vmatpush1.msra.mxu0 %v1111
      %2024 = vmatprep.subr.mxu0 %v1108
      %2025 = vmatpush1.msra.mxu0 %v1107
      %2026 = vmatprep.subr.mxu0 %v1104
      %2027 = vmatpush1.msra.mxu0 %v1103
      %2028 = vmatprep.subr.mxu0 %v1100
      %2029 = vmatpush1.msra.mxu0 %v1099
      %2030 = vmatprep.subr.mxu0 %v1096
      %2031 = vmatpush1.msra.mxu0 %v1095
      %2032 = vmatprep.subr.mxu0 %v1092
      %2033 = vmatpush1.msra.mxu0 %v1091
      %2034 = vmatprep.subr.mxu0 %v1088
      %2035 = vmatpush1.msra.mxu0 %v1087
      %2036 = vmatprep.subr.mxu0 %v1084
      %2037 = vmatpush1.msra.mxu0 %v1083
      %2038 = vmatprep.subr.mxu0 %v1080
      %2039 = vmatpush1.msra.mxu0 %v1079
      %2040 = vmatprep.subr.mxu0 %v1204
      %2041 = vmatpush2.msra.mxu0 %v1203
      %2042 = vmatprep.subr.mxu0 %v1200
      %2043 = vmatpush2.msra.mxu0 %v1199
      %2044 = vmatprep.subr.mxu0 %v1196
      %2045 = vmatpush2.msra.mxu0 %v1195
      %2046 = vmatprep.subr.mxu0 %v1192
      %2047 = vmatpush2.msra.mxu0 %v1191
      %2048 = vmatprep.subr.mxu0 %v1188
      %2049 = vmatpush2.msra.mxu0 %v1187
      %2050 = vmatprep.subr.mxu0 %v1184
      %2051 = vmatpush2.msra.mxu0 %v1183
      %2052 = vmatprep.subr.mxu0 %v1180
      %2053 = vmatpush2.msra.mxu0 %v1179
      %2054 = vmatprep.subr.mxu0 %v1176
      %2055 = vmatpush2.msra.mxu0 %v1175
      %2056 = vmatprep.subr.mxu0 %v1172
      %2057 = vmatpush2.msra.mxu0 %v1171
      %2058 = vmatprep.subr.mxu0 %v1168
      %2059 = vmatpush2.msra.mxu0 %v1167
      %2060 = vmatprep.subr.mxu0 %v1164
      %2061 = vmatpush2.msra.mxu0 %v1163
      %2062 = vmatprep.subr.mxu0 %v1160
      %2063 = vmatpush2.msra.mxu0 %v1159
      %2064 = vmatprep.subr.mxu0 %v1156
      %2065 = vmatpush2.msra.mxu0 %v1155
      %2066 = vmatprep.subr.mxu0 %v1152
      %2067 = vmatpush2.msra.mxu0 %v1151
      %2068 = vmatprep.subr.mxu0 %v1148
      %2069 = vmatpush2.msra.mxu0 %v1147
      %2070 = vmatprep.subr.mxu0 %v1144
      %2071 = vmatpush2.msra.mxu0 %v1143
      %2072 = vmatprep.mubr.f32.mxu0 %v1060
      %2073 = vmatmul.mubr.f32.gmra.mxu0 %v1059
      %v2074 = vpop.f32.mrf.mxu0
      %v2075 = vadd.f32 %v1780, %v2074
      %v2076 = vpop.f32.mrf.mxu0
      %v2077 = vadd.f32 %v1782, %v2076
      %2078 = vmatprep.mubr.f32.mxu0 %v1064
      %2079 = vmatmul.mubr.f32.gmra.mxu0 %v1063
      %v2080 = vpop.f32.mrf.mxu0
      %v2081 = vadd.f32 %v1786, %v2080
      %v2082 = vpop.f32.mrf.mxu0
      %v2083 = vadd.f32 %v1788, %v2082
      %2084 = vmatprep.mubr.f32.mxu0 %v1068
      %2085 = vmatmul.mubr.f32.gmra.mxu0 %v1067
      %v2086 = vpop.f32.mrf.mxu0
      %v2087 = vadd.f32 %v1792, %v2086
      %v2088 = vpop.f32.mrf.mxu0
      %v2089 = vadd.f32 %v1794, %v2088
      %2090 = vmatprep.mubr.f32.mxu0 %v1072
      %2091 = vmatmul.mubr.f32.gmra.mxu0 %v1071
      %v2092 = vpop.f32.mrf.mxu0
      %v2093 = vadd.f32 %v1798, %v2092
      %v2094 = vpop.f32.mrf.mxu0
      %v2095 = vadd.f32 %v1800, %v2094
      %2096 = vmatprep.mubr.f32.mxu0 %v1076
      %2097 = vmatmul.mubr.f32.gmra.mxu0 %v1075
      %v2098 = vpop.f32.mrf.mxu0
      %v2099 = vadd.f32 %v1804, %v2098
      %v2100 = vpop.f32.mrf.mxu0
      %v2101 = vadd.f32 %v1806, %v2100
      %2102 = vdwg.mxu0
      %2103 = vmatprep.subr.mxu0 %v1268
      %2104 = vmatpush1.msra.mxu0 %v1267
      %2105 = vmatprep.subr.mxu0 %v1264
      %2106 = vmatpush1.msra.mxu0 %v1263
      %2107 = vmatprep.subr.mxu0 %v1260
      %2108 = vmatpush1.msra.mxu0 %v1259
      %2109 = vmatprep.subr.mxu0 %v1256
      %2110 = vmatpush1.msra.mxu0 %v1255
      %2111 = vmatprep.subr.mxu0 %v1252
      %2112 = vmatpush1.msra.mxu0 %v1251
      %2113 = vmatprep.subr.mxu0 %v1248
      %2114 = vmatpush1.msra.mxu0 %v1247
      %2115 = vmatprep.subr.mxu0 %v1244
      %2116 = vmatpush1.msra.mxu0 %v1243
      %2117 = vmatprep.subr.mxu0 %v1240
      %2118 = vmatpush1.msra.mxu0 %v1239
      %2119 = vmatprep.subr.mxu0 %v1236
      %2120 = vmatpush1.msra.mxu0 %v1235
      %2121 = vmatprep.subr.mxu0 %v1232
      %2122 = vmatpush1.msra.mxu0 %v1231
      %2123 = vmatprep.subr.mxu0 %v1228
      %2124 = vmatpush1.msra.mxu0 %v1227
      %2125 = vmatprep.subr.mxu0 %v1224
      %2126 = vmatpush1.msra.mxu0 %v1223
      %2127 = vmatprep.subr.mxu0 %v1220
      %2128 = vmatpush1.msra.mxu0 %v1219
      %2129 = vmatprep.subr.mxu0 %v1216
      %2130 = vmatpush1.msra.mxu0 %v1215
      %2131 = vmatprep.subr.mxu0 %v1212
      %2132 = vmatpush1.msra.mxu0 %v1211
      %2133 = vmatprep.subr.mxu0 %v1208
      %2134 = vmatpush1.msra.mxu0 %v1207
      %2135 = vmatprep.subr.mxu0 0.0
      %2136 = vmatpush2.msra.mxu0 0.0
      %2137 = vmatprep.subr.mxu0 0.0
      %2138 = vmatpush2.msra.mxu0 0.0
      %2139 = vmatprep.subr.mxu0 0.0
      %2140 = vmatpush2.msra.mxu0 0.0
      %2141 = vmatprep.subr.mxu0 0.0
      %2142 = vmatpush2.msra.mxu0 0.0
      %2143 = vmatprep.subr.mxu0 0.0
      %2144 = vmatpush2.msra.mxu0 0.0
      %2145 = vmatprep.subr.mxu0 0.0
      %2146 = vmatpush2.msra.mxu0 0.0
      %2147 = vmatprep.subr.mxu0 0.0
      %2148 = vmatpush2.msra.mxu0 0.0
      %2149 = vmatprep.subr.mxu0 %v1304
      %2150 = vmatpush2.msra.mxu0 %v1303
      %2151 = vmatprep.subr.mxu0 %v1300
      %2152 = vmatpush2.msra.mxu0 %v1299
      %2153 = vmatprep.subr.mxu0 %v1296
      %2154 = vmatpush2.msra.mxu0 %v1295
      %2155 = vmatprep.subr.mxu0 %v1292
      %2156 = vmatpush2.msra.mxu0 %v1291
      %2157 = vmatprep.subr.mxu0 %v1288
      %2158 = vmatpush2.msra.mxu0 %v1287
      %2159 = vmatprep.subr.mxu0 %v1284
      %2160 = vmatpush2.msra.mxu0 %v1283
      %2161 = vmatprep.subr.mxu0 %v1280
      %2162 = vmatpush2.msra.mxu0 %v1279
      %2163 = vmatprep.subr.mxu0 %v1276
      %2164 = vmatpush2.msra.mxu0 %v1275
      %2165 = vmatprep.subr.mxu0 %v1272
      %2166 = vmatpush2.msra.mxu0 %v1271
      %2167 = vmatprep.mubr.f32.mxu0 %v1998
      %2168 = vmatmul.mubr.f32.gmra.mxu0 %v1061
      %v2169 = vpop.f32.mrf.mxu0
      %v2170 = vadd.f32 %v2075, %v2169
      %v2171 = vpop.f32.mrf.mxu0
      %v2172 = vadd.f32 %v2077, %v2171
      %2173 = vmatprep.mubr.f32.mxu0 %v2000
      %2174 = vmatmul.mubr.f32.gmra.mxu0 %v1065
      %v2175 = vpop.f32.mrf.mxu0
      %v2176 = vadd.f32 %v2081, %v2175
      %v2177 = vpop.f32.mrf.mxu0
      %v2178 = vadd.f32 %v2083, %v2177
      %2179 = vmatprep.mubr.f32.mxu0 %v2002
      %2180 = vmatmul.mubr.f32.gmra.mxu0 %v1069
      %v2181 = vpop.f32.mrf.mxu0
      %v2182 = vadd.f32 %v2087, %v2181
      %v2183 = vpop.f32.mrf.mxu0
      %v2184 = vadd.f32 %v2089, %v2183
      %2185 = vmatprep.mubr.f32.mxu0 %v2004
      %2186 = vmatmul.mubr.f32.gmra.mxu0 %v1073
      %v2187 = vpop.f32.mrf.mxu0
      %v2188 = vadd.f32 %v2093, %v2187
      %v2189 = vpop.f32.mrf.mxu0
      %v2190 = vadd.f32 %v2095, %v2189
      %2191 = vmatprep.mubr.f32.mxu0 %v2006
      %2192 = vmatmul.mubr.f32.gmra.mxu0 %v1077
      %v2193 = vpop.f32.mrf.mxu0
      %v2194 = vadd.f32 %v2099, %v2193
      %v2195 = vpop.f32.mrf.mxu0
      %v2196 = vadd.f32 %v2101, %v2195
      %2197 = vdwg.mxu0
      %2198 = vmatprep.subr.mxu0 %v1142
      %2199 = vmatpush1.msra.mxu0 %v1141
      %2200 = vmatprep.subr.mxu0 %v1138
      %2201 = vmatpush1.msra.mxu0 %v1137
      %2202 = vmatprep.subr.mxu0 %v1134
      %2203 = vmatpush1.msra.mxu0 %v1133
      %2204 = vmatprep.subr.mxu0 %v1130
      %2205 = vmatpush1.msra.mxu0 %v1129
      %2206 = vmatprep.subr.mxu0 %v1126
      %2207 = vmatpush1.msra.mxu0 %v1125
      %2208 = vmatprep.subr.mxu0 %v1122
      %2209 = vmatpush1.msra.mxu0 %v1121
      %2210 = vmatprep.subr.mxu0 %v1118
      %2211 = vmatpush1.msra.mxu0 %v1117
      %2212 = vmatprep.subr.mxu0 %v1114
      %2213 = vmatpush1.msra.mxu0 %v1113
      %2214 = vmatprep.subr.mxu0 %v1110
      %2215 = vmatpush1.msra.mxu0 %v1109
      %2216 = vmatprep.subr.mxu0 %v1106
      %2217 = vmatpush1.msra.mxu0 %v1105
      %2218 = vmatprep.subr.mxu0 %v1102
      %2219 = vmatpush1.msra.mxu0 %v1101
      %2220 = vmatprep.subr.mxu0 %v1098
      %2221 = vmatpush1.msra.mxu0 %v1097
      %2222 = vmatprep.subr.mxu0 %v1094
      %2223 = vmatpush1.msra.mxu0 %v1093
      %2224 = vmatprep.subr.mxu0 %v1090
      %2225 = vmatpush1.msra.mxu0 %v1089
      %2226 = vmatprep.subr.mxu0 %v1086
      %2227 = vmatpush1.msra.mxu0 %v1085
      %2228 = vmatprep.subr.mxu0 %v1082
      %2229 = vmatpush1.msra.mxu0 %v1081
      %2230 = vmatprep.subr.mxu0 %v1206
      %2231 = vmatpush2.msra.mxu0 %v1205
      %2232 = vmatprep.subr.mxu0 %v1202
      %2233 = vmatpush2.msra.mxu0 %v1201
      %2234 = vmatprep.subr.mxu0 %v1198
      %2235 = vmatpush2.msra.mxu0 %v1197
      %2236 = vmatprep.subr.mxu0 %v1194
      %2237 = vmatpush2.msra.mxu0 %v1193
      %2238 = vmatprep.subr.mxu0 %v1190
      %2239 = vmatpush2.msra.mxu0 %v1189
      %2240 = vmatprep.subr.mxu0 %v1186
      %2241 = vmatpush2.msra.mxu0 %v1185
      %2242 = vmatprep.subr.mxu0 %v1182
      %2243 = vmatpush2.msra.mxu0 %v1181
      %2244 = vmatprep.subr.mxu0 %v1178
      %2245 = vmatpush2.msra.mxu0 %v1177
      %2246 = vmatprep.subr.mxu0 %v1174
      %2247 = vmatpush2.msra.mxu0 %v1173
      %2248 = vmatprep.subr.mxu0 %v1170
      %2249 = vmatpush2.msra.mxu0 %v1169
      %2250 = vmatprep.subr.mxu0 %v1166
      %2251 = vmatpush2.msra.mxu0 %v1165
      %2252 = vmatprep.subr.mxu0 %v1162
      %2253 = vmatpush2.msra.mxu0 %v1161
      %2254 = vmatprep.subr.mxu0 %v1158
      %2255 = vmatpush2.msra.mxu0 %v1157
      %2256 = vmatprep.subr.mxu0 %v1154
      %2257 = vmatpush2.msra.mxu0 %v1153
      %2258 = vmatprep.subr.mxu0 %v1150
      %2259 = vmatpush2.msra.mxu0 %v1149
      %2260 = vmatprep.subr.mxu0 %v1146
      %2261 = vmatpush2.msra.mxu0 %v1145
      %2262 = vmatprep.mubr.f32.mxu0 %v1060
      %2263 = vmatmul.mubr.f32.gmra.mxu0 %v1059
      %v2264 = vpop.f32.mrf.mxu0
      %v2265 = vadd.f32 %v1970, %v2264
      %v2266 = vpop.f32.mrf.mxu0
      %v2267 = vadd.f32 %v1972, %v2266
      %2268 = vmatprep.mubr.f32.mxu0 %v1064
      %2269 = vmatmul.mubr.f32.gmra.mxu0 %v1063
      %v2270 = vpop.f32.mrf.mxu0
      %v2271 = vadd.f32 %v1976, %v2270
      %v2272 = vpop.f32.mrf.mxu0
      %v2273 = vadd.f32 %v1978, %v2272
      %2274 = vmatprep.mubr.f32.mxu0 %v1068
      %2275 = vmatmul.mubr.f32.gmra.mxu0 %v1067
      %v2276 = vpop.f32.mrf.mxu0
      %v2277 = vadd.f32 %v1982, %v2276
      %v2278 = vpop.f32.mrf.mxu0
      %v2279 = vadd.f32 %v1984, %v2278
      %2280 = vmatprep.mubr.f32.mxu0 %v1072
      %2281 = vmatmul.mubr.f32.gmra.mxu0 %v1071
      %v2282 = vpop.f32.mrf.mxu0
      %v2283 = vadd.f32 %v1988, %v2282
      %v2284 = vpop.f32.mrf.mxu0
      %v2285 = vadd.f32 %v1990, %v2284
      %2286 = vmatprep.mubr.f32.mxu0 %v1076
      %2287 = vmatmul.mubr.f32.gmra.mxu0 %v1075
      %v2288 = vpop.f32.mrf.mxu0
      %v2289 = vadd.f32 %v1994, %v2288
      %v2290 = vpop.f32.mrf.mxu0
      %v2291 = vadd.f32 %v1996, %v2290
      %2292 = vdwg.mxu0
      %2293 = vmatprep.subr.mxu0 %v1270
      %2294 = vmatpush1.msra.mxu0 %v1269
      %2295 = vmatprep.subr.mxu0 %v1266
      %2296 = vmatpush1.msra.mxu0 %v1265
      %2297 = vmatprep.subr.mxu0 %v1262
      %2298 = vmatpush1.msra.mxu0 %v1261
      %2299 = vmatprep.subr.mxu0 %v1258
      %2300 = vmatpush1.msra.mxu0 %v1257
      %2301 = vmatprep.subr.mxu0 %v1254
      %2302 = vmatpush1.msra.mxu0 %v1253
      %2303 = vmatprep.subr.mxu0 %v1250
      %2304 = vmatpush1.msra.mxu0 %v1249
      %2305 = vmatprep.subr.mxu0 %v1246
      %2306 = vmatpush1.msra.mxu0 %v1245
      %2307 = vmatprep.subr.mxu0 %v1242
      %2308 = vmatpush1.msra.mxu0 %v1241
      %2309 = vmatprep.subr.mxu0 %v1238
      %2310 = vmatpush1.msra.mxu0 %v1237
      %2311 = vmatprep.subr.mxu0 %v1234
      %2312 = vmatpush1.msra.mxu0 %v1233
      %2313 = vmatprep.subr.mxu0 %v1230
      %2314 = vmatpush1.msra.mxu0 %v1229
      %2315 = vmatprep.subr.mxu0 %v1226
      %2316 = vmatpush1.msra.mxu0 %v1225
      %2317 = vmatprep.subr.mxu0 %v1222
      %2318 = vmatpush1.msra.mxu0 %v1221
      %2319 = vmatprep.subr.mxu0 %v1218
      %2320 = vmatpush1.msra.mxu0 %v1217
      %2321 = vmatprep.subr.mxu0 %v1214
      %2322 = vmatpush1.msra.mxu0 %v1213
      %2323 = vmatprep.subr.mxu0 %v1210
      %2324 = vmatpush1.msra.mxu0 %v1209
      %2325 = vmatprep.subr.mxu0 0.0
      %2326 = vmatpush2.msra.mxu0 0.0
      %2327 = vmatprep.subr.mxu0 0.0
      %2328 = vmatpush2.msra.mxu0 0.0
      %2329 = vmatprep.subr.mxu0 0.0
      %2330 = vmatpush2.msra.mxu0 0.0
      %2331 = vmatprep.subr.mxu0 0.0
      %2332 = vmatpush2.msra.mxu0 0.0
      %2333 = vmatprep.subr.mxu0 0.0
      %2334 = vmatpush2.msra.mxu0 0.0
      %2335 = vmatprep.subr.mxu0 0.0
      %2336 = vmatpush2.msra.mxu0 0.0
      %2337 = vmatprep.subr.mxu0 0.0
      %2338 = vmatpush2.msra.mxu0 0.0
      %2339 = vmatprep.subr.mxu0 %v1306
      %2340 = vmatpush2.msra.mxu0 %v1305
      %2341 = vmatprep.subr.mxu0 %v1302
      %2342 = vmatpush2.msra.mxu0 %v1301
      %2343 = vmatprep.subr.mxu0 %v1298
      %2344 = vmatpush2.msra.mxu0 %v1297
      %2345 = vmatprep.subr.mxu0 %v1294
      %2346 = vmatpush2.msra.mxu0 %v1293
      %2347 = vmatprep.subr.mxu0 %v1290
      %2348 = vmatpush2.msra.mxu0 %v1289
      %2349 = vmatprep.subr.mxu0 %v1286
      %2350 = vmatpush2.msra.mxu0 %v1285
      %2351 = vmatprep.subr.mxu0 %v1282
      %2352 = vmatpush2.msra.mxu0 %v1281
      %2353 = vmatprep.subr.mxu0 %v1278
      %2354 = vmatpush2.msra.mxu0 %v1277
      %2355 = vmatprep.subr.mxu0 %v1274
      %2356 = vmatpush2.msra.mxu0 %v1273
      %2357 = vmatprep.mubr.f32.mxu0 %v1998
      %2358 = vmatmul.mubr.f32.gmra.mxu0 %v1061
      %v2359 = vpop.f32.mrf.mxu0
      %v2360 = vadd.f32 %v2265, %v2359
      %v2361 = vpop.f32.mrf.mxu0
      %v2362 = vadd.f32 %v2267, %v2361
      %2363 = vmatprep.mubr.f32.mxu0 %v2000
      %2364 = vmatmul.mubr.f32.gmra.mxu0 %v1065
      %v2365 = vpop.f32.mrf.mxu0
      %v2366 = vadd.f32 %v2271, %v2365
      %v2367 = vpop.f32.mrf.mxu0
      %v2368 = vadd.f32 %v2273, %v2367
      %2369 = vmatprep.mubr.f32.mxu0 %v2002
      %2370 = vmatmul.mubr.f32.gmra.mxu0 %v1069
      %v2371 = vpop.f32.mrf.mxu0
      %v2372 = vadd.f32 %v2277, %v2371
      %v2373 = vpop.f32.mrf.mxu0
      %v2374 = vadd.f32 %v2279, %v2373
      %2375 = vmatprep.mubr.f32.mxu0 %v2004
      %2376 = vmatmul.mubr.f32.gmra.mxu0 %v1073
      %v2377 = vpop.f32.mrf.mxu0
      %v2378 = vadd.f32 %v2283, %v2377
      %v2379 = vpop.f32.mrf.mxu0
      %v2380 = vadd.f32 %v2285, %v2379
      %2381 = vmatprep.mubr.f32.mxu0 %v2006
      %2382 = vmatmul.mubr.f32.gmra.mxu0 %v1077
      %v2383 = vpop.f32.mrf.mxu0
      %v2384 = vadd.f32 %v2289, %v2383
      %v2385 = vpop.f32.mrf.mxu0
      %v2386 = vadd.f32 %v2291, %v2385
      %2387 = vdwg.mxu0
      %s2388 = scalar_lea.vmem %s3, 3648
      %v2389 = vld [vmem:[%s2388] sm:$0xff]
      %v2390 = vld [vmem:[%s2388 + $0x8] sm:$0xff]
      %v2391 = vld [vmem:[%s2388 + $0x10] sm:$0xff]
      %v2392 = vld [vmem:[%s2388 + $0x18] sm:$0xff]
      %v2393 = vld [vmem:[%s2388 + $0x20] sm:$0xff]
      %v2394 = vld [vmem:[%s2388 + $0x28] sm:$0xff]
      %v2395 = vld [vmem:[%s2388 + $0x30] sm:$0xff]
      %v2396 = vld [vmem:[%s2388 + $0x38] sm:$0xff]
      %v2397 = vld [vmem:[%s2388 + $0x40] sm:$0xff]
      %v2398 = vld [vmem:[%s2388 + $0x48] sm:$0xff]
      %v2399 = vld [vmem:[%s2388 + $0x50] sm:$0xff]
      %v2400 = vld [vmem:[%s2388 + $0x58] sm:$0xff]
      %v2401 = vld [vmem:[%s2388 + $0x60] sm:$0xff]
      %v2402 = vld [vmem:[%s2388 + $0x68] sm:$0xff]
      %v2403 = vld [vmem:[%s2388 + $0x70] sm:$0xff]
      %v2404 = vld [vmem:[%s2388 + $0x78] sm:$0xff]
      %v2405 = vld [vmem:[%s2388 + $0x80] sm:$0xff]
      %v2406 = vld [vmem:[%s2388 + $0x88] sm:$0xff]
      %v2407 = vld [vmem:[%s2388 + $0x90] sm:$0xff]
      %v2408 = vld [vmem:[%s2388 + $0x98] sm:$0xff]
      %v2409 = vld [vmem:[%s2388 + $0xa0] sm:$0xff]
      %v2410 = vld [vmem:[%s2388 + $0xa8] sm:$0xff]
      %v2411 = vld [vmem:[%s2388 + $0xb0] sm:$0xff]
      %v2412 = vld [vmem:[%s2388 + $0xb8] sm:$0xff]
      %v2413 = vld [vmem:[%s2388 + $0xc0] sm:$0xff]
      %v2414 = vld [vmem:[%s2388 + $0xc8] sm:$0xff]
      %v2415 = vld [vmem:[%s2388 + $0xd0] sm:$0xff]
      %v2416 = vld [vmem:[%s2388 + $0xd8] sm:$0xff]
      %v2417 = vld [vmem:[%s2388 + $0xe0] sm:$0xff]
      %v2418 = vld [vmem:[%s2388 + $0xe8] sm:$0xff]
      %v2419 = vld [vmem:[%s2388 + $0xf0] sm:$0xff]
      %v2420 = vld [vmem:[%s2388 + $0xf8] sm:$0xff]
      %v2421 = vld [vmem:[%s2388 + $0x100] sm:$0xff]
      %v2422 = vld [vmem:[%s2388 + $0x108] sm:$0xff]
      %v2423 = vld [vmem:[%s2388 + $0x110] sm:$0xff]
      %v2424 = vld [vmem:[%s2388 + $0x118] sm:$0xff]
      %v2425 = vld [vmem:[%s2388 + $0x120] sm:$0xff]
      %v2426 = vld [vmem:[%s2388 + $0x128] sm:$0xff]
      %v2427 = vld [vmem:[%s2388 + $0x130] sm:$0xff]
      %v2428 = vld [vmem:[%s2388 + $0x138] sm:$0xff]
      %v2429 = vld [vmem:[%s2388 + $0x140] sm:$0xff]
      %v2430 = vld [vmem:[%s2388 + $0x148] sm:$0xff]
      %v2431 = vld [vmem:[%s2388 + $0x150] sm:$0xff]
      %v2432 = vld [vmem:[%s2388 + $0x158] sm:$0xff]
      %v2433 = vld [vmem:[%s2388 + $0x160] sm:$0xff]
      %v2434 = vld [vmem:[%s2388 + $0x168] sm:$0xff]
      %v2435 = vld [vmem:[%s2388 + $0x170] sm:$0xff]
      %v2436 = vld [vmem:[%s2388 + $0x178] sm:$0xff]
      %v2437 = vld [vmem:[%s2388 + $0x180] sm:$0xff]
      %v2438 = vld [vmem:[%s2388 + $0x188] sm:$0xff]
      %v2439 = vld [vmem:[%s2388 + $0x190] sm:$0xff]
      %v2440 = vld [vmem:[%s2388 + $0x198] sm:$0xff]
      %v2441 = vld [vmem:[%s2388 + $0x1a0] sm:$0xff]
      %v2442 = vld [vmem:[%s2388 + $0x1a8] sm:$0xff]
      %v2443 = vld [vmem:[%s2388 + $0x1b0] sm:$0xff]
      %v2444 = vld [vmem:[%s2388 + $0x1b8] sm:$0xff]
      %v2445 = vld [vmem:[%s2388 + $0x1c0] sm:$0xff]
      %v2446 = vld [vmem:[%s2388 + $0x1c8] sm:$0xff]
      %v2447 = vld [vmem:[%s2388 + $0x1d0] sm:$0xff]
      %v2448 = vld [vmem:[%s2388 + $0x1d8] sm:$0xff]
      %v2449 = vld [vmem:[%s2388 + $0x1e0] sm:$0xff]
      %v2450 = vld [vmem:[%s2388 + $0x1e8] sm:$0xff]
      %v2451 = vld [vmem:[%s2388 + $0x1f0] sm:$0xff]
      %v2452 = vld [vmem:[%s2388 + $0x1f8] sm:$0xff]
      %v2453 = vld [vmem:[%s2388 + $0x200] sm:$0xff]
      %v2454 = vld [vmem:[%s2388 + $0x208] sm:$0xff]
      %v2455 = vld [vmem:[%s2388 + $0x210] sm:$0xff]
      %v2456 = vld [vmem:[%s2388 + $0x218] sm:$0xff]
      %v2457 = vld [vmem:[%s2388 + $0x220] sm:$0xff]
      %v2458 = vld [vmem:[%s2388 + $0x228] sm:$0xff]
      %v2459 = vld [vmem:[%s2388 + $0x230] sm:$0xff]
      %v2460 = vld [vmem:[%s2388 + $0x238] sm:$0xff]
      %v2461 = vld [vmem:[%s2388 + $0x240] sm:$0xff]
      %v2462 = vld [vmem:[%s2388 + $0x248] sm:$0xff]
      %v2463 = vld [vmem:[%s2388 + $0x250] sm:$0xff]
      %v2464 = vld [vmem:[%s2388 + $0x258] sm:$0xff]
      %v2465 = vld [vmem:[%s2388 + $0x260] sm:$0xff]
      %v2466 = vld [vmem:[%s2388 + $0x268] sm:$0xff]
      %v2467 = vld [vmem:[%s2388 + $0x270] sm:$0xff]
      %v2468 = vld [vmem:[%s2388 + $0x278] sm:$0xff]
      %v2469 = vld [vmem:[%s2388 + $0x280] sm:$0xff]
      %v2470 = vld [vmem:[%s2388 + $0x288] sm:$0xff]
      %v2471 = vld [vmem:[%s2388 + $0x290] sm:$0xff]
      %v2472 = vld [vmem:[%s2388 + $0x298] sm:$0xff]
      %v2473 = vld [vmem:[%s2388 + $0x2a0] sm:$0xff]
      %v2474 = vld [vmem:[%s2388 + $0x2a8] sm:$0xff]
      %v2475 = vld [vmem:[%s2388 + $0x2b0] sm:$0xff]
      %v2476 = vld [vmem:[%s2388 + $0x2b8] sm:$0xff]
      %v2477 = vld [vmem:[%s2388 + $0x2c0] sm:$0xff]
      %v2478 = vld [vmem:[%s2388 + $0x2c8] sm:$0xff]
      %v2479 = vld [vmem:[%s2388 + $0x2d0] sm:$0xff]
      %v2480 = vld [vmem:[%s2388 + $0x2d8] sm:$0xff]
      %v2481 = vld [vmem:[%s2388 + $0x2e0] sm:$0xff]
      %v2482 = vld [vmem:[%s2388 + $0x2e8] sm:$0xff]
      %v2483 = vld [vmem:[%s2388 + $0x2f0] sm:$0xff]
      %v2484 = vld [vmem:[%s2388 + $0x2f8] sm:$0xff]
      %v2485 = vld [vmem:[%s2388 + $0x300] sm:$0xff]
      %v2486 = vld [vmem:[%s2388 + $0x308] sm:$0xff]
      %v2487 = vld [vmem:[%s2388 + $0x310] sm:$0xff]
      %v2488 = vld [vmem:[%s2388 + $0x318] sm:$0xff]
      %v2489 = vld [vmem:[%s2388 + $0x320] sm:$0xff]
      %v2490 = vld [vmem:[%s2388 + $0x328] sm:$0xff]
      %v2491 = vld [vmem:[%s2388 + $0x330] sm:$0xff]
      %v2492 = vld [vmem:[%s2388 + $0x338] sm:$0xff]
      %v2493 = vld [vmem:[%s2388 + $0x340] sm:$0xff]
      %v2494 = vld [vmem:[%s2388 + $0x348] sm:$0xff]
      %v2495 = vld [vmem:[%s2388 + $0x350] sm:$0xff]
      %v2496 = vld [vmem:[%s2388 + $0x358] sm:$0xff]
      %v2497 = vld [vmem:[%s2388 + $0x360] sm:$0xff]
      %v2498 = vld [vmem:[%s2388 + $0x368] sm:$0xff]
      %v2499 = vld [vmem:[%s2388 + $0x370] sm:$0xff]
      %v2500 = vld [vmem:[%s2388 + $0x378] sm:$0xff]
      %v2501 = vld [vmem:[%s2388 + $0x380] sm:$0xff]
      %v2502 = vld [vmem:[%s2388 + $0x388] sm:$0xff]
      %v2503 = vld [vmem:[%s2388 + $0x390] sm:$0xff]
      %v2504 = vld [vmem:[%s2388 + $0x398] sm:$0xff]
      %v2505 = vld [vmem:[%s2388 + $0x3a0] sm:$0xff]
      %v2506 = vld [vmem:[%s2388 + $0x3a8] sm:$0xff]
      %v2507 = vld [vmem:[%s2388 + $0x3b0] sm:$0xff]
      %v2508 = vld [vmem:[%s2388 + $0x3b8] sm:$0xff]
      %v2509 = vld [vmem:[%s2388 + $0x3c0] sm:$0xff]
      %v2510 = vld [vmem:[%s2388 + $0x3c8] sm:$0xff]
      %v2511 = vld [vmem:[%s2388 + $0x3d0] sm:$0xff]
      %v2512 = vld [vmem:[%s2388 + $0x3d8] sm:$0xff]
      %v2513 = vld [vmem:[%s2388 + $0x3e0] sm:$0xff]
      %v2514 = vld [vmem:[%s2388 + $0x3e8] sm:$0xff]
      %v2515 = vld [vmem:[%s2388 + $0x3f0] sm:$0xff]
      %v2516 = vld [vmem:[%s2388 + $0x3f8] sm:$0xff]
      %v2517 = vld [vmem:[%s2388 + $0x400] sm:$0xff]
      %v2518 = vld [vmem:[%s2388 + $0x408] sm:$0xff]
      %v2519 = vld [vmem:[%s2388 + $0x410] sm:$0xff]
      %v2520 = vld [vmem:[%s2388 + $0x418] sm:$0xff]
      %v2521 = vld [vmem:[%s2388 + $0x420] sm:$0xff]
      %v2522 = vld [vmem:[%s2388 + $0x428] sm:$0xff]
      %v2523 = vld [vmem:[%s2388 + $0x430] sm:$0xff]
      %v2524 = vld [vmem:[%s2388 + $0x438] sm:$0xff]
      %v2525 = vld [vmem:[%s2388 + $0x440] sm:$0xff]
      %v2526 = vld [vmem:[%s2388 + $0x448] sm:$0xff]
      %v2527 = vld [vmem:[%s2388 + $0x450] sm:$0xff]
      %v2528 = vld [vmem:[%s2388 + $0x458] sm:$0xff]
      %v2529 = vld [vmem:[%s2388 + $0x460] sm:$0xff]
      %v2530 = vld [vmem:[%s2388 + $0x468] sm:$0xff]
      %v2531 = vld [vmem:[%s2388 + $0x470] sm:$0xff]
      %v2532 = vld [vmem:[%s2388 + $0x478] sm:$0xff]
      %v2533 = vld [vmem:[%s2388 + $0x480] sm:$0xff]
      %v2534 = vld [vmem:[%s2388 + $0x488] sm:$0xff]
      %v2535 = vld [vmem:[%s2388 + $0x490] sm:$0xff]
      %v2536 = vld [vmem:[%s2388 + $0x498] sm:$0xff]
      %v2537 = vld [vmem:[%s2388 + $0x4a0] sm:$0xff]
      %v2538 = vld [vmem:[%s2388 + $0x4a8] sm:$0xff]
      %v2539 = vld [vmem:[%s2388 + $0x4b0] sm:$0xff]
      %v2540 = vld [vmem:[%s2388 + $0x4b8] sm:$0xff]
      %v2541 = vld [vmem:[%s2388 + $0x4c0] sm:$0xff]
      %v2542 = vld [vmem:[%s2388 + $0x4c8] sm:$0xff]
      %v2543 = vld [vmem:[%s2388 + $0x4d0] sm:$0xff]
      %v2544 = vld [vmem:[%s2388 + $0x4d8] sm:$0xff]
      %v2545 = vld [vmem:[%s2388 + $0x4e0] sm:$0xff]
      %v2546 = vld [vmem:[%s2388 + $0x4e8] sm:$0xff]
      %v2547 = vld [vmem:[%s2388 + $0x4f0] sm:$0xff]
      %v2548 = vld [vmem:[%s2388 + $0x4f8] sm:$0xff]
      %v2549 = vld [vmem:[%s2388 + $0x500] sm:$0xff]
      %v2550 = vld [vmem:[%s2388 + $0x508] sm:$0xff]
      %v2551 = vld [vmem:[%s2388 + $0x510] sm:$0xff]
      %v2552 = vld [vmem:[%s2388 + $0x518] sm:$0xff]
      %v2553 = vld [vmem:[%s2388 + $0x520] sm:$0xff]
      %v2554 = vld [vmem:[%s2388 + $0x528] sm:$0xff]
      %v2555 = vld [vmem:[%s2388 + $0x530] sm:$0xff]
      %v2556 = vld [vmem:[%s2388 + $0x538] sm:$0xff]
      %v2557 = vld [vmem:[%s2388 + $0x540] sm:$0xff]
      %v2558 = vld [vmem:[%s2388 + $0x548] sm:$0xff]
      %v2559 = vld [vmem:[%s2388 + $0x550] sm:$0xff]
      %v2560 = vld [vmem:[%s2388 + $0x558] sm:$0xff]
      %v2561 = vld [vmem:[%s2388 + $0x560] sm:$0xff]
      %v2562 = vld [vmem:[%s2388 + $0x568] sm:$0xff]
      %v2563 = vld [vmem:[%s2388 + $0x570] sm:$0xff]
      %v2564 = vld [vmem:[%s2388 + $0x578] sm:$0xff]
      %v2565 = vld [vmem:[%s2388 + $0x580] sm:$0xff]
      %v2566 = vld [vmem:[%s2388 + $0x588] sm:$0xff]
      %v2567 = vld [vmem:[%s2388 + $0x590] sm:$0xff]
      %v2568 = vld [vmem:[%s2388 + $0x598] sm:$0xff]
      %v2569 = vld [vmem:[%s2388 + $0x5a0] sm:$0xff]
      %v2570 = vld [vmem:[%s2388 + $0x5a8] sm:$0xff]
      %v2571 = vld [vmem:[%s2388 + $0x5b0] sm:$0xff]
      %v2572 = vld [vmem:[%s2388 + $0x5b8] sm:$0xff]
      %v2573 = vld [vmem:[%s2388 + $0x5c0] sm:$0xff]
      %v2574 = vld [vmem:[%s2388 + $0x5c8] sm:$0xff]
      %v2575 = vld [vmem:[%s2388 + $0x5d0] sm:$0xff]
      %v2576 = vld [vmem:[%s2388 + $0x5d8] sm:$0xff]
      %v2577 = vld [vmem:[%s2388 + $0x5e0] sm:$0xff]
      %v2578 = vld [vmem:[%s2388 + $0x5e8] sm:$0xff]
      %v2579 = vld [vmem:[%s2388 + $0x5f0] sm:$0xff]
      %v2580 = vld [vmem:[%s2388 + $0x5f8] sm:$0xff]
      %v2581 = vld [vmem:[%s2388 + $0x600] sm:$0xff]
      %v2582 = vld [vmem:[%s2388 + $0x608] sm:$0xff]
      %v2583 = vld [vmem:[%s2388 + $0x610] sm:$0xff]
      %v2584 = vld [vmem:[%s2388 + $0x618] sm:$0xff]
      %v2585 = vld [vmem:[%s2388 + $0x620] sm:$0xff]
      %v2586 = vld [vmem:[%s2388 + $0x628] sm:$0xff]
      %v2587 = vld [vmem:[%s2388 + $0x630] sm:$0xff]
      %v2588 = vld [vmem:[%s2388 + $0x638] sm:$0xff]
      %v2589 = vld [vmem:[%s2388 + $0x640] sm:$0xff]
      %v2590 = vld [vmem:[%s2388 + $0x648] sm:$0xff]
      %v2591 = vld [vmem:[%s2388 + $0x650] sm:$0xff]
      %v2592 = vld [vmem:[%s2388 + $0x658] sm:$0xff]
      %v2593 = vld [vmem:[%s2388 + $0x660] sm:$0xff]
      %v2594 = vld [vmem:[%s2388 + $0x668] sm:$0xff]
      %v2595 = vld [vmem:[%s2388 + $0x670] sm:$0xff]
      %v2596 = vld [vmem:[%s2388 + $0x678] sm:$0xff]
      %v2597 = vld [vmem:[%s2388 + $0x680] sm:$0xff]
      %v2598 = vld [vmem:[%s2388 + $0x688] sm:$0xff]
      %v2599 = vld [vmem:[%s2388 + $0x690] sm:$0xff]
      %v2600 = vld [vmem:[%s2388 + $0x698] sm:$0xff]
      %v2601 = vld [vmem:[%s2388 + $0x6a0] sm:$0xff]
      %v2602 = vld [vmem:[%s2388 + $0x6a8] sm:$0xff]
      %v2603 = vld [vmem:[%s2388 + $0x6b0] sm:$0xff]
      %v2604 = vld [vmem:[%s2388 + $0x6b8] sm:$0xff]
      %v2605 = vld [vmem:[%s2388 + $0x6c0] sm:$0xff]
      %v2606 = vld [vmem:[%s2388 + $0x6c8] sm:$0xff]
      %v2607 = vld [vmem:[%s2388 + $0x6d0] sm:$0xff]
      %v2608 = vld [vmem:[%s2388 + $0x6d8] sm:$0xff]
      %v2609 = vld [vmem:[%s2388 + $0x6e0] sm:$0xff]
      %v2610 = vld [vmem:[%s2388 + $0x6e8] sm:$0xff]
      %v2611 = vld [vmem:[%s2388 + $0x6f0] sm:$0xff]
      %v2612 = vld [vmem:[%s2388 + $0x6f8] sm:$0xff]
      %v2613 = vld [vmem:[%s2388 + $0x700] sm:$0xff]
      %v2614 = vld [vmem:[%s2388 + $0x708] sm:$0xff]
      %v2615 = vld [vmem:[%s2388 + $0x710] sm:$0xff]
      %v2616 = vld [vmem:[%s2388 + $0x718] sm:$0xff]
      %v2617 = vrot.slane %v1059, 2
      %v2618 = vrot.slane %v1063, 2
      %v2619 = vsel %vm787, %v2617, %v2618
      %v2620 = vrot.slane %v1060, 2
      %v2621 = vrot.slane %v1064, 2
      %v2622 = vsel %vm787, %v2620, %v2621
      %v2623 = vrot.slane %v1061, 2
      %v2624 = vrot.slane %v1065, 2
      %v2625 = vsel %vm787, %v2623, %v2624
      %v2626 = vrot.slane %v1062, 2
      %v2627 = vrot.slane %v1066, 2
      %v2628 = vsel %vm787, %v2626, %v2627
      %v2629 = vrot.slane %v1067, 2
      %v2630 = vsel %vm787, %v2618, %v2629
      %v2631 = vrot.slane %v1068, 2
      %v2632 = vsel %vm787, %v2621, %v2631
      %v2633 = vrot.slane %v1069, 2
      %v2634 = vsel %vm787, %v2624, %v2633
      %v2635 = vrot.slane %v1070, 2
      %v2636 = vsel %vm787, %v2627, %v2635
      %v2637 = vrot.slane %v1071, 2
      %v2638 = vsel %vm787, %v2629, %v2637
      %v2639 = vrot.slane %v1072, 2
      %v2640 = vsel %vm787, %v2631, %v2639
      %v2641 = vrot.slane %v1073, 2
      %v2642 = vsel %vm787, %v2633, %v2641
      %v2643 = vrot.slane %v1074, 2
      %v2644 = vsel %vm787, %v2635, %v2643
      %v2645 = vrot.slane %v1075, 2
      %v2646 = vsel %vm787, %v2637, %v2645
      %v2647 = vrot.slane %v1076, 2
      %v2648 = vsel %vm787, %v2639, %v2647
      %v2649 = vrot.slane %v1077, 2
      %v2650 = vsel %vm787, %v2641, %v2649
      %v2651 = vrot.slane %v1078, 2
      %v2652 = vsel %vm787, %v2643, %v2651
      %v2668 = vsel %vm1607, %v2628, 0
      %v2670 = vsel %vm1607, %v2636, 0
      %v2672 = vsel %vm1607, %v2644, 0
      %v2674 = vsel %vm1607, %v2652, 0
      %v2676 = vsel %vm1607, %v2651, 0
      %2678 = vmatprep.subr.mxu0 %v2450
      %2679 = vmatpush1.msra.mxu0 %v2449
      %2680 = vmatprep.subr.mxu0 %v2446
      %2681 = vmatpush1.msra.mxu0 %v2445
      %2682 = vmatprep.subr.mxu0 %v2442
      %2683 = vmatpush1.msra.mxu0 %v2441
      %2684 = vmatprep.subr.mxu0 %v2438
      %2685 = vmatpush1.msra.mxu0 %v2437
      %2686 = vmatprep.subr.mxu0 %v2434
      %2687 = vmatpush1.msra.mxu0 %v2433
      %2688 = vmatprep.subr.mxu0 %v2430
      %2689 = vmatpush1.msra.mxu0 %v2429
      %2690 = vmatprep.subr.mxu0 %v2426
      %2691 = vmatpush1.msra.mxu0 %v2425
      %2692 = vmatprep.subr.mxu0 %v2422
      %2693 = vmatpush1.msra.mxu0 %v2421
      %2694 = vmatprep.subr.mxu0 %v2418
      %2695 = vmatpush1.msra.mxu0 %v2417
      %2696 = vmatprep.subr.mxu0 %v2414
      %2697 = vmatpush1.msra.mxu0 %v2413
      %2698 = vmatprep.subr.mxu0 %v2410
      %2699 = vmatpush1.msra.mxu0 %v2409
      %2700 = vmatprep.subr.mxu0 %v2406
      %2701 = vmatpush1.msra.mxu0 %v2405
      %2702 = vmatprep.subr.mxu0 %v2402
      %2703 = vmatpush1.msra.mxu0 %v2401
      %2704 = vmatprep.subr.mxu0 %v2398
      %2705 = vmatpush1.msra.mxu0 %v2397
      %2706 = vmatprep.subr.mxu0 %v2394
      %2707 = vmatpush1.msra.mxu0 %v2393
      %2708 = vmatprep.subr.mxu0 %v2390
      %2709 = vmatpush1.msra.mxu0 %v2389
      %2710 = vmatprep.subr.mxu0 %v2514
      %2711 = vmatpush2.msra.mxu0 %v2513
      %2712 = vmatprep.subr.mxu0 %v2510
      %2713 = vmatpush2.msra.mxu0 %v2509
      %2714 = vmatprep.subr.mxu0 %v2506
      %2715 = vmatpush2.msra.mxu0 %v2505
      %2716 = vmatprep.subr.mxu0 %v2502
      %2717 = vmatpush2.msra.mxu0 %v2501
      %2718 = vmatprep.subr.mxu0 %v2498
      %2719 = vmatpush2.msra.mxu0 %v2497
      %2720 = vmatprep.subr.mxu0 %v2494
      %2721 = vmatpush2.msra.mxu0 %v2493
      %2722 = vmatprep.subr.mxu0 %v2490
      %2723 = vmatpush2.msra.mxu0 %v2489
      %2724 = vmatprep.subr.mxu0 %v2486
      %2725 = vmatpush2.msra.mxu0 %v2485
      %2726 = vmatprep.subr.mxu0 %v2482
      %2727 = vmatpush2.msra.mxu0 %v2481
      %2728 = vmatprep.subr.mxu0 %v2478
      %2729 = vmatpush2.msra.mxu0 %v2477
      %2730 = vmatprep.subr.mxu0 %v2474
      %2731 = vmatpush2.msra.mxu0 %v2473
      %2732 = vmatprep.subr.mxu0 %v2470
      %2733 = vmatpush2.msra.mxu0 %v2469
      %2734 = vmatprep.subr.mxu0 %v2466
      %2735 = vmatpush2.msra.mxu0 %v2465
      %2736 = vmatprep.subr.mxu0 %v2462
      %2737 = vmatpush2.msra.mxu0 %v2461
      %2738 = vmatprep.subr.mxu0 %v2458
      %2739 = vmatpush2.msra.mxu0 %v2457
      %2740 = vmatprep.subr.mxu0 %v2454
      %2741 = vmatpush2.msra.mxu0 %v2453
      %2742 = vmatprep.mubr.f32.mxu0 %v2622
      %2743 = vmatmul.mubr.f32.gmra.mxu0 %v2619
      %v2744 = vpop.f32.mrf.mxu0
      %v2745 = vadd.f32 0.0, %v2744
      %v2746 = vpop.f32.mrf.mxu0
      %v2747 = vadd.f32 0.0, %v2746
      %2748 = vmatprep.mubr.f32.mxu0 %v2632
      %2749 = vmatmul.mubr.f32.gmra.mxu0 %v2630
      %v2750 = vpop.f32.mrf.mxu0
      %v2751 = vadd.f32 0.0, %v2750
      %v2752 = vpop.f32.mrf.mxu0
      %v2753 = vadd.f32 0.0, %v2752
      %2754 = vmatprep.mubr.f32.mxu0 %v2640
      %2755 = vmatmul.mubr.f32.gmra.mxu0 %v2638
      %v2756 = vpop.f32.mrf.mxu0
      %v2757 = vadd.f32 0.0, %v2756
      %v2758 = vpop.f32.mrf.mxu0
      %v2759 = vadd.f32 0.0, %v2758
      %2760 = vmatprep.mubr.f32.mxu0 %v2648
      %2761 = vmatmul.mubr.f32.gmra.mxu0 %v2646
      %v2762 = vpop.f32.mrf.mxu0
      %v2763 = vadd.f32 0.0, %v2762
      %v2764 = vpop.f32.mrf.mxu0
      %v2765 = vadd.f32 0.0, %v2764
      %2766 = vmatprep.mubr.f32.mxu0 %v2647
      %2767 = vmatmul.mubr.f32.gmra.mxu0 %v2645
      %v2768 = vpop.f32.mrf.mxu0
      %v2769 = vadd.f32 0.0, %v2768
      %v2770 = vpop.f32.mrf.mxu0
      %v2771 = vadd.f32 0.0, %v2770
      %2772 = vdwg.mxu0
      %2773 = vmatprep.subr.mxu0 %v2578
      %2774 = vmatpush1.msra.mxu0 %v2577
      %2775 = vmatprep.subr.mxu0 %v2574
      %2776 = vmatpush1.msra.mxu0 %v2573
      %2777 = vmatprep.subr.mxu0 %v2570
      %2778 = vmatpush1.msra.mxu0 %v2569
      %2779 = vmatprep.subr.mxu0 %v2566
      %2780 = vmatpush1.msra.mxu0 %v2565
      %2781 = vmatprep.subr.mxu0 %v2562
      %2782 = vmatpush1.msra.mxu0 %v2561
      %2783 = vmatprep.subr.mxu0 %v2558
      %2784 = vmatpush1.msra.mxu0 %v2557
      %2785 = vmatprep.subr.mxu0 %v2554
      %2786 = vmatpush1.msra.mxu0 %v2553
      %2787 = vmatprep.subr.mxu0 %v2550
      %2788 = vmatpush1.msra.mxu0 %v2549
      %2789 = vmatprep.subr.mxu0 %v2546
      %2790 = vmatpush1.msra.mxu0 %v2545
      %2791 = vmatprep.subr.mxu0 %v2542
      %2792 = vmatpush1.msra.mxu0 %v2541
      %2793 = vmatprep.subr.mxu0 %v2538
      %2794 = vmatpush1.msra.mxu0 %v2537
      %2795 = vmatprep.subr.mxu0 %v2534
      %2796 = vmatpush1.msra.mxu0 %v2533
      %2797 = vmatprep.subr.mxu0 %v2530
      %2798 = vmatpush1.msra.mxu0 %v2529
      %2799 = vmatprep.subr.mxu0 %v2526
      %2800 = vmatpush1.msra.mxu0 %v2525
      %2801 = vmatprep.subr.mxu0 %v2522
      %2802 = vmatpush1.msra.mxu0 %v2521
      %2803 = vmatprep.subr.mxu0 %v2518
      %2804 = vmatpush1.msra.mxu0 %v2517
      %2805 = vmatprep.subr.mxu0 0.0
      %2806 = vmatpush2.msra.mxu0 0.0
      %2807 = vmatprep.subr.mxu0 0.0
      %2808 = vmatpush2.msra.mxu0 0.0
      %2809 = vmatprep.subr.mxu0 0.0
      %2810 = vmatpush2.msra.mxu0 0.0
      %2811 = vmatprep.subr.mxu0 0.0
      %2812 = vmatpush2.msra.mxu0 0.0
      %2813 = vmatprep.subr.mxu0 0.0
      %2814 = vmatpush2.msra.mxu0 0.0
      %2815 = vmatprep.subr.mxu0 0.0
      %2816 = vmatpush2.msra.mxu0 0.0
      %2817 = vmatprep.subr.mxu0 0.0
      %2818 = vmatpush2.msra.mxu0 0.0
      %2819 = vmatprep.subr.mxu0 %v2614
      %2820 = vmatpush2.msra.mxu0 %v2613
      %2821 = vmatprep.subr.mxu0 %v2610
      %2822 = vmatpush2.msra.mxu0 %v2609
      %2823 = vmatprep.subr.mxu0 %v2606
      %2824 = vmatpush2.msra.mxu0 %v2605
      %2825 = vmatprep.subr.mxu0 %v2602
      %2826 = vmatpush2.msra.mxu0 %v2601
      %2827 = vmatprep.subr.mxu0 %v2598
      %2828 = vmatpush2.msra.mxu0 %v2597
      %2829 = vmatprep.subr.mxu0 %v2594
      %2830 = vmatpush2.msra.mxu0 %v2593
      %2831 = vmatprep.subr.mxu0 %v2590
      %2832 = vmatpush2.msra.mxu0 %v2589
      %2833 = vmatprep.subr.mxu0 %v2586
      %2834 = vmatpush2.msra.mxu0 %v2585
      %2835 = vmatprep.subr.mxu0 %v2582
      %2836 = vmatpush2.msra.mxu0 %v2581
      %2837 = vmatprep.mubr.f32.mxu0 %v2668
      %2838 = vmatmul.mubr.f32.gmra.mxu0 %v2625
      %v2839 = vpop.f32.mrf.mxu0
      %v2840 = vadd.f32 %v2745, %v2839
      %v2841 = vpop.f32.mrf.mxu0
      %v2842 = vadd.f32 %v2747, %v2841
      %2843 = vmatprep.mubr.f32.mxu0 %v2670
      %2844 = vmatmul.mubr.f32.gmra.mxu0 %v2634
      %v2845 = vpop.f32.mrf.mxu0
      %v2846 = vadd.f32 %v2751, %v2845
      %v2847 = vpop.f32.mrf.mxu0
      %v2848 = vadd.f32 %v2753, %v2847
      %2849 = vmatprep.mubr.f32.mxu0 %v2672
      %2850 = vmatmul.mubr.f32.gmra.mxu0 %v2642
      %v2851 = vpop.f32.mrf.mxu0
      %v2852 = vadd.f32 %v2757, %v2851
      %v2853 = vpop.f32.mrf.mxu0
      %v2854 = vadd.f32 %v2759, %v2853
      %2855 = vmatprep.mubr.f32.mxu0 %v2674
      %2856 = vmatmul.mubr.f32.gmra.mxu0 %v2650
      %v2857 = vpop.f32.mrf.mxu0
      %v2858 = vadd.f32 %v2763, %v2857
      %v2859 = vpop.f32.mrf.mxu0
      %v2860 = vadd.f32 %v2765, %v2859
      %2861 = vmatprep.mubr.f32.mxu0 %v2676
      %2862 = vmatmul.mubr.f32.gmra.mxu0 %v2649
      %v2863 = vpop.f32.mrf.mxu0
      %v2864 = vadd.f32 %v2769, %v2863
      %v2865 = vpop.f32.mrf.mxu0
      %v2866 = vadd.f32 %v2771, %v2865
      %2867 = vdwg.mxu0
      %2868 = vmatprep.subr.mxu0 %v2452
      %2869 = vmatpush1.msra.mxu0 %v2451
      %2870 = vmatprep.subr.mxu0 %v2448
      %2871 = vmatpush1.msra.mxu0 %v2447
      %2872 = vmatprep.subr.mxu0 %v2444
      %2873 = vmatpush1.msra.mxu0 %v2443
      %2874 = vmatprep.subr.mxu0 %v2440
      %2875 = vmatpush1.msra.mxu0 %v2439
      %2876 = vmatprep.subr.mxu0 %v2436
      %2877 = vmatpush1.msra.mxu0 %v2435
      %2878 = vmatprep.subr.mxu0 %v2432
      %2879 = vmatpush1.msra.mxu0 %v2431
      %2880 = vmatprep.subr.mxu0 %v2428
      %2881 = vmatpush1.msra.mxu0 %v2427
      %2882 = vmatprep.subr.mxu0 %v2424
      %2883 = vmatpush1.msra.mxu0 %v2423
      %2884 = vmatprep.subr.mxu0 %v2420
      %2885 = vmatpush1.msra.mxu0 %v2419
      %2886 = vmatprep.subr.mxu0 %v2416
      %2887 = vmatpush1.msra.mxu0 %v2415
      %2888 = vmatprep.subr.mxu0 %v2412
      %2889 = vmatpush1.msra.mxu0 %v2411
      %2890 = vmatprep.subr.mxu0 %v2408
      %2891 = vmatpush1.msra.mxu0 %v2407
      %2892 = vmatprep.subr.mxu0 %v2404
      %2893 = vmatpush1.msra.mxu0 %v2403
      %2894 = vmatprep.subr.mxu0 %v2400
      %2895 = vmatpush1.msra.mxu0 %v2399
      %2896 = vmatprep.subr.mxu0 %v2396
      %2897 = vmatpush1.msra.mxu0 %v2395
      %2898 = vmatprep.subr.mxu0 %v2392
      %2899 = vmatpush1.msra.mxu0 %v2391
      %2900 = vmatprep.subr.mxu0 %v2516
      %2901 = vmatpush2.msra.mxu0 %v2515
      %2902 = vmatprep.subr.mxu0 %v2512
      %2903 = vmatpush2.msra.mxu0 %v2511
      %2904 = vmatprep.subr.mxu0 %v2508
      %2905 = vmatpush2.msra.mxu0 %v2507
      %2906 = vmatprep.subr.mxu0 %v2504
      %2907 = vmatpush2.msra.mxu0 %v2503
      %2908 = vmatprep.subr.mxu0 %v2500
      %2909 = vmatpush2.msra.mxu0 %v2499
      %2910 = vmatprep.subr.mxu0 %v2496
      %2911 = vmatpush2.msra.mxu0 %v2495
      %2912 = vmatprep.subr.mxu0 %v2492
      %2913 = vmatpush2.msra.mxu0 %v2491
      %2914 = vmatprep.subr.mxu0 %v2488
      %2915 = vmatpush2.msra.mxu0 %v2487
      %2916 = vmatprep.subr.mxu0 %v2484
      %2917 = vmatpush2.msra.mxu0 %v2483
      %2918 = vmatprep.subr.mxu0 %v2480
      %2919 = vmatpush2.msra.mxu0 %v2479
      %2920 = vmatprep.subr.mxu0 %v2476
      %2921 = vmatpush2.msra.mxu0 %v2475
      %2922 = vmatprep.subr.mxu0 %v2472
      %2923 = vmatpush2.msra.mxu0 %v2471
      %2924 = vmatprep.subr.mxu0 %v2468
      %2925 = vmatpush2.msra.mxu0 %v2467
      %2926 = vmatprep.subr.mxu0 %v2464
      %2927 = vmatpush2.msra.mxu0 %v2463
      %2928 = vmatprep.subr.mxu0 %v2460
      %2929 = vmatpush2.msra.mxu0 %v2459
      %2930 = vmatprep.subr.mxu0 %v2456
      %2931 = vmatpush2.msra.mxu0 %v2455
      %2932 = vmatprep.mubr.f32.mxu0 %v2622
      %2933 = vmatmul.mubr.f32.gmra.mxu0 %v2619
      %v2934 = vpop.f32.mrf.mxu0
      %v2935 = vadd.f32 0.0, %v2934
      %v2936 = vpop.f32.mrf.mxu0
      %v2937 = vadd.f32 0.0, %v2936
      %2938 = vmatprep.mubr.f32.mxu0 %v2632
      %2939 = vmatmul.mubr.f32.gmra.mxu0 %v2630
      %v2940 = vpop.f32.mrf.mxu0
      %v2941 = vadd.f32 0.0, %v2940
      %v2942 = vpop.f32.mrf.mxu0
      %v2943 = vadd.f32 0.0, %v2942
      %2944 = vmatprep.mubr.f32.mxu0 %v2640
      %2945 = vmatmul.mubr.f32.gmra.mxu0 %v2638
      %v2946 = vpop.f32.mrf.mxu0
      %v2947 = vadd.f32 0.0, %v2946
      %v2948 = vpop.f32.mrf.mxu0
      %v2949 = vadd.f32 0.0, %v2948
      %2950 = vmatprep.mubr.f32.mxu0 %v2648
      %2951 = vmatmul.mubr.f32.gmra.mxu0 %v2646
      %v2952 = vpop.f32.mrf.mxu0
      %v2953 = vadd.f32 0.0, %v2952
      %v2954 = vpop.f32.mrf.mxu0
      %v2955 = vadd.f32 0.0, %v2954
      %2956 = vmatprep.mubr.f32.mxu0 %v2647
      %2957 = vmatmul.mubr.f32.gmra.mxu0 %v2645
      %v2958 = vpop.f32.mrf.mxu0
      %v2959 = vadd.f32 0.0, %v2958
      %v2960 = vpop.f32.mrf.mxu0
      %v2961 = vadd.f32 0.0, %v2960
      %2962 = vdwg.mxu0
      %2963 = vmatprep.subr.mxu0 %v2580
      %2964 = vmatpush1.msra.mxu0 %v2579
      %2965 = vmatprep.subr.mxu0 %v2576
      %2966 = vmatpush1.msra.mxu0 %v2575
      %2967 = vmatprep.subr.mxu0 %v2572
      %2968 = vmatpush1.msra.mxu0 %v2571
      %2969 = vmatprep.subr.mxu0 %v2568
      %2970 = vmatpush1.msra.mxu0 %v2567
      %2971 = vmatprep.subr.mxu0 %v2564
      %2972 = vmatpush1.msra.mxu0 %v2563
      %2973 = vmatprep.subr.mxu0 %v2560
      %2974 = vmatpush1.msra.mxu0 %v2559
      %2975 = vmatprep.subr.mxu0 %v2556
      %2976 = vmatpush1.msra.mxu0 %v2555
      %2977 = vmatprep.subr.mxu0 %v2552
      %2978 = vmatpush1.msra.mxu0 %v2551
      %2979 = vmatprep.subr.mxu0 %v2548
      %2980 = vmatpush1.msra.mxu0 %v2547
      %2981 = vmatprep.subr.mxu0 %v2544
      %2982 = vmatpush1.msra.mxu0 %v2543
      %2983 = vmatprep.subr.mxu0 %v2540
      %2984 = vmatpush1.msra.mxu0 %v2539
      %2985 = vmatprep.subr.mxu0 %v2536
      %2986 = vmatpush1.msra.mxu0 %v2535
      %2987 = vmatprep.subr.mxu0 %v2532
      %2988 = vmatpush1.msra.mxu0 %v2531
      %2989 = vmatprep.subr.mxu0 %v2528
      %2990 = vmatpush1.msra.mxu0 %v2527
      %2991 = vmatprep.subr.mxu0 %v2524
      %2992 = vmatpush1.msra.mxu0 %v2523
      %2993 = vmatprep.subr.mxu0 %v2520
      %2994 = vmatpush1.msra.mxu0 %v2519
      %2995 = vmatprep.subr.mxu0 0.0
      %2996 = vmatpush2.msra.mxu0 0.0
      %2997 = vmatprep.subr.mxu0 0.0
      %2998 = vmatpush2.msra.mxu0 0.0
      %2999 = vmatprep.subr.mxu0 0.0
      %3000 = vmatpush2.msra.mxu0 0.0
      %3001 = vmatprep.subr.mxu0 0.0
      %3002 = vmatpush2.msra.mxu0 0.0
      %3003 = vmatprep.subr.mxu0 0.0
      %3004 = vmatpush2.msra.mxu0 0.0
      %3005 = vmatprep.subr.mxu0 0.0
      %3006 = vmatpush2.msra.mxu0 0.0
      %3007 = vmatprep.subr.mxu0 0.0
      %3008 = vmatpush2.msra.mxu0 0.0
      %3009 = vmatprep.subr.mxu0 %v2616
      %3010 = vmatpush2.msra.mxu0 %v2615
      %3011 = vmatprep.subr.mxu0 %v2612
      %3012 = vmatpush2.msra.mxu0 %v2611
      %3013 = vmatprep.subr.mxu0 %v2608
      %3014 = vmatpush2.msra.mxu0 %v2607
      %3015 = vmatprep.subr.mxu0 %v2604
      %3016 = vmatpush2.msra.mxu0 %v2603
      %3017 = vmatprep.subr.mxu0 %v2600
      %3018 = vmatpush2.msra.mxu0 %v2599
      %3019 = vmatprep.subr.mxu0 %v2596
      %3020 = vmatpush2.msra.mxu0 %v2595
      %3021 = vmatprep.subr.mxu0 %v2592
      %3022 = vmatpush2.msra.mxu0 %v2591
      %3023 = vmatprep.subr.mxu0 %v2588
      %3024 = vmatpush2.msra.mxu0 %v2587
      %3025 = vmatprep.subr.mxu0 %v2584
      %3026 = vmatpush2.msra.mxu0 %v2583
      %3027 = vmatprep.mubr.f32.mxu0 %v2668
      %3028 = vmatmul.mubr.f32.gmra.mxu0 %v2625
      %v3029 = vpop.f32.mrf.mxu0
      %v3030 = vadd.f32 %v2935, %v3029
      %v3031 = vpop.f32.mrf.mxu0
      %v3032 = vadd.f32 %v2937, %v3031
      %3033 = vmatprep.mubr.f32.mxu0 %v2670
      %3034 = vmatmul.mubr.f32.gmra.mxu0 %v2634
      %v3035 = vpop.f32.mrf.mxu0
      %v3036 = vadd.f32 %v2941, %v3035
      %v3037 = vpop.f32.mrf.mxu0
      %v3038 = vadd.f32 %v2943, %v3037
      %3039 = vmatprep.mubr.f32.mxu0 %v2672
      %3040 = vmatmul.mubr.f32.gmra.mxu0 %v2642
      %v3041 = vpop.f32.mrf.mxu0
      %v3042 = vadd.f32 %v2947, %v3041
      %v3043 = vpop.f32.mrf.mxu0
      %v3044 = vadd.f32 %v2949, %v3043
      %3045 = vmatprep.mubr.f32.mxu0 %v2674
      %3046 = vmatmul.mubr.f32.gmra.mxu0 %v2650
      %v3047 = vpop.f32.mrf.mxu0
      %v3048 = vadd.f32 %v2953, %v3047
      %v3049 = vpop.f32.mrf.mxu0
      %v3050 = vadd.f32 %v2955, %v3049
      %3051 = vmatprep.mubr.f32.mxu0 %v2676
      %3052 = vmatmul.mubr.f32.gmra.mxu0 %v2649
      %v3053 = vpop.f32.mrf.mxu0
      %v3054 = vadd.f32 %v2959, %v3053
      %v3055 = vpop.f32.mrf.mxu0
      %v3056 = vadd.f32 %v2961, %v3055
      %3057 = vdwg.mxu0
      %v3058 = vadd.f32 %v2170, %v2840
      %v3059 = vadd.f32 %v2172, %v2842
      %v3060 = vadd.f32 %v2360, %v3030
      %v3061 = vadd.f32 %v2362, %v3032
      %v3062 = vadd.f32 %v2176, %v2846
      %v3063 = vadd.f32 %v2178, %v2848
      %v3064 = vadd.f32 %v2366, %v3036
      %v3065 = vadd.f32 %v2368, %v3038
      %v3066 = vadd.f32 %v2182, %v2852
      %v3067 = vadd.f32 %v2184, %v2854
      %v3068 = vadd.f32 %v2372, %v3042
      %v3069 = vadd.f32 %v2374, %v3044
      %v3070 = vadd.f32 %v2188, %v2858
      %v3071 = vadd.f32 %v2190, %v2860
      %v3072 = vadd.f32 %v2378, %v3048
      %v3073 = vadd.f32 %v2380, %v3050
      %v3074 = vadd.f32 %v2194, %v2864
      %v3075 = vadd.f32 %v2196, %v2866
      %v3076 = vadd.f32 %v2384, %v3054
      %v3077 = vadd.f32 %v2386, %v3056
      %v3078 = vld [vmem:[%s4] sm:$0xf]
      %v3080 = vlaneseq
      %v3081 = vshrl.u32 %v3080, 7
      %v3082 = vsub.s32 0, %v3081
      %v3083 = vrot.slane %v3078, %v3082
      %v3084 = vlaneseq
      %v3085 = vshrl.u32 %v3084, 7
      %v3086 = vsub.s32 1, %v3085
      %v3087 = vrot.slane %v3078, %v3086
      %v3088 = vlaneseq
      %v3089 = vshrl.u32 %v3088, 7
      %v3090 = vsub.s32 2, %v3089
      %v3091 = vrot.slane %v3078, %v3090
      %v3092 = vlaneseq
      %v3093 = vshrl.u32 %v3092, 7
      %v3094 = vsub.s32 3, %v3093
      %v3095 = vrot.slane %v3078, %v3094
      %v3100 = vadd.f32 %v3058, %v3083
      %v3101 = vadd.f32 %v3059, %v3087
      %v3102 = vadd.f32 %v3060, %v3091
      %v3103 = vadd.f32 %v3061, %v3095
      %v3104 = vadd.f32 %v3062, %v3083
      %v3105 = vadd.f32 %v3063, %v3087
      %v3106 = vadd.f32 %v3064, %v3091
      %v3107 = vadd.f32 %v3065, %v3095
      %v3108 = vadd.f32 %v3066, %v3083
      %v3109 = vadd.f32 %v3067, %v3087
      %v3110 = vadd.f32 %v3068, %v3091
      %v3111 = vadd.f32 %v3069, %v3095
      %v3112 = vadd.f32 %v3070, %v3083
      %v3113 = vadd.f32 %v3071, %v3087
      %v3114 = vadd.f32 %v3072, %v3091
      %v3115 = vadd.f32 %v3073, %v3095
      %v3116 = vadd.f32 %v3074, %v3083
      %v3117 = vadd.f32 %v3075, %v3087
      %v3118 = vadd.f32 %v3076, %v3091
      %v3119 = vadd.f32 %v3077, %v3095
      %v3120 = vmax.f32 %v3100, 0.0
      %v3121 = vmax.f32 %v3101, 0.0
      %v3122 = vmax.f32 %v3102, 0.0
      %v3123 = vmax.f32 %v3103, 0.0
      %v3124 = vmax.f32 %v3104, 0.0
      %v3125 = vmax.f32 %v3105, 0.0
      %v3126 = vmax.f32 %v3106, 0.0
      %v3127 = vmax.f32 %v3107, 0.0
      %v3128 = vmax.f32 %v3108, 0.0
      %v3129 = vmax.f32 %v3109, 0.0
      %v3130 = vmax.f32 %v3110, 0.0
      %v3131 = vmax.f32 %v3111, 0.0
      %v3132 = vmax.f32 %v3112, 0.0
      %v3133 = vmax.f32 %v3113, 0.0
      %v3134 = vmax.f32 %v3114, 0.0
      %v3135 = vmax.f32 %v3115, 0.0
      %v3136 = vmax.f32 %v3116, 0.0
      %v3137 = vmax.f32 %v3117, 0.0
      %v3138 = vmax.f32 %v3118, 0.0
      %v3139 = vmax.f32 %v3119, 0.0
      %v3160 = vcombine.low %v3120, %v3121
      %v3161 = vcombine.high %v3120, %v3121
      %v3162 = vcombine.low %v3122, %v3123
      %v3163 = vcombine.high %v3122, %v3123
      %v3165 = vunpack.c.l.s4 1966171168
      %v3166 = vunpack.c.0.s8 %v3165
      %v3167 = vlaneseq
      %v3168 = vshrl.u32 %v3167, 7
      %v3169 = vsub.s32 %v3166, %v3168
      %v3170 = vrot.slane %v3160, %v3169
      %v3172 = vunpack.c.l.s4 1966171168
      %v3173 = vunpack.c.0.s8 %v3172
      %v3174 = vlaneseq
      %v3175 = vshrl.u32 %v3174, 7
      %v3176 = vsub.s32 %v3173, %v3175
      %v3177 = vrot.slane %v3161, %v3176
      %v3179 = vunpack.c.l.s4 1966171168
      %v3180 = vunpack.c.0.s8 %v3179
      %v3181 = vlaneseq
      %v3182 = vshrl.u32 %v3181, 7
      %v3183 = vsub.s32 %v3180, %v3182
      %v3184 = vrot.slane %v3162, %v3183
      %v3186 = vunpack.c.l.s4 1966171168
      %v3187 = vunpack.c.0.s8 %v3186
      %v3188 = vlaneseq
      %v3189 = vshrl.u32 %v3188, 7
      %v3190 = vsub.s32 %v3187, %v3189
      %v3191 = vrot.slane %v3163, %v3190
      %v3192 = vcombine.low %v3170, %v3184
      %v3193 = vcombine.high %v3170, %v3184
      %v3194 = vcombine.low %v3177, %v3191
      %v3195 = vcombine.high %v3177, %v3191
      %v3197 = vunpack.c.l.s4 1966171168
      %v3198 = vunpack.c.0.s8 %v3197
      %v3199 = vlaneseq
      %v3200 = vshrl.u32 %v3199, 7
      %v3201 = vsub.s32 %v3198, %v3200
      %v3202 = vrot.slane %v3192, %v3201
      %v3204 = vunpack.c.l.s4 1966171168
      %v3205 = vunpack.c.0.s8 %v3204
      %v3206 = vlaneseq
      %v3207 = vshrl.u32 %v3206, 7
      %v3208 = vsub.s32 %v3205, %v3207
      %v3209 = vrot.slane %v3194, %v3208
      %v3211 = vunpack.c.l.s4 1966171168
      %v3212 = vunpack.c.0.s8 %v3211
      %v3213 = vlaneseq
      %v3214 = vshrl.u32 %v3213, 7
      %v3215 = vsub.s32 %v3212, %v3214
      %v3216 = vrot.slane %v3193, %v3215
      %v3218 = vunpack.c.l.s4 1966171168
      %v3219 = vunpack.c.0.s8 %v3218
      %v3220 = vlaneseq
      %v3221 = vshrl.u32 %v3220, 7
      %v3222 = vsub.s32 %v3219, %v3221
      %v3223 = vrot.slane %v3195, %v3222
      %v3224 = vcombine.high %v3202, %v3202
      %v3225 = vcombine.high %v3209, %v3209
      %v3226 = vcombine.high %v3216, %v3216
      %v3227 = vcombine.high %v3223, %v3223
      %v3228 = vcombine.low %v3124, %v3125
      %v3229 = vcombine.high %v3124, %v3125
      %v3230 = vcombine.low %v3126, %v3127
      %v3231 = vcombine.high %v3126, %v3127
      %v3233 = vunpack.c.l.s4 1966171168
      %v3234 = vunpack.c.0.s8 %v3233
      %v3235 = vlaneseq
      %v3236 = vshrl.u32 %v3235, 7
      %v3237 = vsub.s32 %v3234, %v3236
      %v3238 = vrot.slane %v3228, %v3237
      %v3240 = vunpack.c.l.s4 1966171168
      %v3241 = vunpack.c.0.s8 %v3240
      %v3242 = vlaneseq
      %v3243 = vshrl.u32 %v3242, 7
      %v3244 = vsub.s32 %v3241, %v3243
      %v3245 = vrot.slane %v3229, %v3244
      %v3247 = vunpack.c.l.s4 1966171168
      %v3248 = vunpack.c.0.s8 %v3247
      %v3249 = vlaneseq
      %v3250 = vshrl.u32 %v3249, 7
      %v3251 = vsub.s32 %v3248, %v3250
      %v3252 = vrot.slane %v3230, %v3251
      %v3254 = vunpack.c.l.s4 1966171168
      %v3255 = vunpack.c.0.s8 %v3254
      %v3256 = vlaneseq
      %v3257 = vshrl.u32 %v3256, 7
      %v3258 = vsub.s32 %v3255, %v3257
      %v3259 = vrot.slane %v3231, %v3258
      %v3260 = vcombine.low %v3238, %v3252
      %v3261 = vcombine.high %v3238, %v3252
      %v3262 = vcombine.low %v3245, %v3259
      %v3263 = vcombine.high %v3245, %v3259
      %v3265 = vunpack.c.l.s4 1966171168
      %v3266 = vunpack.c.0.s8 %v3265
      %v3267 = vlaneseq
      %v3268 = vshrl.u32 %v3267, 7
      %v3269 = vsub.s32 %v3266, %v3268
      %v3270 = vrot.slane %v3260, %v3269
      %v3272 = vunpack.c.l.s4 1966171168
      %v3273 = vunpack.c.0.s8 %v3272
      %v3274 = vlaneseq
      %v3275 = vshrl.u32 %v3274, 7
      %v3276 = vsub.s32 %v3273, %v3275
      %v3277 = vrot.slane %v3262, %v3276
      %v3279 = vunpack.c.l.s4 1966171168
      %v3280 = vunpack.c.0.s8 %v3279
      %v3281 = vlaneseq
      %v3282 = vshrl.u32 %v3281, 7
      %v3283 = vsub.s32 %v3280, %v3282
      %v3284 = vrot.slane %v3261, %v3283
      %v3286 = vunpack.c.l.s4 1966171168
      %v3287 = vunpack.c.0.s8 %v3286
      %v3288 = vlaneseq
      %v3289 = vshrl.u32 %v3288, 7
      %v3290 = vsub.s32 %v3287, %v3289
      %v3291 = vrot.slane %v3263, %v3290
      %v3292 = vcombine.high %v3270, %v3270
      %v3293 = vcombine.high %v3277, %v3277
      %v3294 = vcombine.high %v3284, %v3284
      %v3295 = vcombine.high %v3291, %v3291
      %v3296 = vcombine.low %v3128, %v3129
      %v3297 = vcombine.high %v3128, %v3129
      %v3298 = vcombine.low %v3130, %v3131
      %v3299 = vcombine.high %v3130, %v3131
      %v3301 = vunpack.c.l.s4 1966171168
      %v3302 = vunpack.c.0.s8 %v3301
      %v3303 = vlaneseq
      %v3304 = vshrl.u32 %v3303, 7
      %v3305 = vsub.s32 %v3302, %v3304
      %v3306 = vrot.slane %v3296, %v3305
      %v3308 = vunpack.c.l.s4 1966171168
      %v3309 = vunpack.c.0.s8 %v3308
      %v3310 = vlaneseq
      %v3311 = vshrl.u32 %v3310, 7
      %v3312 = vsub.s32 %v3309, %v3311
      %v3313 = vrot.slane %v3297, %v3312
      %v3315 = vunpack.c.l.s4 1966171168
      %v3316 = vunpack.c.0.s8 %v3315
      %v3317 = vlaneseq
      %v3318 = vshrl.u32 %v3317, 7
      %v3319 = vsub.s32 %v3316, %v3318
      %v3320 = vrot.slane %v3298, %v3319
      %v3322 = vunpack.c.l.s4 1966171168
      %v3323 = vunpack.c.0.s8 %v3322
      %v3324 = vlaneseq
      %v3325 = vshrl.u32 %v3324, 7
      %v3326 = vsub.s32 %v3323, %v3325
      %v3327 = vrot.slane %v3299, %v3326
      %v3328 = vcombine.low %v3306, %v3320
      %v3329 = vcombine.high %v3306, %v3320
      %v3330 = vcombine.low %v3313, %v3327
      %v3331 = vcombine.high %v3313, %v3327
      %v3333 = vunpack.c.l.s4 1966171168
      %v3334 = vunpack.c.0.s8 %v3333
      %v3335 = vlaneseq
      %v3336 = vshrl.u32 %v3335, 7
      %v3337 = vsub.s32 %v3334, %v3336
      %v3338 = vrot.slane %v3328, %v3337
      %v3340 = vunpack.c.l.s4 1966171168
      %v3341 = vunpack.c.0.s8 %v3340
      %v3342 = vlaneseq
      %v3343 = vshrl.u32 %v3342, 7
      %v3344 = vsub.s32 %v3341, %v3343
      %v3345 = vrot.slane %v3330, %v3344
      %v3347 = vunpack.c.l.s4 1966171168
      %v3348 = vunpack.c.0.s8 %v3347
      %v3349 = vlaneseq
      %v3350 = vshrl.u32 %v3349, 7
      %v3351 = vsub.s32 %v3348, %v3350
      %v3352 = vrot.slane %v3329, %v3351
      %v3354 = vunpack.c.l.s4 1966171168
      %v3355 = vunpack.c.0.s8 %v3354
      %v3356 = vlaneseq
      %v3357 = vshrl.u32 %v3356, 7
      %v3358 = vsub.s32 %v3355, %v3357
      %v3359 = vrot.slane %v3331, %v3358
      %v3360 = vcombine.high %v3338, %v3338
      %v3361 = vcombine.high %v3345, %v3345
      %v3362 = vcombine.high %v3352, %v3352
      %v3363 = vcombine.high %v3359, %v3359
      %v3364 = vcombine.low %v3132, %v3133
      %v3365 = vcombine.high %v3132, %v3133
      %v3366 = vcombine.low %v3134, %v3135
      %v3367 = vcombine.high %v3134, %v3135
      %v3369 = vunpack.c.l.s4 1966171168
      %v3370 = vunpack.c.0.s8 %v3369
      %v3371 = vlaneseq
      %v3372 = vshrl.u32 %v3371, 7
      %v3373 = vsub.s32 %v3370, %v3372
      %v3374 = vrot.slane %v3364, %v3373
      %v3376 = vunpack.c.l.s4 1966171168
      %v3377 = vunpack.c.0.s8 %v3376
      %v3378 = vlaneseq
      %v3379 = vshrl.u32 %v3378, 7
      %v3380 = vsub.s32 %v3377, %v3379
      %v3381 = vrot.slane %v3365, %v3380
      %v3383 = vunpack.c.l.s4 1966171168
      %v3384 = vunpack.c.0.s8 %v3383
      %v3385 = vlaneseq
      %v3386 = vshrl.u32 %v3385, 7
      %v3387 = vsub.s32 %v3384, %v3386
      %v3388 = vrot.slane %v3366, %v3387
      %v3390 = vunpack.c.l.s4 1966171168
      %v3391 = vunpack.c.0.s8 %v3390
      %v3392 = vlaneseq
      %v3393 = vshrl.u32 %v3392, 7
      %v3394 = vsub.s32 %v3391, %v3393
      %v3395 = vrot.slane %v3367, %v3394
      %v3396 = vcombine.low %v3374, %v3388
      %v3397 = vcombine.high %v3374, %v3388
      %v3398 = vcombine.low %v3381, %v3395
      %v3399 = vcombine.high %v3381, %v3395
      %v3401 = vunpack.c.l.s4 1966171168
      %v3402 = vunpack.c.0.s8 %v3401
      %v3403 = vlaneseq
      %v3404 = vshrl.u32 %v3403, 7
      %v3405 = vsub.s32 %v3402, %v3404
      %v3406 = vrot.slane %v3396, %v3405
      %v3408 = vunpack.c.l.s4 1966171168
      %v3409 = vunpack.c.0.s8 %v3408
      %v3410 = vlaneseq
      %v3411 = vshrl.u32 %v3410, 7
      %v3412 = vsub.s32 %v3409, %v3411
      %v3413 = vrot.slane %v3398, %v3412
      %v3415 = vunpack.c.l.s4 1966171168
      %v3416 = vunpack.c.0.s8 %v3415
      %v3417 = vlaneseq
      %v3418 = vshrl.u32 %v3417, 7
      %v3419 = vsub.s32 %v3416, %v3418
      %v3420 = vrot.slane %v3397, %v3419
      %v3422 = vunpack.c.l.s4 1966171168
      %v3423 = vunpack.c.0.s8 %v3422
      %v3424 = vlaneseq
      %v3425 = vshrl.u32 %v3424, 7
      %v3426 = vsub.s32 %v3423, %v3425
      %v3427 = vrot.slane %v3399, %v3426
      %v3428 = vcombine.high %v3406, %v3406
      %v3429 = vcombine.high %v3413, %v3413
      %v3430 = vcombine.high %v3420, %v3420
      %v3431 = vcombine.high %v3427, %v3427
      %v3432 = vcombine.low %v3136, %v3137
      %v3433 = vcombine.low %v3138, %v3139
      %v3435 = vunpack.c.l.s4 1966171168
      %v3436 = vunpack.c.0.s8 %v3435
      %v3437 = vlaneseq
      %v3438 = vshrl.u32 %v3437, 7
      %v3439 = vsub.s32 %v3436, %v3438
      %v3440 = vrot.slane %v3432, %v3439
      %v3442 = vunpack.c.l.s4 1966171168
      %v3443 = vunpack.c.0.s8 %v3442
      %v3444 = vlaneseq
      %v3445 = vshrl.u32 %v3444, 7
      %v3446 = vsub.s32 %v3443, %v3445
      %v3447 = vrot.slane %v3433, %v3446
      %v3448 = vcombine.low %v3440, %v3447
      %v3449 = vcombine.high %v3440, %v3447
      %v3451 = vunpack.c.l.s4 1966171168
      %v3452 = vunpack.c.0.s8 %v3451
      %v3453 = vlaneseq
      %v3454 = vshrl.u32 %v3453, 7
      %v3455 = vsub.s32 %v3452, %v3454
      %v3456 = vrot.slane %v3448, %v3455
      %v3458 = vunpack.c.l.s4 1966171168
      %v3459 = vunpack.c.0.s8 %v3458
      %v3460 = vlaneseq
      %v3461 = vshrl.u32 %v3460, 7
      %v3462 = vsub.s32 %v3459, %v3461
      %v3463 = vrot.slane %v3449, %v3462
      %v3464 = vcombine.high %v3456, %v3456
      %v3465 = vcombine.high %v3463, %v3463
      %v3466 = vcombine.low %v3202, %v3216
      %v3468 = vunpack.c.l.s4 1966171168
      %v3469 = vunpack.c.0.s8 %v3468
      %v3470 = vlaneseq
      %v3471 = vshrl.u32 %v3470, 7
      %v3472 = vsub.s32 %v3469, %v3471
      %v3473 = vrot.slane %v3466, %v3472
      %v3475 = vunpack.c.l.s4 1966171168
      %v3476 = vunpack.c.0.s8 %v3475
      %v3477 = vlaneseq
      %v3478 = vshrl.u32 %v3477, 7
      %v3479 = vsub.s32 %v3476, %v3478
      %v3480 = vrot.slane %v3224, %v3479
      %v3481 = vcombine.low %v3473, %v3480
      %v3482 = vcombine.high %v3473, %v3480
      %v3484 = vunpack.c.l.s4 1966171168
      %v3485 = vunpack.c.0.s8 %v3484
      %v3486 = vlaneseq
      %v3487 = vshrl.u32 %v3486, 7
      %v3488 = vsub.s32 %v3485, %v3487
      %v3489 = vrot.slane %v3481, %v3488
      %v3491 = vunpack.c.l.s4 1966171168
      %v3492 = vunpack.c.0.s8 %v3491
      %v3493 = vlaneseq
      %v3494 = vshrl.u32 %v3493, 7
      %v3495 = vsub.s32 %v3492, %v3494
      %v3496 = vrot.slane %v3482, %v3495
      %v3497 = vcombine.high %v3489, %v3489
      %v3498 = vcombine.high %v3496, %v3496
      %v3499 = vcombine.low %v3226, %v3209
      %v3501 = vunpack.c.l.s4 1966171168
      %v3502 = vunpack.c.0.s8 %v3501
      %v3503 = vlaneseq
      %v3504 = vshrl.u32 %v3503, 7
      %v3505 = vsub.s32 %v3502, %v3504
      %v3506 = vrot.slane %v3499, %v3505
      %v3508 = vunpack.c.l.s4 1966171168
      %v3509 = vunpack.c.0.s8 %v3508
      %v3510 = vlaneseq
      %v3511 = vshrl.u32 %v3510, 7
      %v3512 = vsub.s32 %v3509, %v3511
      %v3513 = vrot.slane %v3223, %v3512
      %v3514 = vcombine.low %v3506, %v3513
      %v3515 = vcombine.high %v3506, %v3513
      %v3517 = vunpack.c.l.s4 1966171168
      %v3518 = vunpack.c.0.s8 %v3517
      %v3519 = vlaneseq
      %v3520 = vshrl.u32 %v3519, 7
      %v3521 = vsub.s32 %v3518, %v3520
      %v3522 = vrot.slane %v3514, %v3521
      %v3524 = vunpack.c.l.s4 1966171168
      %v3525 = vunpack.c.0.s8 %v3524
      %v3526 = vlaneseq
      %v3527 = vshrl.u32 %v3526, 7
      %v3528 = vsub.s32 %v3525, %v3527
      %v3529 = vrot.slane %v3515, %v3528
      %v3530 = vcombine.high %v3522, %v3522
      %v3531 = vcombine.high %v3529, %v3529
      %v3532 = vcombine.low %v3225, %v3227
      %v3534 = vunpack.c.l.s4 1966171168
      %v3535 = vunpack.c.0.s8 %v3534
      %v3536 = vlaneseq
      %v3537 = vshrl.u32 %v3536, 7
      %v3538 = vsub.s32 %v3535, %v3537
      %v3539 = vrot.slane %v3532, %v3538
      %v3541 = vunpack.c.l.s4 1966171168
      %v3542 = vunpack.c.0.s8 %v3541
      %v3543 = vlaneseq
      %v3544 = vshrl.u32 %v3543, 7
      %v3545 = vsub.s32 %v3542, %v3544
      %v3546 = vrot.slane %v3270, %v3545
      %v3547 = vcombine.low %v3539, %v3546
      %v3548 = vcombine.high %v3539, %v3546
      %v3550 = vunpack.c.l.s4 1966171168
      %v3551 = vunpack.c.0.s8 %v3550
      %v3552 = vlaneseq
      %v3553 = vshrl.u32 %v3552, 7
      %v3554 = vsub.s32 %v3551, %v3553
      %v3555 = vrot.slane %v3547, %v3554
      %v3557 = vunpack.c.l.s4 1966171168
      %v3558 = vunpack.c.0.s8 %v3557
      %v3559 = vlaneseq
      %v3560 = vshrl.u32 %v3559, 7
      %v3561 = vsub.s32 %v3558, %v3560
      %v3562 = vrot.slane %v3548, %v3561
      %v3563 = vcombine.high %v3555, %v3555
      %v3564 = vcombine.high %v3562, %v3562
      %v3565 = vcombine.low %v3284, %v3292
      %v3567 = vunpack.c.l.s4 1966171168
      %v3568 = vunpack.c.0.s8 %v3567
      %v3569 = vlaneseq
      %v3570 = vshrl.u32 %v3569, 7
      %v3571 = vsub.s32 %v3568, %v3570
      %v3572 = vrot.slane %v3565, %v3571
      %v3574 = vunpack.c.l.s4 1966171168
      %v3575 = vunpack.c.0.s8 %v3574
      %v3576 = vlaneseq
      %v3577 = vshrl.u32 %v3576, 7
      %v3578 = vsub.s32 %v3575, %v3577
      %v3579 = vrot.slane %v3294, %v3578
      %v3580 = vcombine.low %v3572, %v3579
      %v3581 = vcombine.high %v3572, %v3579
      %v3583 = vunpack.c.l.s4 1966171168
      %v3584 = vunpack.c.0.s8 %v3583
      %v3585 = vlaneseq
      %v3586 = vshrl.u32 %v3585, 7
      %v3587 = vsub.s32 %v3584, %v3586
      %v3588 = vrot.slane %v3580, %v3587
      %v3590 = vunpack.c.l.s4 1966171168
      %v3591 = vunpack.c.0.s8 %v3590
      %v3592 = vlaneseq
      %v3593 = vshrl.u32 %v3592, 7
      %v3594 = vsub.s32 %v3591, %v3593
      %v3595 = vrot.slane %v3581, %v3594
      %v3596 = vcombine.high %v3588, %v3588
      %v3597 = vcombine.high %v3595, %v3595
      %v3598 = vcombine.low %v3277, %v3291
      %v3600 = vunpack.c.l.s4 1966171168
      %v3601 = vunpack.c.0.s8 %v3600
      %v3602 = vlaneseq
      %v3603 = vshrl.u32 %v3602, 7
      %v3604 = vsub.s32 %v3601, %v3603
      %v3605 = vrot.slane %v3598, %v3604
      %v3607 = vunpack.c.l.s4 1966171168
      %v3608 = vunpack.c.0.s8 %v3607
      %v3609 = vlaneseq
      %v3610 = vshrl.u32 %v3609, 7
      %v3611 = vsub.s32 %v3608, %v3610
      %v3612 = vrot.slane %v3293, %v3611
      %v3613 = vcombine.low %v3605, %v3612
      %v3614 = vcombine.high %v3605, %v3612
      %v3616 = vunpack.c.l.s4 1966171168
      %v3617 = vunpack.c.0.s8 %v3616
      %v3618 = vlaneseq
      %v3619 = vshrl.u32 %v3618, 7
      %v3620 = vsub.s32 %v3617, %v3619
      %v3621 = vrot.slane %v3613, %v3620
      %v3623 = vunpack.c.l.s4 1966171168
      %v3624 = vunpack.c.0.s8 %v3623
      %v3625 = vlaneseq
      %v3626 = vshrl.u32 %v3625, 7
      %v3627 = vsub.s32 %v3624, %v3626
      %v3628 = vrot.slane %v3614, %v3627
      %v3629 = vcombine.high %v3621, %v3621
      %v3630 = vcombine.high %v3628, %v3628
      %v3631 = vcombine.low %v3295, %v3338
      %v3633 = vunpack.c.l.s4 1966171168
      %v3634 = vunpack.c.0.s8 %v3633
      %v3635 = vlaneseq
      %v3636 = vshrl.u32 %v3635, 7
      %v3637 = vsub.s32 %v3634, %v3636
      %v3638 = vrot.slane %v3631, %v3637
      %v3640 = vunpack.c.l.s4 1966171168
      %v3641 = vunpack.c.0.s8 %v3640
      %v3642 = vlaneseq
      %v3643 = vshrl.u32 %v3642, 7
      %v3644 = vsub.s32 %v3641, %v3643
      %v3645 = vrot.slane %v3352, %v3644
      %v3646 = vcombine.low %v3638, %v3645
      %v3647 = vcombine.high %v3638, %v3645
      %v3649 = vunpack.c.l.s4 1966171168
      %v3650 = vunpack.c.0.s8 %v3649
      %v3651 = vlaneseq
      %v3652 = vshrl.u32 %v3651, 7
      %v3653 = vsub.s32 %v3650, %v3652
      %v3654 = vrot.slane %v3646, %v3653
      %v3656 = vunpack.c.l.s4 1966171168
      %v3657 = vunpack.c.0.s8 %v3656
      %v3658 = vlaneseq
      %v3659 = vshrl.u32 %v3658, 7
      %v3660 = vsub.s32 %v3657, %v3659
      %v3661 = vrot.slane %v3647, %v3660
      %v3662 = vcombine.high %v3654, %v3654
      %v3663 = vcombine.high %v3661, %v3661
      %v3664 = vcombine.low %v3360, %v3362
      %v3666 = vunpack.c.l.s4 1966171168
      %v3667 = vunpack.c.0.s8 %v3666
      %v3668 = vlaneseq
      %v3669 = vshrl.u32 %v3668, 7
      %v3670 = vsub.s32 %v3667, %v3669
      %v3671 = vrot.slane %v3664, %v3670
      %v3673 = vunpack.c.l.s4 1966171168
      %v3674 = vunpack.c.0.s8 %v3673
      %v3675 = vlaneseq
      %v3676 = vshrl.u32 %v3675, 7
      %v3677 = vsub.s32 %v3674, %v3676
      %v3678 = vrot.slane %v3345, %v3677
      %v3679 = vcombine.low %v3671, %v3678
      %v3680 = vcombine.high %v3671, %v3678
      %v3682 = vunpack.c.l.s4 1966171168
      %v3683 = vunpack.c.0.s8 %v3682
      %v3684 = vlaneseq
      %v3685 = vshrl.u32 %v3684, 7
      %v3686 = vsub.s32 %v3683, %v3685
      %v3687 = vrot.slane %v3679, %v3686
      %v3689 = vunpack.c.l.s4 1966171168
      %v3690 = vunpack.c.0.s8 %v3689
      %v3691 = vlaneseq
      %v3692 = vshrl.u32 %v3691, 7
      %v3693 = vsub.s32 %v3690, %v3692
      %v3694 = vrot.slane %v3680, %v3693
      %v3695 = vcombine.high %v3687, %v3687
      %v3696 = vcombine.high %v3694, %v3694
      %v3697 = vcombine.low %v3359, %v3361
      %v3699 = vunpack.c.l.s4 1966171168
      %v3700 = vunpack.c.0.s8 %v3699
      %v3701 = vlaneseq
      %v3702 = vshrl.u32 %v3701, 7
      %v3703 = vsub.s32 %v3700, %v3702
      %v3704 = vrot.slane %v3697, %v3703
      %v3706 = vunpack.c.l.s4 1966171168
      %v3707 = vunpack.c.0.s8 %v3706
      %v3708 = vlaneseq
      %v3709 = vshrl.u32 %v3708, 7
      %v3710 = vsub.s32 %v3707, %v3709
      %v3711 = vrot.slane %v3363, %v3710
      %v3712 = vcombine.low %v3704, %v3711
      %v3713 = vcombine.high %v3704, %v3711
      %v3715 = vunpack.c.l.s4 1966171168
      %v3716 = vunpack.c.0.s8 %v3715
      %v3717 = vlaneseq
      %v3718 = vshrl.u32 %v3717, 7
      %v3719 = vsub.s32 %v3716, %v3718
      %v3720 = vrot.slane %v3712, %v3719
      %v3722 = vunpack.c.l.s4 1966171168
      %v3723 = vunpack.c.0.s8 %v3722
      %v3724 = vlaneseq
      %v3725 = vshrl.u32 %v3724, 7
      %v3726 = vsub.s32 %v3723, %v3725
      %v3727 = vrot.slane %v3713, %v3726
      %v3728 = vcombine.high %v3720, %v3720
      %v3729 = vcombine.high %v3727, %v3727
      %v3730 = vcombine.low %v3406, %v3420
      %v3732 = vunpack.c.l.s4 1966171168
      %v3733 = vunpack.c.0.s8 %v3732
      %v3734 = vlaneseq
      %v3735 = vshrl.u32 %v3734, 7
      %v3736 = vsub.s32 %v3733, %v3735
      %v3737 = vrot.slane %v3730, %v3736
      %v3739 = vunpack.c.l.s4 1966171168
      %v3740 = vunpack.c.0.s8 %v3739
      %v3741 = vlaneseq
      %v3742 = vshrl.u32 %v3741, 7
      %v3743 = vsub.s32 %v3740, %v3742
      %v3744 = vrot.slane %v3428, %v3743
      %v3745 = vcombine.low %v3737, %v3744
      %v3746 = vcombine.high %v3737, %v3744
      %v3748 = vunpack.c.l.s4 1966171168
      %v3749 = vunpack.c.0.s8 %v3748
      %v3750 = vlaneseq
      %v3751 = vshrl.u32 %v3750, 7
      %v3752 = vsub.s32 %v3749, %v3751
      %v3753 = vrot.slane %v3745, %v3752
      %v3755 = vunpack.c.l.s4 1966171168
      %v3756 = vunpack.c.0.s8 %v3755
      %v3757 = vlaneseq
      %v3758 = vshrl.u32 %v3757, 7
      %v3759 = vsub.s32 %v3756, %v3758
      %v3760 = vrot.slane %v3746, %v3759
      %v3761 = vcombine.high %v3753, %v3753
      %v3762 = vcombine.high %v3760, %v3760
      %v3763 = vcombine.low %v3430, %v3413
      %v3765 = vunpack.c.l.s4 1966171168
      %v3766 = vunpack.c.0.s8 %v3765
      %v3767 = vlaneseq
      %v3768 = vshrl.u32 %v3767, 7
      %v3769 = vsub.s32 %v3766, %v3768
      %v3770 = vrot.slane %v3763, %v3769
      %v3772 = vunpack.c.l.s4 1966171168
      %v3773 = vunpack.c.0.s8 %v3772
      %v3774 = vlaneseq
      %v3775 = vshrl.u32 %v3774, 7
      %v3776 = vsub.s32 %v3773, %v3775
      %v3777 = vrot.slane %v3427, %v3776
      %v3778 = vcombine.low %v3770, %v3777
      %v3779 = vcombine.high %v3770, %v3777
      %v3781 = vunpack.c.l.s4 1966171168
      %v3782 = vunpack.c.0.s8 %v3781
      %v3783 = vlaneseq
      %v3784 = vshrl.u32 %v3783, 7
      %v3785 = vsub.s32 %v3782, %v3784
      %v3786 = vrot.slane %v3778, %v3785
      %v3788 = vunpack.c.l.s4 1966171168
      %v3789 = vunpack.c.0.s8 %v3788
      %v3790 = vlaneseq
      %v3791 = vshrl.u32 %v3790, 7
      %v3792 = vsub.s32 %v3789, %v3791
      %v3793 = vrot.slane %v3779, %v3792
      %v3794 = vcombine.high %v3786, %v3786
      %v3795 = vcombine.high %v3793, %v3793
      %v3796 = vcombine.low %v3429, %v3431
      %v3798 = vunpack.c.l.s4 1966171168
      %v3799 = vunpack.c.0.s8 %v3798
      %v3800 = vlaneseq
      %v3801 = vshrl.u32 %v3800, 7
      %v3802 = vsub.s32 %v3799, %v3801
      %v3803 = vrot.slane %v3796, %v3802
      %v3805 = vunpack.c.l.s4 1966171168
      %v3806 = vunpack.c.0.s8 %v3805
      %v3807 = vlaneseq
      %v3808 = vshrl.u32 %v3807, 7
      %v3809 = vsub.s32 %v3806, %v3808
      %v3810 = vrot.slane %v3456, %v3809
      %v3811 = vcombine.low %v3803, %v3810
      %v3812 = vcombine.high %v3803, %v3810
      %v3814 = vunpack.c.l.s4 1966171168
      %v3815 = vunpack.c.0.s8 %v3814
      %v3816 = vlaneseq
      %v3817 = vshrl.u32 %v3816, 7
      %v3818 = vsub.s32 %v3815, %v3817
      %v3819 = vrot.slane %v3811, %v3818
      %v3821 = vunpack.c.l.s4 1966171168
      %v3822 = vunpack.c.0.s8 %v3821
      %v3823 = vlaneseq
      %v3824 = vshrl.u32 %v3823, 7
      %v3825 = vsub.s32 %v3822, %v3824
      %v3826 = vrot.slane %v3812, %v3825
      %v3827 = vcombine.high %v3819, %v3819
      %v3828 = vcombine.high %v3826, %v3826
      %v3829 = vcombine.low %v3463, %v3464
      %v3831 = vunpack.c.l.s4 1966171168
      %v3832 = vunpack.c.0.s8 %v3831
      %v3833 = vlaneseq
      %v3834 = vshrl.u32 %v3833, 7
      %v3835 = vsub.s32 %v3832, %v3834
      %v3836 = vrot.slane %v3829, %v3835
      %v3838 = vunpack.c.l.s4 1966171168
      %v3839 = vunpack.c.0.s8 %v3838
      %v3840 = vlaneseq
      %v3841 = vshrl.u32 %v3840, 7
      %v3842 = vsub.s32 %v3839, %v3841
      %v3843 = vrot.slane %v3465, %v3842
      %v3844 = vcombine.low %v3836, %v3843
      %v3845 = vcombine.high %v3836, %v3843
      %v3847 = vunpack.c.l.s4 1966171168
      %v3848 = vunpack.c.0.s8 %v3847
      %v3849 = vlaneseq
      %v3850 = vshrl.u32 %v3849, 7
      %v3851 = vsub.s32 %v3848, %v3850
      %v3852 = vrot.slane %v3844, %v3851
      %v3854 = vunpack.c.l.s4 1966171168
      %v3855 = vunpack.c.0.s8 %v3854
      %v3856 = vlaneseq
      %v3857 = vshrl.u32 %v3856, 7
      %v3858 = vsub.s32 %v3855, %v3857
      %v3859 = vrot.slane %v3845, %v3858
      %v3860 = vcombine.high %v3852, %v3852
      %v3861 = vcombine.high %v3859, %v3859
      %vm3910 = vcmask 1042432
      %v3911 = vsel %vm3910, %v3489, -inf
      %v3912 = vrot.slane %v3911, 4
      %v3913 = vmax.f32 %v3911, %v3912
      %v3914 = vrot.slane %v3913, 2
      %v3915 = vmax.f32 %v3913, %v3914
      %v3916 = vrot.slane %v3915, 1
      %v3917 = vmax.f32 %v3915, %v3916
      %v3918 = vsel %vm3910, %v3496, -inf
      %v3919 = vrot.slane %v3918, 4
      %v3920 = vmax.f32 %v3918, %v3919
      %v3921 = vrot.slane %v3920, 2
      %v3922 = vmax.f32 %v3920, %v3921
      %v3923 = vrot.slane %v3922, 1
      %v3924 = vmax.f32 %v3922, %v3923
      %v3925 = vsel %vm3910, %v3497, -inf
      %v3926 = vrot.slane %v3925, 4
      %v3927 = vmax.f32 %v3925, %v3926
      %v3928 = vrot.slane %v3927, 2
      %v3929 = vmax.f32 %v3927, %v3928
      %v3930 = vrot.slane %v3929, 1
      %v3931 = vmax.f32 %v3929, %v3930
      %vm3932 = vcmask 387072
      %v3933 = vsel %vm3932, %v3498, -inf
      %v3934 = vrot.slane %v3933, 4
      %v3935 = vmax.f32 %v3933, %v3934
      %v3936 = vrot.slane %v3935, 2
      %v3937 = vmax.f32 %v3935, %v3936
      %v3938 = vrot.slane %v3937, 1
      %v3939 = vmax.f32 %v3937, %v3938
      %v3940 = vsel %vm3910, %v3522, -inf
      %v3941 = vrot.slane %v3940, 4
      %v3942 = vmax.f32 %v3940, %v3941
      %v3943 = vrot.slane %v3942, 2
      %v3944 = vmax.f32 %v3942, %v3943
      %v3945 = vrot.slane %v3944, 1
      %v3946 = vmax.f32 %v3944, %v3945
      %v3947 = vsel %vm3910, %v3529, -inf
      %v3948 = vrot.slane %v3947, 4
      %v3949 = vmax.f32 %v3947, %v3948
      %v3950 = vrot.slane %v3949, 2
      %v3951 = vmax.f32 %v3949, %v3950
      %v3952 = vrot.slane %v3951, 1
      %v3953 = vmax.f32 %v3951, %v3952
      %v3954 = vsel %vm3910, %v3530, -inf
      %v3955 = vrot.slane %v3954, 4
      %v3956 = vmax.f32 %v3954, %v3955
      %v3957 = vrot.slane %v3956, 2
      %v3958 = vmax.f32 %v3956, %v3957
      %v3959 = vrot.slane %v3958, 1
      %v3960 = vmax.f32 %v3958, %v3959
      %v3961 = vsel %vm3932, %v3531, -inf
      %v3962 = vrot.slane %v3961, 4
      %v3963 = vmax.f32 %v3961, %v3962
      %v3964 = vrot.slane %v3963, 2
      %v3965 = vmax.f32 %v3963, %v3964
      %v3966 = vrot.slane %v3965, 1
      %v3967 = vmax.f32 %v3965, %v3966
      %v3968 = vsel %vm3910, %v3555, -inf
      %v3969 = vrot.slane %v3968, 4
      %v3970 = vmax.f32 %v3968, %v3969
      %v3971 = vrot.slane %v3970, 2
      %v3972 = vmax.f32 %v3970, %v3971
      %v3973 = vrot.slane %v3972, 1
      %v3974 = vmax.f32 %v3972, %v3973
      %v3975 = vsel %vm3910, %v3562, -inf
      %v3976 = vrot.slane %v3975, 4
      %v3977 = vmax.f32 %v3975, %v3976
      %v3978 = vrot.slane %v3977, 2
      %v3979 = vmax.f32 %v3977, %v3978
      %v3980 = vrot.slane %v3979, 1
      %v3981 = vmax.f32 %v3979, %v3980
      %v3982 = vsel %vm3910, %v3563, -inf
      %v3983 = vrot.slane %v3982, 4
      %v3984 = vmax.f32 %v3982, %v3983
      %v3985 = vrot.slane %v3984, 2
      %v3986 = vmax.f32 %v3984, %v3985
      %v3987 = vrot.slane %v3986, 1
      %v3988 = vmax.f32 %v3986, %v3987
      %v3989 = vsel %vm3932, %v3564, -inf
      %v3990 = vrot.slane %v3989, 4
      %v3991 = vmax.f32 %v3989, %v3990
      %v3992 = vrot.slane %v3991, 2
      %v3993 = vmax.f32 %v3991, %v3992
      %v3994 = vrot.slane %v3993, 1
      %v3995 = vmax.f32 %v3993, %v3994
      %v3996 = vsel %vm3910, %v3588, -inf
      %v3997 = vrot.slane %v3996, 4
      %v3998 = vmax.f32 %v3996, %v3997
      %v3999 = vrot.slane %v3998, 2
      %v4000 = vmax.f32 %v3998, %v3999
      %v4001 = vrot.slane %v4000, 1
      %v4002 = vmax.f32 %v4000, %v4001
      %v4003 = vsel %vm3910, %v3595, -inf
      %v4004 = vrot.slane %v4003, 4
      %v4005 = vmax.f32 %v4003, %v4004
      %v4006 = vrot.slane %v4005, 2
      %v4007 = vmax.f32 %v4005, %v4006
      %v4008 = vrot.slane %v4007, 1
      %v4009 = vmax.f32 %v4007, %v4008
      %v4010 = vsel %vm3910, %v3596, -inf
      %v4011 = vrot.slane %v4010, 4
      %v4012 = vmax.f32 %v4010, %v4011
      %v4013 = vrot.slane %v4012, 2
      %v4014 = vmax.f32 %v4012, %v4013
      %v4015 = vrot.slane %v4014, 1
      %v4016 = vmax.f32 %v4014, %v4015
      %v4017 = vsel %vm3932, %v3597, -inf
      %v4018 = vrot.slane %v4017, 4
      %v4019 = vmax.f32 %v4017, %v4018
      %v4020 = vrot.slane %v4019, 2
      %v4021 = vmax.f32 %v4019, %v4020
      %v4022 = vrot.slane %v4021, 1
      %v4023 = vmax.f32 %v4021, %v4022
      %v4024 = vsel %vm3910, %v3621, -inf
      %v4025 = vrot.slane %v4024, 4
      %v4026 = vmax.f32 %v4024, %v4025
      %v4027 = vrot.slane %v4026, 2
      %v4028 = vmax.f32 %v4026, %v4027
      %v4029 = vrot.slane %v4028, 1
      %v4030 = vmax.f32 %v4028, %v4029
      %v4031 = vsel %vm3910, %v3628, -inf
      %v4032 = vrot.slane %v4031, 4
      %v4033 = vmax.f32 %v4031, %v4032
      %v4034 = vrot.slane %v4033, 2
      %v4035 = vmax.f32 %v4033, %v4034
      %v4036 = vrot.slane %v4035, 1
      %v4037 = vmax.f32 %v4035, %v4036
      %v4038 = vsel %vm3910, %v3629, -inf
      %v4039 = vrot.slane %v4038, 4
      %v4040 = vmax.f32 %v4038, %v4039
      %v4041 = vrot.slane %v4040, 2
      %v4042 = vmax.f32 %v4040, %v4041
      %v4043 = vrot.slane %v4042, 1
      %v4044 = vmax.f32 %v4042, %v4043
      %v4045 = vsel %vm3932, %v3630, -inf
      %v4046 = vrot.slane %v4045, 4
      %v4047 = vmax.f32 %v4045, %v4046
      %v4048 = vrot.slane %v4047, 2
      %v4049 = vmax.f32 %v4047, %v4048
      %v4050 = vrot.slane %v4049, 1
      %v4051 = vmax.f32 %v4049, %v4050
      %v4052 = vsel %vm3910, %v3654, -inf
      %v4053 = vrot.slane %v4052, 4
      %v4054 = vmax.f32 %v4052, %v4053
      %v4055 = vrot.slane %v4054, 2
      %v4056 = vmax.f32 %v4054, %v4055
      %v4057 = vrot.slane %v4056, 1
      %v4058 = vmax.f32 %v4056, %v4057
      %v4059 = vsel %vm3910, %v3661, -inf
      %v4060 = vrot.slane %v4059, 4
      %v4061 = vmax.f32 %v4059, %v4060
      %v4062 = vrot.slane %v4061, 2
      %v4063 = vmax.f32 %v4061, %v4062
      %v4064 = vrot.slane %v4063, 1
      %v4065 = vmax.f32 %v4063, %v4064
      %v4066 = vsel %vm3910, %v3662, -inf
      %v4067 = vrot.slane %v4066, 4
      %v4068 = vmax.f32 %v4066, %v4067
      %v4069 = vrot.slane %v4068, 2
      %v4070 = vmax.f32 %v4068, %v4069
      %v4071 = vrot.slane %v4070, 1
      %v4072 = vmax.f32 %v4070, %v4071
      %v4073 = vsel %vm3932, %v3663, -inf
      %v4074 = vrot.slane %v4073, 4
      %v4075 = vmax.f32 %v4073, %v4074
      %v4076 = vrot.slane %v4075, 2
      %v4077 = vmax.f32 %v4075, %v4076
      %v4078 = vrot.slane %v4077, 1
      %v4079 = vmax.f32 %v4077, %v4078
      %v4080 = vsel %vm3910, %v3687, -inf
      %v4081 = vrot.slane %v4080, 4
      %v4082 = vmax.f32 %v4080, %v4081
      %v4083 = vrot.slane %v4082, 2
      %v4084 = vmax.f32 %v4082, %v4083
      %v4085 = vrot.slane %v4084, 1
      %v4086 = vmax.f32 %v4084, %v4085
      %v4087 = vsel %vm3910, %v3694, -inf
      %v4088 = vrot.slane %v4087, 4
      %v4089 = vmax.f32 %v4087, %v4088
      %v4090 = vrot.slane %v4089, 2
      %v4091 = vmax.f32 %v4089, %v4090
      %v4092 = vrot.slane %v4091, 1
      %v4093 = vmax.f32 %v4091, %v4092
      %v4094 = vsel %vm3910, %v3695, -inf
      %v4095 = vrot.slane %v4094, 4
      %v4096 = vmax.f32 %v4094, %v4095
      %v4097 = vrot.slane %v4096, 2
      %v4098 = vmax.f32 %v4096, %v4097
      %v4099 = vrot.slane %v4098, 1
      %v4100 = vmax.f32 %v4098, %v4099
      %v4101 = vsel %vm3932, %v3696, -inf
      %v4102 = vrot.slane %v4101, 4
      %v4103 = vmax.f32 %v4101, %v4102
      %v4104 = vrot.slane %v4103, 2
      %v4105 = vmax.f32 %v4103, %v4104
      %v4106 = vrot.slane %v4105, 1
      %v4107 = vmax.f32 %v4105, %v4106
      %v4108 = vsel %vm3910, %v3720, -inf
      %v4109 = vrot.slane %v4108, 4
      %v4110 = vmax.f32 %v4108, %v4109
      %v4111 = vrot.slane %v4110, 2
      %v4112 = vmax.f32 %v4110, %v4111
      %v4113 = vrot.slane %v4112, 1
      %v4114 = vmax.f32 %v4112, %v4113
      %v4115 = vsel %vm3910, %v3727, -inf
      %v4116 = vrot.slane %v4115, 4
      %v4117 = vmax.f32 %v4115, %v4116
      %v4118 = vrot.slane %v4117, 2
      %v4119 = vmax.f32 %v4117, %v4118
      %v4120 = vrot.slane %v4119, 1
      %v4121 = vmax.f32 %v4119, %v4120
      %v4122 = vsel %vm3910, %v3728, -inf
      %v4123 = vrot.slane %v4122, 4
      %v4124 = vmax.f32 %v4122, %v4123
      %v4125 = vrot.slane %v4124, 2
      %v4126 = vmax.f32 %v4124, %v4125
      %v4127 = vrot.slane %v4126, 1
      %v4128 = vmax.f32 %v4126, %v4127
      %v4129 = vsel %vm3932, %v3729, -inf
      %v4130 = vrot.slane %v4129, 4
      %v4131 = vmax.f32 %v4129, %v4130
      %v4132 = vrot.slane %v4131, 2
      %v4133 = vmax.f32 %v4131, %v4132
      %v4134 = vrot.slane %v4133, 1
      %v4135 = vmax.f32 %v4133, %v4134
      %v4136 = vsel %vm3910, %v3753, -inf
      %v4137 = vrot.slane %v4136, 4
      %v4138 = vmax.f32 %v4136, %v4137
      %v4139 = vrot.slane %v4138, 2
      %v4140 = vmax.f32 %v4138, %v4139
      %v4141 = vrot.slane %v4140, 1
      %v4142 = vmax.f32 %v4140, %v4141
      %v4143 = vsel %vm3910, %v3760, -inf
      %v4144 = vrot.slane %v4143, 4
      %v4145 = vmax.f32 %v4143, %v4144
      %v4146 = vrot.slane %v4145, 2
      %v4147 = vmax.f32 %v4145, %v4146
      %v4148 = vrot.slane %v4147, 1
      %v4149 = vmax.f32 %v4147, %v4148
      %v4150 = vsel %vm3910, %v3761, -inf
      %v4151 = vrot.slane %v4150, 4
      %v4152 = vmax.f32 %v4150, %v4151
      %v4153 = vrot.slane %v4152, 2
      %v4154 = vmax.f32 %v4152, %v4153
      %v4155 = vrot.slane %v4154, 1
      %v4156 = vmax.f32 %v4154, %v4155
      %v4157 = vsel %vm3932, %v3762, -inf
      %v4158 = vrot.slane %v4157, 4
      %v4159 = vmax.f32 %v4157, %v4158
      %v4160 = vrot.slane %v4159, 2
      %v4161 = vmax.f32 %v4159, %v4160
      %v4162 = vrot.slane %v4161, 1
      %v4163 = vmax.f32 %v4161, %v4162
      %v4164 = vsel %vm3910, %v3786, -inf
      %v4165 = vrot.slane %v4164, 4
      %v4166 = vmax.f32 %v4164, %v4165
      %v4167 = vrot.slane %v4166, 2
      %v4168 = vmax.f32 %v4166, %v4167
      %v4169 = vrot.slane %v4168, 1
      %v4170 = vmax.f32 %v4168, %v4169
      %v4171 = vsel %vm3910, %v3793, -inf
      %v4172 = vrot.slane %v4171, 4
      %v4173 = vmax.f32 %v4171, %v4172
      %v4174 = vrot.slane %v4173, 2
      %v4175 = vmax.f32 %v4173, %v4174
      %v4176 = vrot.slane %v4175, 1
      %v4177 = vmax.f32 %v4175, %v4176
      %v4178 = vsel %vm3910, %v3794, -inf
      %v4179 = vrot.slane %v4178, 4
      %v4180 = vmax.f32 %v4178, %v4179
      %v4181 = vrot.slane %v4180, 2
      %v4182 = vmax.f32 %v4180, %v4181
      %v4183 = vrot.slane %v4182, 1
      %v4184 = vmax.f32 %v4182, %v4183
      %v4185 = vsel %vm3932, %v3795, -inf
      %v4186 = vrot.slane %v4185, 4
      %v4187 = vmax.f32 %v4185, %v4186
      %v4188 = vrot.slane %v4187, 2
      %v4189 = vmax.f32 %v4187, %v4188
      %v4190 = vrot.slane %v4189, 1
      %v4191 = vmax.f32 %v4189, %v4190
      %v4192 = vsel %vm3910, %v3819, -inf
      %v4193 = vrot.slane %v4192, 4
      %v4194 = vmax.f32 %v4192, %v4193
      %v4195 = vrot.slane %v4194, 2
      %v4196 = vmax.f32 %v4194, %v4195
      %v4197 = vrot.slane %v4196, 1
      %v4198 = vmax.f32 %v4196, %v4197
      %v4199 = vsel %vm3910, %v3826, -inf
      %v4200 = vrot.slane %v4199, 4
      %v4201 = vmax.f32 %v4199, %v4200
      %v4202 = vrot.slane %v4201, 2
      %v4203 = vmax.f32 %v4201, %v4202
      %v4204 = vrot.slane %v4203, 1
      %v4205 = vmax.f32 %v4203, %v4204
      %v4206 = vsel %vm3910, %v3827, -inf
      %v4207 = vrot.slane %v4206, 4
      %v4208 = vmax.f32 %v4206, %v4207
      %v4209 = vrot.slane %v4208, 2
      %v4210 = vmax.f32 %v4208, %v4209
      %v4211 = vrot.slane %v4210, 1
      %v4212 = vmax.f32 %v4210, %v4211
      %v4213 = vsel %vm3932, %v3828, -inf
      %v4214 = vrot.slane %v4213, 4
      %v4215 = vmax.f32 %v4213, %v4214
      %v4216 = vrot.slane %v4215, 2
      %v4217 = vmax.f32 %v4215, %v4216
      %v4218 = vrot.slane %v4217, 1
      %v4219 = vmax.f32 %v4217, %v4218
      %v4220 = vsel %vm3910, %v3852, -inf
      %v4221 = vrot.slane %v4220, 4
      %v4222 = vmax.f32 %v4220, %v4221
      %v4223 = vrot.slane %v4222, 2
      %v4224 = vmax.f32 %v4222, %v4223
      %v4225 = vrot.slane %v4224, 1
      %v4226 = vmax.f32 %v4224, %v4225
      %v4227 = vsel %vm3910, %v3859, -inf
      %v4228 = vrot.slane %v4227, 4
      %v4229 = vmax.f32 %v4227, %v4228
      %v4230 = vrot.slane %v4229, 2
      %v4231 = vmax.f32 %v4229, %v4230
      %v4232 = vrot.slane %v4231, 1
      %v4233 = vmax.f32 %v4231, %v4232
      %v4234 = vsel %vm3910, %v3860, -inf
      %v4235 = vrot.slane %v4234, 4
      %v4236 = vmax.f32 %v4234, %v4235
      %v4237 = vrot.slane %v4236, 2
      %v4238 = vmax.f32 %v4236, %v4237
      %v4239 = vrot.slane %v4238, 1
      %v4240 = vmax.f32 %v4238, %v4239
      %v4241 = vsel %vm3932, %v3861, -inf
      %v4242 = vrot.slane %v4241, 4
      %v4243 = vmax.f32 %v4241, %v4242
      %v4244 = vrot.slane %v4243, 2
      %v4245 = vmax.f32 %v4243, %v4244
      %v4246 = vrot.slane %v4245, 1
      %v4247 = vmax.f32 %v4245, %v4246
      %4296 = vrot.lane.b32.xlu0 %v3917, 116
      %v4297 = vpop.permute.xlu0 %4296
      %4298 = vrot.lane.b32.xlu0 %v3924, 116
      %v4299 = vpop.permute.xlu0 %4298
      %4300 = vrot.lane.b32.xlu0 %v3931, 116
      %v4301 = vpop.permute.xlu0 %4300
      %4302 = vrot.lane.b32.xlu0 %v3939, 116
      %v4303 = vpop.permute.xlu0 %4302
      %4304 = vrot.lane.b32.xlu0 %v3946, 116
      %v4305 = vpop.permute.xlu0 %4304
      %4306 = vrot.lane.b32.xlu0 %v3953, 116
      %v4307 = vpop.permute.xlu0 %4306
      %4308 = vrot.lane.b32.xlu0 %v3960, 116
      %v4309 = vpop.permute.xlu0 %4308
      %4310 = vrot.lane.b32.xlu0 %v3967, 116
      %v4311 = vpop.permute.xlu0 %4310
      %4312 = vrot.lane.b32.xlu0 %v3974, 116
      %v4313 = vpop.permute.xlu0 %4312
      %4314 = vrot.lane.b32.xlu0 %v3981, 116
      %v4315 = vpop.permute.xlu0 %4314
      %4316 = vrot.lane.b32.xlu0 %v3988, 116
      %v4317 = vpop.permute.xlu0 %4316
      %4318 = vrot.lane.b32.xlu0 %v3995, 116
      %v4319 = vpop.permute.xlu0 %4318
      %4320 = vrot.lane.b32.xlu0 %v4002, 116
      %v4321 = vpop.permute.xlu0 %4320
      %4322 = vrot.lane.b32.xlu0 %v4009, 116
      %v4323 = vpop.permute.xlu0 %4322
      %4324 = vrot.lane.b32.xlu0 %v4016, 116
      %v4325 = vpop.permute.xlu0 %4324
      %4326 = vrot.lane.b32.xlu0 %v4023, 116
      %v4327 = vpop.permute.xlu0 %4326
      %4328 = vrot.lane.b32.xlu0 %v4030, 116
      %v4329 = vpop.permute.xlu0 %4328
      %4330 = vrot.lane.b32.xlu0 %v4037, 116
      %v4331 = vpop.permute.xlu0 %4330
      %4332 = vrot.lane.b32.xlu0 %v4044, 116
      %v4333 = vpop.permute.xlu0 %4332
      %4334 = vrot.lane.b32.xlu0 %v4051, 116
      %v4335 = vpop.permute.xlu0 %4334
      %4336 = vrot.lane.b32.xlu0 %v4058, 116
      %v4337 = vpop.permute.xlu0 %4336
      %4338 = vrot.lane.b32.xlu0 %v4065, 116
      %v4339 = vpop.permute.xlu0 %4338
      %4340 = vrot.lane.b32.xlu0 %v4072, 116
      %v4341 = vpop.permute.xlu0 %4340
      %4342 = vrot.lane.b32.xlu0 %v4079, 116
      %v4343 = vpop.permute.xlu0 %4342
      %4344 = vrot.lane.b32.xlu0 %v4086, 116
      %v4345 = vpop.permute.xlu0 %4344
      %4346 = vrot.lane.b32.xlu0 %v4093, 116
      %v4347 = vpop.permute.xlu0 %4346
      %4348 = vrot.lane.b32.xlu0 %v4100, 116
      %v4349 = vpop.permute.xlu0 %4348
      %4350 = vrot.lane.b32.xlu0 %v4107, 116
      %v4351 = vpop.permute.xlu0 %4350
      %4352 = vrot.lane.b32.xlu0 %v4114, 116
      %v4353 = vpop.permute.xlu0 %4352
      %4354 = vrot.lane.b32.xlu0 %v4121, 116
      %v4355 = vpop.permute.xlu0 %4354
      %4356 = vrot.lane.b32.xlu0 %v4128, 116
      %v4357 = vpop.permute.xlu0 %4356
      %4358 = vrot.lane.b32.xlu0 %v4135, 116
      %v4359 = vpop.permute.xlu0 %4358
      %4360 = vrot.lane.b32.xlu0 %v4142, 116
      %v4361 = vpop.permute.xlu0 %4360
      %4362 = vrot.lane.b32.xlu0 %v4149, 116
      %v4363 = vpop.permute.xlu0 %4362
      %4364 = vrot.lane.b32.xlu0 %v4156, 116
      %v4365 = vpop.permute.xlu0 %4364
      %4366 = vrot.lane.b32.xlu0 %v4163, 116
      %v4367 = vpop.permute.xlu0 %4366
      %4368 = vrot.lane.b32.xlu0 %v4170, 116
      %v4369 = vpop.permute.xlu0 %4368
      %4370 = vrot.lane.b32.xlu0 %v4177, 116
      %v4371 = vpop.permute.xlu0 %4370
      %4372 = vrot.lane.b32.xlu0 %v4184, 116
      %v4373 = vpop.permute.xlu0 %4372
      %4374 = vrot.lane.b32.xlu0 %v4191, 116
      %v4375 = vpop.permute.xlu0 %4374
      %4376 = vrot.lane.b32.xlu0 %v4198, 116
      %v4377 = vpop.permute.xlu0 %4376
      %4378 = vrot.lane.b32.xlu0 %v4205, 116
      %v4379 = vpop.permute.xlu0 %4378
      %4380 = vrot.lane.b32.xlu0 %v4212, 116
      %v4381 = vpop.permute.xlu0 %4380
      %4382 = vrot.lane.b32.xlu0 %v4219, 116
      %v4383 = vpop.permute.xlu0 %4382
      %4384 = vrot.lane.b32.xlu0 %v4226, 116
      %v4385 = vpop.permute.xlu0 %4384
      %4386 = vrot.lane.b32.xlu0 %v4233, 116
      %v4387 = vpop.permute.xlu0 %4386
      %4388 = vrot.lane.b32.xlu0 %v4240, 116
      %v4389 = vpop.permute.xlu0 %4388
      %4390 = vrot.lane.b32.xlu0 %v4247, 116
      %v4391 = vpop.permute.xlu0 %4390
      %vm4392 = vcmask 949248
      %v4393 = vsel %vm4392, %v4297, %v4299
      %v4394 = vsel %vm4392, %v4299, %v4301
      %v4395 = vsel %vm4392, %v4301, %v4303
      %v4396 = vsel %vm4392, %v4305, %v4307
      %v4397 = vsel %vm4392, %v4307, %v4309
      %v4398 = vsel %vm4392, %v4309, %v4311
      %v4399 = vsel %vm4392, %v4313, %v4315
      %v4400 = vsel %vm4392, %v4315, %v4317
      %v4401 = vsel %vm4392, %v4317, %v4319
      %v4402 = vsel %vm4392, %v4321, %v4323
      %v4403 = vsel %vm4392, %v4323, %v4325
      %v4404 = vsel %vm4392, %v4325, %v4327
      %v4405 = vsel %vm4392, %v4329, %v4331
      %v4406 = vsel %vm4392, %v4331, %v4333
      %v4407 = vsel %vm4392, %v4333, %v4335
      %v4408 = vsel %vm4392, %v4337, %v4339
      %v4409 = vsel %vm4392, %v4339, %v4341
      %v4410 = vsel %vm4392, %v4341, %v4343
      %v4411 = vsel %vm4392, %v4345, %v4347
      %v4412 = vsel %vm4392, %v4347, %v4349
      %v4413 = vsel %vm4392, %v4349, %v4351
      %v4414 = vsel %vm4392, %v4353, %v4355
      %v4415 = vsel %vm4392, %v4355, %v4357
      %v4416 = vsel %vm4392, %v4357, %v4359
      %v4417 = vsel %vm4392, %v4361, %v4363
      %v4418 = vsel %vm4392, %v4363, %v4365
      %v4419 = vsel %vm4392, %v4365, %v4367
      %v4420 = vsel %vm4392, %v4369, %v4371
      %v4421 = vsel %vm4392, %v4371, %v4373
      %v4422 = vsel %vm4392, %v4373, %v4375
      %v4423 = vsel %vm4392, %v4377, %v4379
      %v4424 = vsel %vm4392, %v4379, %v4381
      %v4425 = vsel %vm4392, %v4381, %v4383
      %v4426 = vsel %vm4392, %v4385, %v4387
      %v4427 = vsel %vm4392, %v4387, %v4389
      %v4428 = vsel %vm4392, %v4389, %v4391
      %v4477 = vmax.f32 %v3917, %v4393
      %v4478 = vmax.f32 %v3924, %v4394
      %v4479 = vmax.f32 %v3931, %v4395
      %v4480 = vmax.f32 %v3939, %v4303
      %v4481 = vmax.f32 %v3946, %v4396
      %v4482 = vmax.f32 %v3953, %v4397
      %v4483 = vmax.f32 %v3960, %v4398
      %v4484 = vmax.f32 %v3967, %v4311
      %v4485 = vmax.f32 %v3974, %v4399
      %v4486 = vmax.f32 %v3981, %v4400
      %v4487 = vmax.f32 %v3988, %v4401
      %v4488 = vmax.f32 %v3995, %v4319
      %v4489 = vmax.f32 %v4002, %v4402
      %v4490 = vmax.f32 %v4009, %v4403
      %v4491 = vmax.f32 %v4016, %v4404
      %v4492 = vmax.f32 %v4023, %v4327
      %v4493 = vmax.f32 %v4030, %v4405
      %v4494 = vmax.f32 %v4037, %v4406
      %v4495 = vmax.f32 %v4044, %v4407
      %v4496 = vmax.f32 %v4051, %v4335
      %v4497 = vmax.f32 %v4058, %v4408
      %v4498 = vmax.f32 %v4065, %v4409
      %v4499 = vmax.f32 %v4072, %v4410
      %v4500 = vmax.f32 %v4079, %v4343
      %v4501 = vmax.f32 %v4086, %v4411
      %v4502 = vmax.f32 %v4093, %v4412
      %v4503 = vmax.f32 %v4100, %v4413
      %v4504 = vmax.f32 %v4107, %v4351
      %v4505 = vmax.f32 %v4114, %v4414
      %v4506 = vmax.f32 %v4121, %v4415
      %v4507 = vmax.f32 %v4128, %v4416
      %v4508 = vmax.f32 %v4135, %v4359
      %v4509 = vmax.f32 %v4142, %v4417
      %v4510 = vmax.f32 %v4149, %v4418
      %v4511 = vmax.f32 %v4156, %v4419
      %v4512 = vmax.f32 %v4163, %v4367
      %v4513 = vmax.f32 %v4170, %v4420
      %v4514 = vmax.f32 %v4177, %v4421
      %v4515 = vmax.f32 %v4184, %v4422
      %v4516 = vmax.f32 %v4191, %v4375
      %v4517 = vmax.f32 %v4198, %v4423
      %v4518 = vmax.f32 %v4205, %v4424
      %v4519 = vmax.f32 %v4212, %v4425
      %v4520 = vmax.f32 %v4219, %v4383
      %v4521 = vmax.f32 %v4226, %v4426
      %v4522 = vmax.f32 %v4233, %v4427
      %v4523 = vmax.f32 %v4240, %v4428
      %v4524 = vmax.f32 %v4247, %v4391
      %4525 = vrot.lane.b32.xlu0 %v3917, 104
      %v4526 = vpop.permute.xlu0 %4525
      %4527 = vrot.lane.b32.xlu0 %v3924, 104
      %v4528 = vpop.permute.xlu0 %4527
      %4529 = vrot.lane.b32.xlu0 %v3931, 104
      %v4530 = vpop.permute.xlu0 %4529
      %4531 = vrot.lane.b32.xlu0 %v3939, 104
      %v4532 = vpop.permute.xlu0 %4531
      %4533 = vrot.lane.b32.xlu0 %v3946, 104
      %v4534 = vpop.permute.xlu0 %4533
      %4535 = vrot.lane.b32.xlu0 %v3953, 104
      %v4536 = vpop.permute.xlu0 %4535
      %4537 = vrot.lane.b32.xlu0 %v3960, 104
      %v4538 = vpop.permute.xlu0 %4537
      %4539 = vrot.lane.b32.xlu0 %v3967, 104
      %v4540 = vpop.permute.xlu0 %4539
      %4541 = vrot.lane.b32.xlu0 %v3974, 104
      %v4542 = vpop.permute.xlu0 %4541
      %4543 = vrot.lane.b32.xlu0 %v3981, 104
      %v4544 = vpop.permute.xlu0 %4543
      %4545 = vrot.lane.b32.xlu0 %v3988, 104
      %v4546 = vpop.permute.xlu0 %4545
      %4547 = vrot.lane.b32.xlu0 %v3995, 104
      %v4548 = vpop.permute.xlu0 %4547
      %4549 = vrot.lane.b32.xlu0 %v4002, 104
      %v4550 = vpop.permute.xlu0 %4549
      %4551 = vrot.lane.b32.xlu0 %v4009, 104
      %v4552 = vpop.permute.xlu0 %4551
      %4553 = vrot.lane.b32.xlu0 %v4016, 104
      %v4554 = vpop.permute.xlu0 %4553
      %4555 = vrot.lane.b32.xlu0 %v4023, 104
      %v4556 = vpop.permute.xlu0 %4555
      %4557 = vrot.lane.b32.xlu0 %v4030, 104
      %v4558 = vpop.permute.xlu0 %4557
      %4559 = vrot.lane.b32.xlu0 %v4037, 104
      %v4560 = vpop.permute.xlu0 %4559
      %4561 = vrot.lane.b32.xlu0 %v4044, 104
      %v4562 = vpop.permute.xlu0 %4561
      %4563 = vrot.lane.b32.xlu0 %v4051, 104
      %v4564 = vpop.permute.xlu0 %4563
      %4565 = vrot.lane.b32.xlu0 %v4058, 104
      %v4566 = vpop.permute.xlu0 %4565
      %4567 = vrot.lane.b32.xlu0 %v4065, 104
      %v4568 = vpop.permute.xlu0 %4567
      %4569 = vrot.lane.b32.xlu0 %v4072, 104
      %v4570 = vpop.permute.xlu0 %4569
      %4571 = vrot.lane.b32.xlu0 %v4079, 104
      %v4572 = vpop.permute.xlu0 %4571
      %4573 = vrot.lane.b32.xlu0 %v4086, 104
      %v4574 = vpop.permute.xlu0 %4573
      %4575 = vrot.lane.b32.xlu0 %v4093, 104
      %v4576 = vpop.permute.xlu0 %4575
      %4577 = vrot.lane.b32.xlu0 %v4100, 104
      %v4578 = vpop.permute.xlu0 %4577
      %4579 = vrot.lane.b32.xlu0 %v4107, 104
      %v4580 = vpop.permute.xlu0 %4579
      %4581 = vrot.lane.b32.xlu0 %v4114, 104
      %v4582 = vpop.permute.xlu0 %4581
      %4583 = vrot.lane.b32.xlu0 %v4121, 104
      %v4584 = vpop.permute.xlu0 %4583
      %4585 = vrot.lane.b32.xlu0 %v4128, 104
      %v4586 = vpop.permute.xlu0 %4585
      %4587 = vrot.lane.b32.xlu0 %v4135, 104
      %v4588 = vpop.permute.xlu0 %4587
      %4589 = vrot.lane.b32.xlu0 %v4142, 104
      %v4590 = vpop.permute.xlu0 %4589
      %4591 = vrot.lane.b32.xlu0 %v4149, 104
      %v4592 = vpop.permute.xlu0 %4591
      %4593 = vrot.lane.b32.xlu0 %v4156, 104
      %v4594 = vpop.permute.xlu0 %4593
      %4595 = vrot.lane.b32.xlu0 %v4163, 104
      %v4596 = vpop.permute.xlu0 %4595
      %4597 = vrot.lane.b32.xlu0 %v4170, 104
      %v4598 = vpop.permute.xlu0 %4597
      %4599 = vrot.lane.b32.xlu0 %v4177, 104
      %v4600 = vpop.permute.xlu0 %4599
      %4601 = vrot.lane.b32.xlu0 %v4184, 104
      %v4602 = vpop.permute.xlu0 %4601
      %4603 = vrot.lane.b32.xlu0 %v4191, 104
      %v4604 = vpop.permute.xlu0 %4603
      %4605 = vrot.lane.b32.xlu0 %v4198, 104
      %v4606 = vpop.permute.xlu0 %4605
      %4607 = vrot.lane.b32.xlu0 %v4205, 104
      %v4608 = vpop.permute.xlu0 %4607
      %4609 = vrot.lane.b32.xlu0 %v4212, 104
      %v4610 = vpop.permute.xlu0 %4609
      %4611 = vrot.lane.b32.xlu0 %v4219, 104
      %v4612 = vpop.permute.xlu0 %4611
      %4613 = vrot.lane.b32.xlu0 %v4226, 104
      %v4614 = vpop.permute.xlu0 %4613
      %4615 = vrot.lane.b32.xlu0 %v4233, 104
      %v4616 = vpop.permute.xlu0 %4615
      %4617 = vrot.lane.b32.xlu0 %v4240, 104
      %v4618 = vpop.permute.xlu0 %4617
      %4619 = vrot.lane.b32.xlu0 %v4247, 104
      %v4620 = vpop.permute.xlu0 %4619
      %vm4621 = vcmask 850944
      %v4622 = vsel %vm4621, %v4526, %v4528
      %v4623 = vsel %vm4621, %v4528, %v4530
      %v4624 = vsel %vm4621, %v4530, %v4532
      %v4625 = vsel %vm4621, %v4534, %v4536
      %v4626 = vsel %vm4621, %v4536, %v4538
      %v4627 = vsel %vm4621, %v4538, %v4540
      %v4628 = vsel %vm4621, %v4542, %v4544
      %v4629 = vsel %vm4621, %v4544, %v4546
      %v4630 = vsel %vm4621, %v4546, %v4548
      %v4631 = vsel %vm4621, %v4550, %v4552
      %v4632 = vsel %vm4621, %v4552, %v4554
      %v4633 = vsel %vm4621, %v4554, %v4556
      %v4634 = vsel %vm4621, %v4558, %v4560
      %v4635 = vsel %vm4621, %v4560, %v4562
      %v4636 = vsel %vm4621, %v4562, %v4564
      %v4637 = vsel %vm4621, %v4566, %v4568
      %v4638 = vsel %vm4621, %v4568, %v4570
      %v4639 = vsel %vm4621, %v4570, %v4572
      %v4640 = vsel %vm4621, %v4574, %v4576
      %v4641 = vsel %vm4621, %v4576, %v4578
      %v4642 = vsel %vm4621, %v4578, %v4580
      %v4643 = vsel %vm4621, %v4582, %v4584
      %v4644 = vsel %vm4621, %v4584, %v4586
      %v4645 = vsel %vm4621, %v4586, %v4588
      %v4646 = vsel %vm4621, %v4590, %v4592
      %v4647 = vsel %vm4621, %v4592, %v4594
      %v4648 = vsel %vm4621, %v4594, %v4596
      %v4649 = vsel %vm4621, %v4598, %v4600
      %v4650 = vsel %vm4621, %v4600, %v4602
      %v4651 = vsel %vm4621, %v4602, %v4604
      %v4652 = vsel %vm4621, %v4606, %v4608
      %v4653 = vsel %vm4621, %v4608, %v4610
      %v4654 = vsel %vm4621, %v4610, %v4612
      %v4655 = vsel %vm4621, %v4614, %v4616
      %v4656 = vsel %vm4621, %v4616, %v4618
      %v4657 = vsel %vm4621, %v4618, %v4620
      %v4706 = vmax.f32 %v4477, %v4622
      %v4707 = vmax.f32 %v4478, %v4623
      %v4708 = vmax.f32 %v4479, %v4624
      %v4709 = vmax.f32 %v4480, %v4532
      %v4710 = vmax.f32 %v4481, %v4625
      %v4711 = vmax.f32 %v4482, %v4626
      %v4712 = vmax.f32 %v4483, %v4627
      %v4713 = vmax.f32 %v4484, %v4540
      %v4714 = vmax.f32 %v4485, %v4628
      %v4715 = vmax.f32 %v4486, %v4629
      %v4716 = vmax.f32 %v4487, %v4630
      %v4717 = vmax.f32 %v4488, %v4548
      %v4718 = vmax.f32 %v4489, %v4631
      %v4719 = vmax.f32 %v4490, %v4632
      %v4720 = vmax.f32 %v4491, %v4633
      %v4721 = vmax.f32 %v4492, %v4556
      %v4722 = vmax.f32 %v4493, %v4634
      %v4723 = vmax.f32 %v4494, %v4635
      %v4724 = vmax.f32 %v4495, %v4636
      %v4725 = vmax.f32 %v4496, %v4564
      %v4726 = vmax.f32 %v4497, %v4637
      %v4727 = vmax.f32 %v4498, %v4638
      %v4728 = vmax.f32 %v4499, %v4639
      %v4729 = vmax.f32 %v4500, %v4572
      %v4730 = vmax.f32 %v4501, %v4640
      %v4731 = vmax.f32 %v4502, %v4641
      %v4732 = vmax.f32 %v4503, %v4642
      %v4733 = vmax.f32 %v4504, %v4580
      %v4734 = vmax.f32 %v4505, %v4643
      %v4735 = vmax.f32 %v4506, %v4644
      %v4736 = vmax.f32 %v4507, %v4645
      %v4737 = vmax.f32 %v4508, %v4588
      %v4738 = vmax.f32 %v4509, %v4646
      %v4739 = vmax.f32 %v4510, %v4647
      %v4740 = vmax.f32 %v4511, %v4648
      %v4741 = vmax.f32 %v4512, %v4596
      %v4742 = vmax.f32 %v4513, %v4649
      %v4743 = vmax.f32 %v4514, %v4650
      %v4744 = vmax.f32 %v4515, %v4651
      %v4745 = vmax.f32 %v4516, %v4604
      %v4746 = vmax.f32 %v4517, %v4652
      %v4747 = vmax.f32 %v4518, %v4653
      %v4748 = vmax.f32 %v4519, %v4654
      %v4749 = vmax.f32 %v4520, %v4612
      %v4750 = vmax.f32 %v4521, %v4655
      %v4751 = vmax.f32 %v4522, %v4656
      %v4752 = vmax.f32 %v4523, %v4657
      %v4753 = vmax.f32 %v4524, %v4620
      %v4754 = vld [vmem:[%s5] sm:$0xff]
      %v4755 = vld [vmem:[%s5 + $0x8] sm:$0xff]
      %v4756 = vld [vmem:[%s5 + $0x10] sm:$0xff]
      %v4757 = vld [vmem:[%s5 + $0x18] sm:$0xff]
      %v4758 = vld [vmem:[%s5 + $0x20] sm:$0xff]
      %v4759 = vld [vmem:[%s5 + $0x28] sm:$0xff]
      %v4760 = vld [vmem:[%s5 + $0x30] sm:$0xff]
      %v4761 = vld [vmem:[%s5 + $0x38] sm:$0xff]
      %v4762 = vld [vmem:[%s5 + $0x40] sm:$0xff]
      %v4763 = vld [vmem:[%s5 + $0x48] sm:$0xff]
      %v4764 = vld [vmem:[%s5 + $0x50] sm:$0xff]
      %v4765 = vld [vmem:[%s5 + $0x58] sm:$0xff]
      %v4766 = vld [vmem:[%s5 + $0x60] sm:$0xff]
      %v4767 = vld [vmem:[%s5 + $0x68] sm:$0xff]
      %v4768 = vld [vmem:[%s5 + $0x70] sm:$0xff]
      %v4769 = vld [vmem:[%s5 + $0x78] sm:$0xff]
      %v4770 = vld [vmem:[%s5 + $0x80] sm:$0xff]
      %v4771 = vld [vmem:[%s5 + $0x88] sm:$0xff]
      %v4772 = vld [vmem:[%s5 + $0x90] sm:$0xff]
      %v4773 = vld [vmem:[%s5 + $0x98] sm:$0xff]
      %v4774 = vld [vmem:[%s5 + $0xa0] sm:$0xff]
      %v4775 = vld [vmem:[%s5 + $0xa8] sm:$0xff]
      %v4776 = vld [vmem:[%s5 + $0xb0] sm:$0xff]
      %v4777 = vld [vmem:[%s5 + $0xb8] sm:$0xff]
      %v4778 = vld [vmem:[%s5 + $0xc0] sm:$0xff]
      %v4779 = vld [vmem:[%s5 + $0xc8] sm:$0xff]
      %v4780 = vld [vmem:[%s5 + $0xd0] sm:$0xff]
      %v4781 = vld [vmem:[%s5 + $0xd8] sm:$0xff]
      %v4782 = vld [vmem:[%s5 + $0xe0] sm:$0xff]
      %v4783 = vld [vmem:[%s5 + $0xe8] sm:$0xff]
      %v4784 = vld [vmem:[%s5 + $0xf0] sm:$0xff]
      %v4785 = vld [vmem:[%s5 + $0xf8] sm:$0xff]
      %v4786 = vld [vmem:[%s5 + $0x100] sm:$0xff]
      %v4787 = vld [vmem:[%s5 + $0x108] sm:$0xff]
      %v4788 = vld [vmem:[%s5 + $0x110] sm:$0xff]
      %v4789 = vld [vmem:[%s5 + $0x118] sm:$0xff]
      %v4790 = vld [vmem:[%s5 + $0x120] sm:$0xff]
      %v4791 = vld [vmem:[%s5 + $0x128] sm:$0xff]
      %v4792 = vld [vmem:[%s5 + $0x130] sm:$0xff]
      %v4793 = vld [vmem:[%s5 + $0x138] sm:$0xff]
      %v4794 = vld [vmem:[%s5 + $0x140] sm:$0xff]
      %v4795 = vld [vmem:[%s5 + $0x148] sm:$0xff]
      %v4796 = vld [vmem:[%s5 + $0x150] sm:$0xff]
      %v4797 = vld [vmem:[%s5 + $0x158] sm:$0xff]
      %v4798 = vld [vmem:[%s5 + $0x160] sm:$0xff]
      %v4799 = vld [vmem:[%s5 + $0x168] sm:$0xff]
      %v4800 = vld [vmem:[%s5 + $0x170] sm:$0xff]
      %v4801 = vld [vmem:[%s5 + $0x178] sm:$0xff]
      %v4802 = vld [vmem:[%s5 + $0x180] sm:$0xff]
      %v4803 = vld [vmem:[%s5 + $0x188] sm:$0xff]
      %v4804 = vld [vmem:[%s5 + $0x190] sm:$0xff]
      %v4805 = vld [vmem:[%s5 + $0x198] sm:$0xff]
      %v4806 = vld [vmem:[%s5 + $0x1a0] sm:$0xff]
      %v4807 = vld [vmem:[%s5 + $0x1a8] sm:$0xff]
      %v4808 = vld [vmem:[%s5 + $0x1b0] sm:$0xff]
      %v4809 = vld [vmem:[%s5 + $0x1b8] sm:$0xff]
      %v4810 = vld [vmem:[%s5 + $0x1c0] sm:$0xff]
      %v4811 = vld [vmem:[%s5 + $0x1c8] sm:$0xff]
      %v4812 = vld [vmem:[%s5 + $0x1d0] sm:$0xff]
      %v4813 = vld [vmem:[%s5 + $0x1d8] sm:$0xff]
      %v4814 = vld [vmem:[%s5 + $0x1e0] sm:$0xff]
      %v4815 = vld [vmem:[%s5 + $0x1e8] sm:$0xff]
      %v4816 = vld [vmem:[%s5 + $0x1f0] sm:$0xff]
      %v4817 = vld [vmem:[%s5 + $0x1f8] sm:$0xff]
      %v4818 = vld [vmem:[%s5 + $0x200] sm:$0xff]
      %v4819 = vld [vmem:[%s5 + $0x208] sm:$0xff]
      %v4820 = vld [vmem:[%s5 + $0x210] sm:$0xff]
      %v4821 = vld [vmem:[%s5 + $0x218] sm:$0xff]
      %v4822 = vld [vmem:[%s5 + $0x220] sm:$0xff]
      %v4823 = vld [vmem:[%s5 + $0x228] sm:$0xff]
      %v4824 = vld [vmem:[%s5 + $0x230] sm:$0xff]
      %v4825 = vld [vmem:[%s5 + $0x238] sm:$0xff]
      %v4826 = vld [vmem:[%s5 + $0x240] sm:$0xff]
      %v4827 = vld [vmem:[%s5 + $0x248] sm:$0xff]
      %v4828 = vld [vmem:[%s5 + $0x250] sm:$0xff]
      %v4829 = vld [vmem:[%s5 + $0x258] sm:$0xff]
      %v4830 = vld [vmem:[%s5 + $0x260] sm:$0xff]
      %v4831 = vld [vmem:[%s5 + $0x268] sm:$0xff]
      %v4832 = vld [vmem:[%s5 + $0x270] sm:$0xff]
      %v4833 = vld [vmem:[%s5 + $0x278] sm:$0xff]
      %v4834 = vld [vmem:[%s5 + $0x280] sm:$0xff]
      %v4835 = vld [vmem:[%s5 + $0x288] sm:$0xff]
      %v4836 = vld [vmem:[%s5 + $0x290] sm:$0xff]
      %v4837 = vld [vmem:[%s5 + $0x298] sm:$0xff]
      %v4838 = vld [vmem:[%s5 + $0x2a0] sm:$0xff]
      %v4839 = vld [vmem:[%s5 + $0x2a8] sm:$0xff]
      %v4840 = vld [vmem:[%s5 + $0x2b0] sm:$0xff]
      %v4841 = vld [vmem:[%s5 + $0x2b8] sm:$0xff]
      %v4842 = vld [vmem:[%s5 + $0x2c0] sm:$0xff]
      %v4843 = vld [vmem:[%s5 + $0x2c8] sm:$0xff]
      %v4844 = vld [vmem:[%s5 + $0x2d0] sm:$0xff]
      %v4845 = vld [vmem:[%s5 + $0x2d8] sm:$0xff]
      %v4846 = vld [vmem:[%s5 + $0x2e0] sm:$0xff]
      %v4847 = vld [vmem:[%s5 + $0x2e8] sm:$0xff]
      %v4848 = vld [vmem:[%s5 + $0x2f0] sm:$0xff]
      %v4849 = vld [vmem:[%s5 + $0x2f8] sm:$0xff]
      %v4850 = vld [vmem:[%s5 + $0x300] sm:$0xff]
      %v4851 = vld [vmem:[%s5 + $0x308] sm:$0xff]
      %v4852 = vld [vmem:[%s5 + $0x310] sm:$0xff]
      %v4853 = vld [vmem:[%s5 + $0x318] sm:$0xff]
      %v4854 = vld [vmem:[%s5 + $0x320] sm:$0xff]
      %v4855 = vld [vmem:[%s5 + $0x328] sm:$0xff]
      %s4856 = scalar_lea.vmem %s5, 816
      %v4857 = vld [vmem:[%s4856] sm:$0xff]
      %v4858 = vld [vmem:[%s4856 + $0x8] sm:$0xff]
      %v4859 = vld [vmem:[%s4856 + $0x10] sm:$0xff]
      %v4860 = vld [vmem:[%s4856 + $0x18] sm:$0xff]
      %v4861 = vld [vmem:[%s4856 + $0x20] sm:$0xff]
      %v4862 = vld [vmem:[%s4856 + $0x28] sm:$0xff]
      %v4863 = vld [vmem:[%s4856 + $0x30] sm:$0xff]
      %v4864 = vld [vmem:[%s4856 + $0x38] sm:$0xff]
      %v4865 = vld [vmem:[%s4856 + $0x40] sm:$0xff]
      %v4866 = vld [vmem:[%s4856 + $0x48] sm:$0xff]
      %v4867 = vld [vmem:[%s4856 + $0x50] sm:$0xff]
      %v4868 = vld [vmem:[%s4856 + $0x58] sm:$0xff]
      %v4869 = vld [vmem:[%s4856 + $0x60] sm:$0xff]
      %v4870 = vld [vmem:[%s4856 + $0x68] sm:$0xff]
      %v4871 = vld [vmem:[%s4856 + $0x70] sm:$0xff]
      %v4872 = vld [vmem:[%s4856 + $0x78] sm:$0xff]
      %v4873 = vld [vmem:[%s4856 + $0x80] sm:$0xff]
      %v4874 = vld [vmem:[%s4856 + $0x88] sm:$0xff]
      %v4875 = vld [vmem:[%s4856 + $0x90] sm:$0xff]
      %v4876 = vld [vmem:[%s4856 + $0x98] sm:$0xff]
      %v4877 = vld [vmem:[%s4856 + $0xa0] sm:$0xff]
      %v4878 = vld [vmem:[%s4856 + $0xa8] sm:$0xff]
      %v4879 = vld [vmem:[%s4856 + $0xb0] sm:$0xff]
      %v4880 = vld [vmem:[%s4856 + $0xb8] sm:$0xff]
      %v4881 = vld [vmem:[%s4856 + $0xc0] sm:$0xff]
      %v4882 = vld [vmem:[%s4856 + $0xc8] sm:$0xff]
      %v4883 = vld [vmem:[%s4856 + $0xd0] sm:$0xff]
      %v4884 = vld [vmem:[%s4856 + $0xd8] sm:$0xff]
      %v4885 = vld [vmem:[%s4856 + $0xe0] sm:$0xff]
      %v4886 = vld [vmem:[%s4856 + $0xe8] sm:$0xff]
      %v4887 = vld [vmem:[%s4856 + $0xf0] sm:$0xff]
      %v4888 = vld [vmem:[%s4856 + $0xf8] sm:$0xff]
      %v4889 = vld [vmem:[%s4856 + $0x100] sm:$0xff]
      %v4890 = vld [vmem:[%s4856 + $0x108] sm:$0xff]
      %v4891 = vld [vmem:[%s4856 + $0x110] sm:$0xff]
      %v4892 = vld [vmem:[%s4856 + $0x118] sm:$0xff]
      %v4893 = vld [vmem:[%s4856 + $0x120] sm:$0xff]
      %v4894 = vld [vmem:[%s4856 + $0x128] sm:$0xff]
      %v4895 = vld [vmem:[%s4856 + $0x130] sm:$0xff]
      %v4896 = vld [vmem:[%s4856 + $0x138] sm:$0xff]
      %v4897 = vld [vmem:[%s4856 + $0x140] sm:$0xff]
      %v4898 = vld [vmem:[%s4856 + $0x148] sm:$0xff]
      %v4899 = vld [vmem:[%s4856 + $0x150] sm:$0xff]
      %v4900 = vld [vmem:[%s4856 + $0x158] sm:$0xff]
      %v4901 = vld [vmem:[%s4856 + $0x160] sm:$0xff]
      %v4902 = vld [vmem:[%s4856 + $0x168] sm:$0xff]
      %v4903 = vld [vmem:[%s4856 + $0x170] sm:$0xff]
      %v4904 = vld [vmem:[%s4856 + $0x178] sm:$0xff]
      %v4905 = vld [vmem:[%s4856 + $0x180] sm:$0xff]
      %v4906 = vld [vmem:[%s4856 + $0x188] sm:$0xff]
      %v4907 = vld [vmem:[%s4856 + $0x190] sm:$0xff]
      %v4908 = vld [vmem:[%s4856 + $0x198] sm:$0xff]
      %v4909 = vld [vmem:[%s4856 + $0x1a0] sm:$0xff]
      %v4910 = vld [vmem:[%s4856 + $0x1a8] sm:$0xff]
      %v4911 = vld [vmem:[%s4856 + $0x1b0] sm:$0xff]
      %v4912 = vld [vmem:[%s4856 + $0x1b8] sm:$0xff]
      %v4913 = vld [vmem:[%s4856 + $0x1c0] sm:$0xff]
      %v4914 = vld [vmem:[%s4856 + $0x1c8] sm:$0xff]
      %v4915 = vld [vmem:[%s4856 + $0x1d0] sm:$0xff]
      %v4916 = vld [vmem:[%s4856 + $0x1d8] sm:$0xff]
      %v4917 = vld [vmem:[%s4856 + $0x1e0] sm:$0xff]
      %v4918 = vld [vmem:[%s4856 + $0x1e8] sm:$0xff]
      %v4919 = vld [vmem:[%s4856 + $0x1f0] sm:$0xff]
      %v4920 = vld [vmem:[%s4856 + $0x1f8] sm:$0xff]
      %v4921 = vld [vmem:[%s4856 + $0x200] sm:$0xff]
      %v4922 = vld [vmem:[%s4856 + $0x208] sm:$0xff]
      %v4923 = vld [vmem:[%s4856 + $0x210] sm:$0xff]
      %v4924 = vld [vmem:[%s4856 + $0x218] sm:$0xff]
      %v4925 = vld [vmem:[%s4856 + $0x220] sm:$0xff]
      %v4926 = vld [vmem:[%s4856 + $0x228] sm:$0xff]
      %v4927 = vld [vmem:[%s4856 + $0x230] sm:$0xff]
      %v4928 = vld [vmem:[%s4856 + $0x238] sm:$0xff]
      %v4929 = vld [vmem:[%s4856 + $0x240] sm:$0xff]
      %v4930 = vld [vmem:[%s4856 + $0x248] sm:$0xff]
      %v4931 = vld [vmem:[%s4856 + $0x250] sm:$0xff]
      %v4932 = vld [vmem:[%s4856 + $0x258] sm:$0xff]
      %v4933 = vld [vmem:[%s4856 + $0x260] sm:$0xff]
      %v4934 = vld [vmem:[%s4856 + $0x268] sm:$0xff]
      %v4935 = vld [vmem:[%s4856 + $0x270] sm:$0xff]
      %v4936 = vld [vmem:[%s4856 + $0x278] sm:$0xff]
      %v4937 = vld [vmem:[%s4856 + $0x280] sm:$0xff]
      %v4938 = vld [vmem:[%s4856 + $0x288] sm:$0xff]
      %v4939 = vld [vmem:[%s4856 + $0x290] sm:$0xff]
      %v4940 = vld [vmem:[%s4856 + $0x298] sm:$0xff]
      %v4941 = vld [vmem:[%s4856 + $0x2a0] sm:$0xff]
      %v4942 = vld [vmem:[%s4856 + $0x2a8] sm:$0xff]
      %v4943 = vld [vmem:[%s4856 + $0x2b0] sm:$0xff]
      %v4944 = vld [vmem:[%s4856 + $0x2b8] sm:$0xff]
      %v4945 = vld [vmem:[%s4856 + $0x2c0] sm:$0xff]
      %v4946 = vld [vmem:[%s4856 + $0x2c8] sm:$0xff]
      %v4947 = vld [vmem:[%s4856 + $0x2d0] sm:$0xff]
      %v4948 = vld [vmem:[%s4856 + $0x2d8] sm:$0xff]
      %v4949 = vld [vmem:[%s4856 + $0x2e0] sm:$0xff]
      %v4950 = vld [vmem:[%s4856 + $0x2e8] sm:$0xff]
      %v4951 = vld [vmem:[%s4856 + $0x2f0] sm:$0xff]
      %v4952 = vld [vmem:[%s4856 + $0x2f8] sm:$0xff]
      %v4953 = vld [vmem:[%s4856 + $0x300] sm:$0xff]
      %v4954 = vld [vmem:[%s4856 + $0x308] sm:$0xff]
      %v4955 = vld [vmem:[%s4856 + $0x310] sm:$0xff]
      %v4956 = vld [vmem:[%s4856 + $0x318] sm:$0xff]
      %v4957 = vld [vmem:[%s4856 + $0x320] sm:$0xff]
      %v4958 = vld [vmem:[%s4856 + $0x328] sm:$0xff]
      %v4999 = vrot.slane %v4714, 7
      %vm5000 = vcmask 1041409
      %v5001 = vsel %vm5000, %v4999, %v4710
      %v5002 = vrot.slane %v4718, 6
      %vm5003 = vcmask 1042434
      %v5004 = vsel %vm5003, %v5002, %v5001
      %v5005 = vrot.slane %v4722, 5
      %vm5006 = vcmask 1043459
      %v5007 = vsel %vm5006, %v5005, %v5004
      %v5008 = vrot.slane %v4726, 4
      %vm5009 = vcmask 1044484
      %v5010 = vsel %vm5009, %v5008, %v5007
      %v5011 = vrot.slane %v4730, 3
      %vm5012 = vcmask 1045509
      %v5013 = vsel %vm5012, %v5011, %v5010
      %v5014 = vrot.slane %v4734, 2
      %vm5015 = vcmask 1046534
      %v5016 = vsel %vm5015, %v5014, %v5013
      %v5017 = vrot.slane %v4738, 1
      %vm5018 = vcmask 1047559
      %v5019 = vsel %vm5018, %v5017, %v5016
      %v5020 = vrot.slane %v4715, 7
      %v5021 = vsel %vm5000, %v5020, %v4711
      %v5022 = vrot.slane %v4719, 6
      %v5023 = vsel %vm5003, %v5022, %v5021
      %v5024 = vrot.slane %v4723, 5
      %v5025 = vsel %vm5006, %v5024, %v5023
      %v5026 = vrot.slane %v4727, 4
      %v5027 = vsel %vm5009, %v5026, %v5025
      %v5028 = vrot.slane %v4731, 3
      %v5029 = vsel %vm5012, %v5028, %v5027
      %v5030 = vrot.slane %v4735, 2
      %v5031 = vsel %vm5015, %v5030, %v5029
      %v5032 = vrot.slane %v4739, 1
      %v5033 = vsel %vm5018, %v5032, %v5031
      %v5034 = vrot.slane %v4716, 7
      %v5035 = vsel %vm5000, %v5034, %v4712
      %v5036 = vrot.slane %v4720, 6
      %v5037 = vsel %vm5003, %v5036, %v5035
      %v5038 = vrot.slane %v4724, 5
      %v5039 = vsel %vm5006, %v5038, %v5037
      %v5040 = vrot.slane %v4728, 4
      %v5041 = vsel %vm5009, %v5040, %v5039
      %v5042 = vrot.slane %v4732, 3
      %v5043 = vsel %vm5012, %v5042, %v5041
      %v5044 = vrot.slane %v4736, 2
      %v5045 = vsel %vm5015, %v5044, %v5043
      %v5046 = vrot.slane %v4740, 1
      %v5047 = vsel %vm5018, %v5046, %v5045
      %v5048 = vrot.slane %v4717, 7
      %v5049 = vsel %vm5000, %v5048, %v4713
      %v5050 = vrot.slane %v4721, 6
      %v5051 = vsel %vm5003, %v5050, %v5049
      %v5052 = vrot.slane %v4725, 5
      %v5053 = vsel %vm5006, %v5052, %v5051
      %v5054 = vrot.slane %v4729, 4
      %v5055 = vsel %vm5009, %v5054, %v5053
      %v5056 = vrot.slane %v4733, 3
      %v5057 = vsel %vm5012, %v5056, %v5055
      %v5058 = vrot.slane %v4737, 2
      %v5059 = vsel %vm5015, %v5058, %v5057
      %v5060 = vrot.slane %v4741, 1
      %v5061 = vsel %vm5018, %v5060, %v5059
      %v5062 = vrot.slane %v4746, 7
      %v5063 = vsel %vm5000, %v5062, %v4742
      %v5064 = vrot.slane %v4747, 7
      %v5065 = vsel %vm5000, %v5064, %v4743
      %v5066 = vrot.slane %v4748, 7
      %v5067 = vsel %vm5000, %v5066, %v4744
      %v5068 = vrot.slane %v4749, 7
      %v5069 = vsel %vm5000, %v5068, %v4745
      %vm5076 = vcmask 195584
      %v5077 = vsel %vm5076, %v5061, 0
      %v5079 = vsel %vm5076, %v5069, 0
      %5081 = vmatprep.subr.mxu0 %v4888
      %5082 = vmatpush1.msra.mxu0 %v4887
      %5083 = vmatprep.subr.mxu0 %v4886
      %5084 = vmatpush1.msra.mxu0 %v4885
      %5085 = vmatprep.subr.mxu0 %v4884
      %5086 = vmatpush1.msra.mxu0 %v4883
      %5087 = vmatprep.subr.mxu0 %v4882
      %5088 = vmatpush1.msra.mxu0 %v4881
      %5089 = vmatprep.subr.mxu0 %v4880
      %5090 = vmatpush1.msra.mxu0 %v4879
      %5091 = vmatprep.subr.mxu0 %v4878
      %5092 = vmatpush1.msra.mxu0 %v4877
      %5093 = vmatprep.subr.mxu0 %v4876
      %5094 = vmatpush1.msra.mxu0 %v4875
      %5095 = vmatprep.subr.mxu0 %v4874
      %5096 = vmatpush1.msra.mxu0 %v4873
      %5097 = vmatprep.subr.mxu0 %v4872
      %5098 = vmatpush1.msra.mxu0 %v4871
      %5099 = vmatprep.subr.mxu0 %v4870
      %5100 = vmatpush1.msra.mxu0 %v4869
      %5101 = vmatprep.subr.mxu0 %v4868
      %5102 = vmatpush1.msra.mxu0 %v4867
      %5103 = vmatprep.subr.mxu0 %v4866
      %5104 = vmatpush1.msra.mxu0 %v4865
      %5105 = vmatprep.subr.mxu0 %v4864
      %5106 = vmatpush1.msra.mxu0 %v4863
      %5107 = vmatprep.subr.mxu0 %v4862
      %5108 = vmatpush1.msra.mxu0 %v4861
      %5109 = vmatprep.subr.mxu0 %v4860
      %5110 = vmatpush1.msra.mxu0 %v4859
      %5111 = vmatprep.subr.mxu0 %v4858
      %5112 = vmatpush1.msra.mxu0 %v4857
      %5113 = vmatprep.subr.mxu0 %v4920
      %5114 = vmatpush2.msra.mxu0 %v4919
      %5115 = vmatprep.subr.mxu0 %v4918
      %5116 = vmatpush2.msra.mxu0 %v4917
      %5117 = vmatprep.subr.mxu0 %v4916
      %5118 = vmatpush2.msra.mxu0 %v4915
      %5119 = vmatprep.subr.mxu0 %v4914
      %5120 = vmatpush2.msra.mxu0 %v4913
      %5121 = vmatprep.subr.mxu0 %v4912
      %5122 = vmatpush2.msra.mxu0 %v4911
      %5123 = vmatprep.subr.mxu0 %v4910
      %5124 = vmatpush2.msra.mxu0 %v4909
      %5125 = vmatprep.subr.mxu0 %v4908
      %5126 = vmatpush2.msra.mxu0 %v4907
      %5127 = vmatprep.subr.mxu0 %v4906
      %5128 = vmatpush2.msra.mxu0 %v4905
      %5129 = vmatprep.subr.mxu0 %v4904
      %5130 = vmatpush2.msra.mxu0 %v4903
      %5131 = vmatprep.subr.mxu0 %v4902
      %5132 = vmatpush2.msra.mxu0 %v4901
      %5133 = vmatprep.subr.mxu0 %v4900
      %5134 = vmatpush2.msra.mxu0 %v4899
      %5135 = vmatprep.subr.mxu0 %v4898
      %5136 = vmatpush2.msra.mxu0 %v4897
      %5137 = vmatprep.subr.mxu0 %v4896
      %5138 = vmatpush2.msra.mxu0 %v4895
      %5139 = vmatprep.subr.mxu0 %v4894
      %5140 = vmatpush2.msra.mxu0 %v4893
      %5141 = vmatprep.subr.mxu0 %v4892
      %5142 = vmatpush2.msra.mxu0 %v4891
      %5143 = vmatprep.subr.mxu0 %v4890
      %5144 = vmatpush2.msra.mxu0 %v4889
      %5145 = vmatprep.mubr.f32.mxu0 %v5033
      %5146 = vmatmul.mubr.f32.gmra.mxu0 %v5019
      %v5147 = vpop.f32.mrf.mxu0
      %v5148 = vadd.f32 0.0, %v5147
      %v5149 = vpop.f32.mrf.mxu0
      %v5150 = vadd.f32 0.0, %v5149
      %5151 = vmatprep.mubr.f32.mxu0 %v5065
      %5152 = vmatmul.mubr.f32.gmra.mxu0 %v5063
      %v5153 = vpop.f32.mrf.mxu0
      %v5154 = vadd.f32 0.0, %v5153
      %v5155 = vpop.f32.mrf.mxu0
      %v5156 = vadd.f32 0.0, %v5155
      %5157 = vdwg.mxu0
      %5158 = vmatprep.subr.mxu0 %v4952
      %5159 = vmatpush1.msra.mxu0 %v4951
      %5160 = vmatprep.subr.mxu0 %v4950
      %5161 = vmatpush1.msra.mxu0 %v4949
      %5162 = vmatprep.subr.mxu0 %v4948
      %5163 = vmatpush1.msra.mxu0 %v4947
      %5164 = vmatprep.subr.mxu0 %v4946
      %5165 = vmatpush1.msra.mxu0 %v4945
      %5166 = vmatprep.subr.mxu0 %v4944
      %5167 = vmatpush1.msra.mxu0 %v4943
      %5168 = vmatprep.subr.mxu0 %v4942
      %5169 = vmatpush1.msra.mxu0 %v4941
      %5170 = vmatprep.subr.mxu0 %v4940
      %5171 = vmatpush1.msra.mxu0 %v4939
      %5172 = vmatprep.subr.mxu0 %v4938
      %5173 = vmatpush1.msra.mxu0 %v4937
      %5174 = vmatprep.subr.mxu0 %v4936
      %5175 = vmatpush1.msra.mxu0 %v4935
      %5176 = vmatprep.subr.mxu0 %v4934
      %5177 = vmatpush1.msra.mxu0 %v4933
      %5178 = vmatprep.subr.mxu0 %v4932
      %5179 = vmatpush1.msra.mxu0 %v4931
      %5180 = vmatprep.subr.mxu0 %v4930
      %5181 = vmatpush1.msra.mxu0 %v4929
      %5182 = vmatprep.subr.mxu0 %v4928
      %5183 = vmatpush1.msra.mxu0 %v4927
      %5184 = vmatprep.subr.mxu0 %v4926
      %5185 = vmatpush1.msra.mxu0 %v4925
      %5186 = vmatprep.subr.mxu0 %v4924
      %5187 = vmatpush1.msra.mxu0 %v4923
      %5188 = vmatprep.subr.mxu0 %v4922
      %5189 = vmatpush1.msra.mxu0 %v4921
      %5190 = vmatprep.subr.mxu0 0.0
      %5191 = vmatpush2.msra.mxu0 0.0
      %5192 = vmatprep.subr.mxu0 0.0
      %5193 = vmatpush2.msra.mxu0 0.0
      %5194 = vmatprep.subr.mxu0 0.0
      %5195 = vmatpush2.msra.mxu0 0.0
      %5196 = vmatprep.subr.mxu0 0.0
      %5197 = vmatpush2.msra.mxu0 0.0
      %5198 = vmatprep.subr.mxu0 0.0
      %5199 = vmatpush2.msra.mxu0 0.0
      %5200 = vmatprep.subr.mxu0 0.0
      %5201 = vmatpush2.msra.mxu0 0.0
      %5202 = vmatprep.subr.mxu0 0.0
      %5203 = vmatpush2.msra.mxu0 0.0
      %5204 = vmatprep.subr.mxu0 0.0
      %5205 = vmatpush2.msra.mxu0 0.0
      %5206 = vmatprep.subr.mxu0 0.0
      %5207 = vmatpush2.msra.mxu0 0.0
      %5208 = vmatprep.subr.mxu0 0.0
      %5209 = vmatpush2.msra.mxu0 0.0
      %5210 = vmatprep.subr.mxu0 0.0
      %5211 = vmatpush2.msra.mxu0 0.0
      %5212 = vmatprep.subr.mxu0 0.0
      %5213 = vmatpush2.msra.mxu0 0.0
      %5214 = vmatprep.subr.mxu0 0.0
      %5215 = vmatpush2.msra.mxu0 0.0
      %5216 = vmatprep.subr.mxu0 %v4958
      %5217 = vmatpush2.msra.mxu0 %v4957
      %5218 = vmatprep.subr.mxu0 %v4956
      %5219 = vmatpush2.msra.mxu0 %v4955
      %5220 = vmatprep.subr.mxu0 %v4954
      %5221 = vmatpush2.msra.mxu0 %v4953
      %5222 = vmatprep.mubr.f32.mxu0 %v5077
      %5223 = vmatmul.mubr.f32.gmra.mxu0 %v5047
      %v5224 = vpop.f32.mrf.mxu0
      %v5225 = vadd.f32 %v5148, %v5224
      %v5226 = vpop.f32.mrf.mxu0
      %v5227 = vadd.f32 %v5150, %v5226
      %5228 = vmatprep.mubr.f32.mxu0 %v5079
      %5229 = vmatmul.mubr.f32.gmra.mxu0 %v5067
      %v5230 = vpop.f32.mrf.mxu0
      %v5231 = vadd.f32 %v5154, %v5230
      %v5232 = vpop.f32.mrf.mxu0
      %v5233 = vadd.f32 %v5156, %v5232
      %5234 = vdwg.mxu0
      %v5239 = vrot.slane %v4710, 7
      %v5240 = vsel %vm5000, %v5239, %v4706
      %v5241 = vrot.slane %v4714, 6
      %v5242 = vsel %vm5003, %v5241, %v5240
      %v5243 = vrot.slane %v4718, 5
      %v5244 = vsel %vm5006, %v5243, %v5242
      %v5245 = vrot.slane %v4722, 4
      %v5246 = vsel %vm5009, %v5245, %v5244
      %v5247 = vrot.slane %v4726, 3
      %v5248 = vsel %vm5012, %v5247, %v5246
      %v5249 = vrot.slane %v4730, 2
      %v5250 = vsel %vm5015, %v5249, %v5248
      %v5251 = vrot.slane %v4734, 1
      %v5252 = vsel %vm5018, %v5251, %v5250
      %v5253 = vrot.slane %v4711, 7
      %v5254 = vsel %vm5000, %v5253, %v4707
      %v5255 = vrot.slane %v4715, 6
      %v5256 = vsel %vm5003, %v5255, %v5254
      %v5257 = vrot.slane %v4719, 5
      %v5258 = vsel %vm5006, %v5257, %v5256
      %v5259 = vrot.slane %v4723, 4
      %v5260 = vsel %vm5009, %v5259, %v5258
      %v5261 = vrot.slane %v4727, 3
      %v5262 = vsel %vm5012, %v5261, %v5260
      %v5263 = vrot.slane %v4731, 2
      %v5264 = vsel %vm5015, %v5263, %v5262
      %v5265 = vrot.slane %v4735, 1
      %v5266 = vsel %vm5018, %v5265, %v5264
      %v5267 = vrot.slane %v4712, 7
      %v5268 = vsel %vm5000, %v5267, %v4708
      %v5269 = vrot.slane %v4716, 6
      %v5270 = vsel %vm5003, %v5269, %v5268
      %v5271 = vrot.slane %v4720, 5
      %v5272 = vsel %vm5006, %v5271, %v5270
      %v5273 = vrot.slane %v4724, 4
      %v5274 = vsel %vm5009, %v5273, %v5272
      %v5275 = vrot.slane %v4728, 3
      %v5276 = vsel %vm5012, %v5275, %v5274
      %v5277 = vrot.slane %v4732, 2
      %v5278 = vsel %vm5015, %v5277, %v5276
      %v5279 = vrot.slane %v4736, 1
      %v5280 = vsel %vm5018, %v5279, %v5278
      %v5281 = vrot.slane %v4713, 7
      %v5282 = vsel %vm5000, %v5281, %v4709
      %v5283 = vrot.slane %v4717, 6
      %v5284 = vsel %vm5003, %v5283, %v5282
      %v5285 = vrot.slane %v4721, 5
      %v5286 = vsel %vm5006, %v5285, %v5284
      %v5287 = vrot.slane %v4725, 4
      %v5288 = vsel %vm5009, %v5287, %v5286
      %v5289 = vrot.slane %v4729, 3
      %v5290 = vsel %vm5012, %v5289, %v5288
      %v5291 = vrot.slane %v4733, 2
      %v5292 = vsel %vm5015, %v5291, %v5290
      %v5293 = vrot.slane %v4737, 1
      %v5294 = vsel %vm5018, %v5293, %v5292
      %v5295 = vrot.slane %v4742, 7
      %v5296 = vsel %vm5000, %v5295, %v4738
      %v5297 = vrot.slane %v4743, 7
      %v5298 = vsel %vm5000, %v5297, %v4739
      %v5299 = vrot.slane %v4744, 7
      %v5300 = vsel %vm5000, %v5299, %v4740
      %v5301 = vrot.slane %v4745, 7
      %v5302 = vsel %vm5000, %v5301, %v4741
      %v5309 = vsel %vm5076, %v5294, 0
      %v5311 = vsel %vm5076, %v5302, 0
      %5313 = vmatprep.subr.mxu0 %v4785
      %5314 = vmatpush1.msra.mxu0 %v4784
      %5315 = vmatprep.subr.mxu0 %v4783
      %5316 = vmatpush1.msra.mxu0 %v4782
      %5317 = vmatprep.subr.mxu0 %v4781
      %5318 = vmatpush1.msra.mxu0 %v4780
      %5319 = vmatprep.subr.mxu0 %v4779
      %5320 = vmatpush1.msra.mxu0 %v4778
      %5321 = vmatprep.subr.mxu0 %v4777
      %5322 = vmatpush1.msra.mxu0 %v4776
      %5323 = vmatprep.subr.mxu0 %v4775
      %5324 = vmatpush1.msra.mxu0 %v4774
      %5325 = vmatprep.subr.mxu0 %v4773
      %5326 = vmatpush1.msra.mxu0 %v4772
      %5327 = vmatprep.subr.mxu0 %v4771
      %5328 = vmatpush1.msra.mxu0 %v4770
      %5329 = vmatprep.subr.mxu0 %v4769
      %5330 = vmatpush1.msra.mxu0 %v4768
      %5331 = vmatprep.subr.mxu0 %v4767
      %5332 = vmatpush1.msra.mxu0 %v4766
      %5333 = vmatprep.subr.mxu0 %v4765
      %5334 = vmatpush1.msra.mxu0 %v4764
      %5335 = vmatprep.subr.mxu0 %v4763
      %5336 = vmatpush1.msra.mxu0 %v4762
      %5337 = vmatprep.subr.mxu0 %v4761
      %5338 = vmatpush1.msra.mxu0 %v4760
      %5339 = vmatprep.subr.mxu0 %v4759
      %5340 = vmatpush1.msra.mxu0 %v4758
      %5341 = vmatprep.subr.mxu0 %v4757
      %5342 = vmatpush1.msra.mxu0 %v4756
      %5343 = vmatprep.subr.mxu0 %v4755
      %5344 = vmatpush1.msra.mxu0 %v4754
      %5345 = vmatprep.subr.mxu0 %v4817
      %5346 = vmatpush2.msra.mxu0 %v4816
      %5347 = vmatprep.subr.mxu0 %v4815
      %5348 = vmatpush2.msra.mxu0 %v4814
      %5349 = vmatprep.subr.mxu0 %v4813
      %5350 = vmatpush2.msra.mxu0 %v4812
      %5351 = vmatprep.subr.mxu0 %v4811
      %5352 = vmatpush2.msra.mxu0 %v4810
      %5353 = vmatprep.subr.mxu0 %v4809
      %5354 = vmatpush2.msra.mxu0 %v4808
      %5355 = vmatprep.subr.mxu0 %v4807
      %5356 = vmatpush2.msra.mxu0 %v4806
      %5357 = vmatprep.subr.mxu0 %v4805
      %5358 = vmatpush2.msra.mxu0 %v4804
      %5359 = vmatprep.subr.mxu0 %v4803
      %5360 = vmatpush2.msra.mxu0 %v4802
      %5361 = vmatprep.subr.mxu0 %v4801
      %5362 = vmatpush2.msra.mxu0 %v4800
      %5363 = vmatprep.subr.mxu0 %v4799
      %5364 = vmatpush2.msra.mxu0 %v4798
      %5365 = vmatprep.subr.mxu0 %v4797
      %5366 = vmatpush2.msra.mxu0 %v4796
      %5367 = vmatprep.subr.mxu0 %v4795
      %5368 = vmatpush2.msra.mxu0 %v4794
      %5369 = vmatprep.subr.mxu0 %v4793
      %5370 = vmatpush2.msra.mxu0 %v4792
      %5371 = vmatprep.subr.mxu0 %v4791
      %5372 = vmatpush2.msra.mxu0 %v4790
      %5373 = vmatprep.subr.mxu0 %v4789
      %5374 = vmatpush2.msra.mxu0 %v4788
      %5375 = vmatprep.subr.mxu0 %v4787
      %5376 = vmatpush2.msra.mxu0 %v4786
      %5377 = vmatprep.mubr.f32.mxu0 %v5266
      %5378 = vmatmul.mubr.f32.gmra.mxu0 %v5252
      %v5379 = vpop.f32.mrf.mxu0
      %v5380 = vadd.f32 %v5225, %v5379
      %v5381 = vpop.f32.mrf.mxu0
      %v5382 = vadd.f32 %v5227, %v5381
      %5383 = vmatprep.mubr.f32.mxu0 %v5298
      %5384 = vmatmul.mubr.f32.gmra.mxu0 %v5296
      %v5385 = vpop.f32.mrf.mxu0
      %v5386 = vadd.f32 %v5231, %v5385
      %v5387 = vpop.f32.mrf.mxu0
      %v5388 = vadd.f32 %v5233, %v5387
      %5389 = vdwg.mxu0
      %5390 = vmatprep.subr.mxu0 %v4849
      %5391 = vmatpush1.msra.mxu0 %v4848
      %5392 = vmatprep.subr.mxu0 %v4847
      %5393 = vmatpush1.msra.mxu0 %v4846
      %5394 = vmatprep.subr.mxu0 %v4845
      %5395 = vmatpush1.msra.mxu0 %v4844
      %5396 = vmatprep.subr.mxu0 %v4843
      %5397 = vmatpush1.msra.mxu0 %v4842
      %5398 = vmatprep.subr.mxu0 %v4841
      %5399 = vmatpush1.msra.mxu0 %v4840
      %5400 = vmatprep.subr.mxu0 %v4839
      %5401 = vmatpush1.msra.mxu0 %v4838
      %5402 = vmatprep.subr.mxu0 %v4837
      %5403 = vmatpush1.msra.mxu0 %v4836
      %5404 = vmatprep.subr.mxu0 %v4835
      %5405 = vmatpush1.msra.mxu0 %v4834
      %5406 = vmatprep.subr.mxu0 %v4833
      %5407 = vmatpush1.msra.mxu0 %v4832
      %5408 = vmatprep.subr.mxu0 %v4831
      %5409 = vmatpush1.msra.mxu0 %v4830
      %5410 = vmatprep.subr.mxu0 %v4829
      %5411 = vmatpush1.msra.mxu0 %v4828
      %5412 = vmatprep.subr.mxu0 %v4827
      %5413 = vmatpush1.msra.mxu0 %v4826
      %5414 = vmatprep.subr.mxu0 %v4825
      %5415 = vmatpush1.msra.mxu0 %v4824
      %5416 = vmatprep.subr.mxu0 %v4823
      %5417 = vmatpush1.msra.mxu0 %v4822
      %5418 = vmatprep.subr.mxu0 %v4821
      %5419 = vmatpush1.msra.mxu0 %v4820
      %5420 = vmatprep.subr.mxu0 %v4819
      %5421 = vmatpush1.msra.mxu0 %v4818
      %5422 = vmatprep.subr.mxu0 0.0
      %5423 = vmatpush2.msra.mxu0 0.0
      %5424 = vmatprep.subr.mxu0 0.0
      %5425 = vmatpush2.msra.mxu0 0.0
      %5426 = vmatprep.subr.mxu0 0.0
      %5427 = vmatpush2.msra.mxu0 0.0
      %5428 = vmatprep.subr.mxu0 0.0
      %5429 = vmatpush2.msra.mxu0 0.0
      %5430 = vmatprep.subr.mxu0 0.0
      %5431 = vmatpush2.msra.mxu0 0.0
      %5432 = vmatprep.subr.mxu0 0.0
      %5433 = vmatpush2.msra.mxu0 0.0
      %5434 = vmatprep.subr.mxu0 0.0
      %5435 = vmatpush2.msra.mxu0 0.0
      %5436 = vmatprep.subr.mxu0 0.0
      %5437 = vmatpush2.msra.mxu0 0.0
      %5438 = vmatprep.subr.mxu0 0.0
      %5439 = vmatpush2.msra.mxu0 0.0
      %5440 = vmatprep.subr.mxu0 0.0
      %5441 = vmatpush2.msra.mxu0 0.0
      %5442 = vmatprep.subr.mxu0 0.0
      %5443 = vmatpush2.msra.mxu0 0.0
      %5444 = vmatprep.subr.mxu0 0.0
      %5445 = vmatpush2.msra.mxu0 0.0
      %5446 = vmatprep.subr.mxu0 0.0
      %5447 = vmatpush2.msra.mxu0 0.0
      %5448 = vmatprep.subr.mxu0 %v4855
      %5449 = vmatpush2.msra.mxu0 %v4854
      %5450 = vmatprep.subr.mxu0 %v4853
      %5451 = vmatpush2.msra.mxu0 %v4852
      %5452 = vmatprep.subr.mxu0 %v4851
      %5453 = vmatpush2.msra.mxu0 %v4850
      %5454 = vmatprep.mubr.f32.mxu0 %v5309
      %5455 = vmatmul.mubr.f32.gmra.mxu0 %v5280
      %v5456 = vpop.f32.mrf.mxu0
      %v5457 = vadd.f32 %v5380, %v5456
      %v5458 = vpop.f32.mrf.mxu0
      %v5459 = vadd.f32 %v5382, %v5458
      %5460 = vmatprep.mubr.f32.mxu0 %v5311
      %5461 = vmatmul.mubr.f32.gmra.mxu0 %v5300
      %v5462 = vpop.f32.mrf.mxu0
      %v5463 = vadd.f32 %v5386, %v5462
      %v5464 = vpop.f32.mrf.mxu0
      %v5465 = vadd.f32 %v5388, %v5464
      %5466 = vdwg.mxu0
      %s5467 = scalar_lea.vmem %s5, 1632
      %v5468 = vld [vmem:[%s5467] sm:$0xff]
      %v5469 = vld [vmem:[%s5467 + $0x8] sm:$0xff]
      %v5470 = vld [vmem:[%s5467 + $0x10] sm:$0xff]
      %v5471 = vld [vmem:[%s5467 + $0x18] sm:$0xff]
      %v5472 = vld [vmem:[%s5467 + $0x20] sm:$0xff]
      %v5473 = vld [vmem:[%s5467 + $0x28] sm:$0xff]
      %v5474 = vld [vmem:[%s5467 + $0x30] sm:$0xff]
      %v5475 = vld [vmem:[%s5467 + $0x38] sm:$0xff]
      %v5476 = vld [vmem:[%s5467 + $0x40] sm:$0xff]
      %v5477 = vld [vmem:[%s5467 + $0x48] sm:$0xff]
      %v5478 = vld [vmem:[%s5467 + $0x50] sm:$0xff]
      %v5479 = vld [vmem:[%s5467 + $0x58] sm:$0xff]
      %v5480 = vld [vmem:[%s5467 + $0x60] sm:$0xff]
      %v5481 = vld [vmem:[%s5467 + $0x68] sm:$0xff]
      %v5482 = vld [vmem:[%s5467 + $0x70] sm:$0xff]
      %v5483 = vld [vmem:[%s5467 + $0x78] sm:$0xff]
      %v5484 = vld [vmem:[%s5467 + $0x80] sm:$0xff]
      %v5485 = vld [vmem:[%s5467 + $0x88] sm:$0xff]
      %v5486 = vld [vmem:[%s5467 + $0x90] sm:$0xff]
      %v5487 = vld [vmem:[%s5467 + $0x98] sm:$0xff]
      %v5488 = vld [vmem:[%s5467 + $0xa0] sm:$0xff]
      %v5489 = vld [vmem:[%s5467 + $0xa8] sm:$0xff]
      %v5490 = vld [vmem:[%s5467 + $0xb0] sm:$0xff]
      %v5491 = vld [vmem:[%s5467 + $0xb8] sm:$0xff]
      %v5492 = vld [vmem:[%s5467 + $0xc0] sm:$0xff]
      %v5493 = vld [vmem:[%s5467 + $0xc8] sm:$0xff]
      %v5494 = vld [vmem:[%s5467 + $0xd0] sm:$0xff]
      %v5495 = vld [vmem:[%s5467 + $0xd8] sm:$0xff]
      %v5496 = vld [vmem:[%s5467 + $0xe0] sm:$0xff]
      %v5497 = vld [vmem:[%s5467 + $0xe8] sm:$0xff]
      %v5498 = vld [vmem:[%s5467 + $0xf0] sm:$0xff]
      %v5499 = vld [vmem:[%s5467 + $0xf8] sm:$0xff]
      %v5500 = vld [vmem:[%s5467 + $0x100] sm:$0xff]
      %v5501 = vld [vmem:[%s5467 + $0x108] sm:$0xff]
      %v5502 = vld [vmem:[%s5467 + $0x110] sm:$0xff]
      %v5503 = vld [vmem:[%s5467 + $0x118] sm:$0xff]
      %v5504 = vld [vmem:[%s5467 + $0x120] sm:$0xff]
      %v5505 = vld [vmem:[%s5467 + $0x128] sm:$0xff]
      %v5506 = vld [vmem:[%s5467 + $0x130] sm:$0xff]
      %v5507 = vld [vmem:[%s5467 + $0x138] sm:$0xff]
      %v5508 = vld [vmem:[%s5467 + $0x140] sm:$0xff]
      %v5509 = vld [vmem:[%s5467 + $0x148] sm:$0xff]
      %v5510 = vld [vmem:[%s5467 + $0x150] sm:$0xff]
      %v5511 = vld [vmem:[%s5467 + $0x158] sm:$0xff]
      %v5512 = vld [vmem:[%s5467 + $0x160] sm:$0xff]
      %v5513 = vld [vmem:[%s5467 + $0x168] sm:$0xff]
      %v5514 = vld [vmem:[%s5467 + $0x170] sm:$0xff]
      %v5515 = vld [vmem:[%s5467 + $0x178] sm:$0xff]
      %v5516 = vld [vmem:[%s5467 + $0x180] sm:$0xff]
      %v5517 = vld [vmem:[%s5467 + $0x188] sm:$0xff]
      %v5518 = vld [vmem:[%s5467 + $0x190] sm:$0xff]
      %v5519 = vld [vmem:[%s5467 + $0x198] sm:$0xff]
      %v5520 = vld [vmem:[%s5467 + $0x1a0] sm:$0xff]
      %v5521 = vld [vmem:[%s5467 + $0x1a8] sm:$0xff]
      %v5522 = vld [vmem:[%s5467 + $0x1b0] sm:$0xff]
      %v5523 = vld [vmem:[%s5467 + $0x1b8] sm:$0xff]
      %v5524 = vld [vmem:[%s5467 + $0x1c0] sm:$0xff]
      %v5525 = vld [vmem:[%s5467 + $0x1c8] sm:$0xff]
      %v5526 = vld [vmem:[%s5467 + $0x1d0] sm:$0xff]
      %v5527 = vld [vmem:[%s5467 + $0x1d8] sm:$0xff]
      %v5528 = vld [vmem:[%s5467 + $0x1e0] sm:$0xff]
      %v5529 = vld [vmem:[%s5467 + $0x1e8] sm:$0xff]
      %v5530 = vld [vmem:[%s5467 + $0x1f0] sm:$0xff]
      %v5531 = vld [vmem:[%s5467 + $0x1f8] sm:$0xff]
      %v5532 = vld [vmem:[%s5467 + $0x200] sm:$0xff]
      %v5533 = vld [vmem:[%s5467 + $0x208] sm:$0xff]
      %v5534 = vld [vmem:[%s5467 + $0x210] sm:$0xff]
      %v5535 = vld [vmem:[%s5467 + $0x218] sm:$0xff]
      %v5536 = vld [vmem:[%s5467 + $0x220] sm:$0xff]
      %v5537 = vld [vmem:[%s5467 + $0x228] sm:$0xff]
      %v5538 = vld [vmem:[%s5467 + $0x230] sm:$0xff]
      %v5539 = vld [vmem:[%s5467 + $0x238] sm:$0xff]
      %v5540 = vld [vmem:[%s5467 + $0x240] sm:$0xff]
      %v5541 = vld [vmem:[%s5467 + $0x248] sm:$0xff]
      %v5542 = vld [vmem:[%s5467 + $0x250] sm:$0xff]
      %v5543 = vld [vmem:[%s5467 + $0x258] sm:$0xff]
      %v5544 = vld [vmem:[%s5467 + $0x260] sm:$0xff]
      %v5545 = vld [vmem:[%s5467 + $0x268] sm:$0xff]
      %v5546 = vld [vmem:[%s5467 + $0x270] sm:$0xff]
      %v5547 = vld [vmem:[%s5467 + $0x278] sm:$0xff]
      %v5548 = vld [vmem:[%s5467 + $0x280] sm:$0xff]
      %v5549 = vld [vmem:[%s5467 + $0x288] sm:$0xff]
      %v5550 = vld [vmem:[%s5467 + $0x290] sm:$0xff]
      %v5551 = vld [vmem:[%s5467 + $0x298] sm:$0xff]
      %v5552 = vld [vmem:[%s5467 + $0x2a0] sm:$0xff]
      %v5553 = vld [vmem:[%s5467 + $0x2a8] sm:$0xff]
      %v5554 = vld [vmem:[%s5467 + $0x2b0] sm:$0xff]
      %v5555 = vld [vmem:[%s5467 + $0x2b8] sm:$0xff]
      %v5556 = vld [vmem:[%s5467 + $0x2c0] sm:$0xff]
      %v5557 = vld [vmem:[%s5467 + $0x2c8] sm:$0xff]
      %v5558 = vld [vmem:[%s5467 + $0x2d0] sm:$0xff]
      %v5559 = vld [vmem:[%s5467 + $0x2d8] sm:$0xff]
      %v5560 = vld [vmem:[%s5467 + $0x2e0] sm:$0xff]
      %v5561 = vld [vmem:[%s5467 + $0x2e8] sm:$0xff]
      %v5562 = vld [vmem:[%s5467 + $0x2f0] sm:$0xff]
      %v5563 = vld [vmem:[%s5467 + $0x2f8] sm:$0xff]
      %v5564 = vld [vmem:[%s5467 + $0x300] sm:$0xff]
      %v5565 = vld [vmem:[%s5467 + $0x308] sm:$0xff]
      %v5566 = vld [vmem:[%s5467 + $0x310] sm:$0xff]
      %v5567 = vld [vmem:[%s5467 + $0x318] sm:$0xff]
      %v5568 = vld [vmem:[%s5467 + $0x320] sm:$0xff]
      %v5569 = vld [vmem:[%s5467 + $0x328] sm:$0xff]
      %v5574 = vrot.slane %v4718, 7
      %v5575 = vsel %vm5000, %v5574, %v4714
      %v5576 = vrot.slane %v4722, 6
      %v5577 = vsel %vm5003, %v5576, %v5575
      %v5578 = vrot.slane %v4726, 5
      %v5579 = vsel %vm5006, %v5578, %v5577
      %v5580 = vrot.slane %v4730, 4
      %v5581 = vsel %vm5009, %v5580, %v5579
      %v5582 = vrot.slane %v4734, 3
      %v5583 = vsel %vm5012, %v5582, %v5581
      %v5584 = vrot.slane %v4738, 2
      %v5585 = vsel %vm5015, %v5584, %v5583
      %v5586 = vrot.slane %v4742, 1
      %v5587 = vsel %vm5018, %v5586, %v5585
      %v5588 = vrot.slane %v4719, 7
      %v5589 = vsel %vm5000, %v5588, %v4715
      %v5590 = vrot.slane %v4723, 6
      %v5591 = vsel %vm5003, %v5590, %v5589
      %v5592 = vrot.slane %v4727, 5
      %v5593 = vsel %vm5006, %v5592, %v5591
      %v5594 = vrot.slane %v4731, 4
      %v5595 = vsel %vm5009, %v5594, %v5593
      %v5596 = vrot.slane %v4735, 3
      %v5597 = vsel %vm5012, %v5596, %v5595
      %v5598 = vrot.slane %v4739, 2
      %v5599 = vsel %vm5015, %v5598, %v5597
      %v5600 = vrot.slane %v4743, 1
      %v5601 = vsel %vm5018, %v5600, %v5599
      %v5602 = vrot.slane %v4720, 7
      %v5603 = vsel %vm5000, %v5602, %v4716
      %v5604 = vrot.slane %v4724, 6
      %v5605 = vsel %vm5003, %v5604, %v5603
      %v5606 = vrot.slane %v4728, 5
      %v5607 = vsel %vm5006, %v5606, %v5605
      %v5608 = vrot.slane %v4732, 4
      %v5609 = vsel %vm5009, %v5608, %v5607
      %v5610 = vrot.slane %v4736, 3
      %v5611 = vsel %vm5012, %v5610, %v5609
      %v5612 = vrot.slane %v4740, 2
      %v5613 = vsel %vm5015, %v5612, %v5611
      %v5614 = vrot.slane %v4744, 1
      %v5615 = vsel %vm5018, %v5614, %v5613
      %v5616 = vrot.slane %v4721, 7
      %v5617 = vsel %vm5000, %v5616, %v4717
      %v5618 = vrot.slane %v4725, 6
      %v5619 = vsel %vm5003, %v5618, %v5617
      %v5620 = vrot.slane %v4729, 5
      %v5621 = vsel %vm5006, %v5620, %v5619
      %v5622 = vrot.slane %v4733, 4
      %v5623 = vsel %vm5009, %v5622, %v5621
      %v5624 = vrot.slane %v4737, 3
      %v5625 = vsel %vm5012, %v5624, %v5623
      %v5626 = vrot.slane %v4741, 2
      %v5627 = vsel %vm5015, %v5626, %v5625
      %v5628 = vrot.slane %v4745, 1
      %v5629 = vsel %vm5018, %v5628, %v5627
      %v5630 = vrot.slane %v4750, 7
      %v5631 = vsel %vm5000, %v5630, %v4746
      %v5632 = vrot.slane %v4751, 7
      %v5633 = vsel %vm5000, %v5632, %v4747
      %v5634 = vrot.slane %v4752, 7
      %v5635 = vsel %vm5000, %v5634, %v4748
      %v5636 = vrot.slane %v4753, 7
      %v5637 = vsel %vm5000, %v5636, %v4749
      %v5644 = vsel %vm5076, %v5629, 0
      %v5646 = vsel %vm5076, %v5637, 0
      %5648 = vmatprep.subr.mxu0 %v5499
      %5649 = vmatpush1.msra.mxu0 %v5498
      %5650 = vmatprep.subr.mxu0 %v5497
      %5651 = vmatpush1.msra.mxu0 %v5496
      %5652 = vmatprep.subr.mxu0 %v5495
      %5653 = vmatpush1.msra.mxu0 %v5494
      %5654 = vmatprep.subr.mxu0 %v5493
      %5655 = vmatpush1.msra.mxu0 %v5492
      %5656 = vmatprep.subr.mxu0 %v5491
      %5657 = vmatpush1.msra.mxu0 %v5490
      %5658 = vmatprep.subr.mxu0 %v5489
      %5659 = vmatpush1.msra.mxu0 %v5488
      %5660 = vmatprep.subr.mxu0 %v5487
      %5661 = vmatpush1.msra.mxu0 %v5486
      %5662 = vmatprep.subr.mxu0 %v5485
      %5663 = vmatpush1.msra.mxu0 %v5484
      %5664 = vmatprep.subr.mxu0 %v5483
      %5665 = vmatpush1.msra.mxu0 %v5482
      %5666 = vmatprep.subr.mxu0 %v5481
      %5667 = vmatpush1.msra.mxu0 %v5480
      %5668 = vmatprep.subr.mxu0 %v5479
      %5669 = vmatpush1.msra.mxu0 %v5478
      %5670 = vmatprep.subr.mxu0 %v5477
      %5671 = vmatpush1.msra.mxu0 %v5476
      %5672 = vmatprep.subr.mxu0 %v5475
      %5673 = vmatpush1.msra.mxu0 %v5474
      %5674 = vmatprep.subr.mxu0 %v5473
      %5675 = vmatpush1.msra.mxu0 %v5472
      %5676 = vmatprep.subr.mxu0 %v5471
      %5677 = vmatpush1.msra.mxu0 %v5470
      %5678 = vmatprep.subr.mxu0 %v5469
      %5679 = vmatpush1.msra.mxu0 %v5468
      %5680 = vmatprep.subr.mxu0 %v5531
      %5681 = vmatpush2.msra.mxu0 %v5530
      %5682 = vmatprep.subr.mxu0 %v5529
      %5683 = vmatpush2.msra.mxu0 %v5528
      %5684 = vmatprep.subr.mxu0 %v5527
      %5685 = vmatpush2.msra.mxu0 %v5526
      %5686 = vmatprep.subr.mxu0 %v5525
      %5687 = vmatpush2.msra.mxu0 %v5524
      %5688 = vmatprep.subr.mxu0 %v5523
      %5689 = vmatpush2.msra.mxu0 %v5522
      %5690 = vmatprep.subr.mxu0 %v5521
      %5691 = vmatpush2.msra.mxu0 %v5520
      %5692 = vmatprep.subr.mxu0 %v5519
      %5693 = vmatpush2.msra.mxu0 %v5518
      %5694 = vmatprep.subr.mxu0 %v5517
      %5695 = vmatpush2.msra.mxu0 %v5516
      %5696 = vmatprep.subr.mxu0 %v5515
      %5697 = vmatpush2.msra.mxu0 %v5514
      %5698 = vmatprep.subr.mxu0 %v5513
      %5699 = vmatpush2.msra.mxu0 %v5512
      %5700 = vmatprep.subr.mxu0 %v5511
      %5701 = vmatpush2.msra.mxu0 %v5510
      %5702 = vmatprep.subr.mxu0 %v5509
      %5703 = vmatpush2.msra.mxu0 %v5508
      %5704 = vmatprep.subr.mxu0 %v5507
      %5705 = vmatpush2.msra.mxu0 %v5506
      %5706 = vmatprep.subr.mxu0 %v5505
      %5707 = vmatpush2.msra.mxu0 %v5504
      %5708 = vmatprep.subr.mxu0 %v5503
      %5709 = vmatpush2.msra.mxu0 %v5502
      %5710 = vmatprep.subr.mxu0 %v5501
      %5711 = vmatpush2.msra.mxu0 %v5500
      %5712 = vmatprep.mubr.f32.mxu0 %v5601
      %5713 = vmatmul.mubr.f32.gmra.mxu0 %v5587
      %v5714 = vpop.f32.mrf.mxu0
      %v5715 = vadd.f32 0.0, %v5714
      %v5716 = vpop.f32.mrf.mxu0
      %v5717 = vadd.f32 0.0, %v5716
      %5718 = vmatprep.mubr.f32.mxu0 %v5633
      %5719 = vmatmul.mubr.f32.gmra.mxu0 %v5631
      %v5720 = vpop.f32.mrf.mxu0
      %v5721 = vadd.f32 0.0, %v5720
      %v5722 = vpop.f32.mrf.mxu0
      %v5723 = vadd.f32 0.0, %v5722
      %5724 = vdwg.mxu0
      %5725 = vmatprep.subr.mxu0 %v5563
      %5726 = vmatpush1.msra.mxu0 %v5562
      %5727 = vmatprep.subr.mxu0 %v5561
      %5728 = vmatpush1.msra.mxu0 %v5560
      %5729 = vmatprep.subr.mxu0 %v5559
      %5730 = vmatpush1.msra.mxu0 %v5558
      %5731 = vmatprep.subr.mxu0 %v5557
      %5732 = vmatpush1.msra.mxu0 %v5556
      %5733 = vmatprep.subr.mxu0 %v5555
      %5734 = vmatpush1.msra.mxu0 %v5554
      %5735 = vmatprep.subr.mxu0 %v5553
      %5736 = vmatpush1.msra.mxu0 %v5552
      %5737 = vmatprep.subr.mxu0 %v5551
      %5738 = vmatpush1.msra.mxu0 %v5550
      %5739 = vmatprep.subr.mxu0 %v5549
      %5740 = vmatpush1.msra.mxu0 %v5548
      %5741 = vmatprep.subr.mxu0 %v5547
      %5742 = vmatpush1.msra.mxu0 %v5546
      %5743 = vmatprep.subr.mxu0 %v5545
      %5744 = vmatpush1.msra.mxu0 %v5544
      %5745 = vmatprep.subr.mxu0 %v5543
      %5746 = vmatpush1.msra.mxu0 %v5542
      %5747 = vmatprep.subr.mxu0 %v5541
      %5748 = vmatpush1.msra.mxu0 %v5540
      %5749 = vmatprep.subr.mxu0 %v5539
      %5750 = vmatpush1.msra.mxu0 %v5538
      %5751 = vmatprep.subr.mxu0 %v5537
      %5752 = vmatpush1.msra.mxu0 %v5536
      %5753 = vmatprep.subr.mxu0 %v5535
      %5754 = vmatpush1.msra.mxu0 %v5534
      %5755 = vmatprep.subr.mxu0 %v5533
      %5756 = vmatpush1.msra.mxu0 %v5532
      %5757 = vmatprep.subr.mxu0 0.0
      %5758 = vmatpush2.msra.mxu0 0.0
      %5759 = vmatprep.subr.mxu0 0.0
      %5760 = vmatpush2.msra.mxu0 0.0
      %5761 = vmatprep.subr.mxu0 0.0
      %5762 = vmatpush2.msra.mxu0 0.0
      %5763 = vmatprep.subr.mxu0 0.0
      %5764 = vmatpush2.msra.mxu0 0.0
      %5765 = vmatprep.subr.mxu0 0.0
      %5766 = vmatpush2.msra.mxu0 0.0
      %5767 = vmatprep.subr.mxu0 0.0
      %5768 = vmatpush2.msra.mxu0 0.0
      %5769 = vmatprep.subr.mxu0 0.0
      %5770 = vmatpush2.msra.mxu0 0.0
      %5771 = vmatprep.subr.mxu0 0.0
      %5772 = vmatpush2.msra.mxu0 0.0
      %5773 = vmatprep.subr.mxu0 0.0
      %5774 = vmatpush2.msra.mxu0 0.0
      %5775 = vmatprep.subr.mxu0 0.0
      %5776 = vmatpush2.msra.mxu0 0.0
      %5777 = vmatprep.subr.mxu0 0.0
      %5778 = vmatpush2.msra.mxu0 0.0
      %5779 = vmatprep.subr.mxu0 0.0
      %5780 = vmatpush2.msra.mxu0 0.0
      %5781 = vmatprep.subr.mxu0 0.0
      %5782 = vmatpush2.msra.mxu0 0.0
      %5783 = vmatprep.subr.mxu0 %v5569
      %5784 = vmatpush2.msra.mxu0 %v5568
      %5785 = vmatprep.subr.mxu0 %v5567
      %5786 = vmatpush2.msra.mxu0 %v5566
      %5787 = vmatprep.subr.mxu0 %v5565
      %5788 = vmatpush2.msra.mxu0 %v5564
      %5789 = vmatprep.mubr.f32.mxu0 %v5644
      %5790 = vmatmul.mubr.f32.gmra.mxu0 %v5615
      %v5791 = vpop.f32.mrf.mxu0
      %v5792 = vadd.f32 %v5715, %v5791
      %v5793 = vpop.f32.mrf.mxu0
      %v5794 = vadd.f32 %v5717, %v5793
      %5795 = vmatprep.mubr.f32.mxu0 %v5646
      %5796 = vmatmul.mubr.f32.gmra.mxu0 %v5635
      %v5797 = vpop.f32.mrf.mxu0
      %v5798 = vadd.f32 %v5721, %v5797
      %v5799 = vpop.f32.mrf.mxu0
      %v5800 = vadd.f32 %v5723, %v5799
      %5801 = vdwg.mxu0
      %v5802 = vadd.f32 %v5457, %v5792
      %v5803 = vadd.f32 %v5459, %v5794
      %v5804 = vadd.f32 %v5463, %v5798
      %v5805 = vadd.f32 %v5465, %v5800
      %v5806 = vld [vmem:[%s6] sm:$0x3]
      %v5808 = vlaneseq
      %v5809 = vshrl.u32 %v5808, 7
      %v5810 = vsub.s32 0, %v5809
      %v5811 = vrot.slane %v5806, %v5810
      %v5812 = vlaneseq
      %v5813 = vshrl.u32 %v5812, 7
      %v5814 = vsub.s32 1, %v5813
      %v5815 = vrot.slane %v5806, %v5814
      %v5818 = vadd.f32 %v5802, %v5811
      %v5819 = vadd.f32 %v5803, %v5815
      %v5820 = vadd.f32 %v5804, %v5811
      %v5821 = vadd.f32 %v5805, %v5815
      %v5822 = vmax.f32 %v5818, 0.0
      %v5823 = vmax.f32 %v5819, 0.0
      %v5824 = vmax.f32 %v5820, 0.0
      %v5825 = vmax.f32 %v5821, 0.0
      %v5830 = vcombine.low %v5822, %v5823
      %v5831 = vcombine.high %v5822, %v5823
      %v5833 = vunpack.c.l.s4 1966171168
      %v5834 = vunpack.c.0.s8 %v5833
      %v5835 = vlaneseq
      %v5836 = vshrl.u32 %v5835, 7
      %v5837 = vsub.s32 %v5834, %v5836
      %v5838 = vrot.slane %v5830, %v5837
      %v5840 = vunpack.c.l.s4 1966171168
      %v5841 = vunpack.c.0.s8 %v5840
      %v5842 = vlaneseq
      %v5843 = vshrl.u32 %v5842, 7
      %v5844 = vsub.s32 %v5841, %v5843
      %v5845 = vrot.slane %v5831, %v5844
      %v5846 = vcombine.high %v5838, %v5838
      %v5847 = vcombine.high %v5845, %v5845
      %v5849 = vunpack.c.l.s4 1966171168
      %v5850 = vunpack.c.0.s8 %v5849
      %v5851 = vlaneseq
      %v5852 = vshrl.u32 %v5851, 7
      %v5853 = vsub.s32 %v5850, %v5852
      %v5854 = vrot.slane %v5838, %v5853
      %v5856 = vunpack.c.l.s4 1966171168
      %v5857 = vunpack.c.0.s8 %v5856
      %v5858 = vlaneseq
      %v5859 = vshrl.u32 %v5858, 7
      %v5860 = vsub.s32 %v5857, %v5859
      %v5861 = vrot.slane %v5845, %v5860
      %v5863 = vunpack.c.l.s4 1966171168
      %v5864 = vunpack.c.0.s8 %v5863
      %v5865 = vlaneseq
      %v5866 = vshrl.u32 %v5865, 7
      %v5867 = vsub.s32 %v5864, %v5866
      %v5868 = vrot.slane %v5846, %v5867
      %v5870 = vunpack.c.l.s4 1966171168
      %v5871 = vunpack.c.0.s8 %v5870
      %v5872 = vlaneseq
      %v5873 = vshrl.u32 %v5872, 7
      %v5874 = vsub.s32 %v5871, %v5873
      %v5875 = vrot.slane %v5847, %v5874
      %v5876 = vcombine.high %v5854, %v5854
      %v5877 = vcombine.high %v5861, %v5861
      %v5878 = vcombine.high %v5868, %v5868
      %v5879 = vcombine.high %v5875, %v5875
      %v5880 = vcombine.low %v5824, %v5825
      %v5882 = vunpack.c.l.s4 1966171168
      %v5883 = vunpack.c.0.s8 %v5882
      %v5884 = vlaneseq
      %v5885 = vshrl.u32 %v5884, 7
      %v5886 = vsub.s32 %v5883, %v5885
      %v5887 = vrot.slane %v5880, %v5886
      %v5889 = vunpack.c.l.s4 1966171168
      %v5890 = vunpack.c.0.s8 %v5889
      %v5891 = vlaneseq
      %v5892 = vshrl.u32 %v5891, 7
      %v5893 = vsub.s32 %v5890, %v5892
      %v5894 = vrot.slane %v5887, %v5893
      %v5895 = vcombine.low %v5854, %v5868
      %v5897 = vunpack.c.l.s4 1966171168
      %v5898 = vunpack.c.0.s8 %v5897
      %v5899 = vlaneseq
      %v5900 = vshrl.u32 %v5899, 7
      %v5901 = vsub.s32 %v5898, %v5900
      %v5902 = vrot.slane %v5895, %v5901
      %v5904 = vunpack.c.l.s4 1966171168
      %v5905 = vunpack.c.0.s8 %v5904
      %v5906 = vlaneseq
      %v5907 = vshrl.u32 %v5906, 7
      %v5908 = vsub.s32 %v5905, %v5907
      %v5909 = vrot.slane %v5876, %v5908
      %v5910 = vcombine.low %v5902, %v5909
      %v5911 = vcombine.high %v5902, %v5909
      %v5913 = vunpack.c.l.s4 1966171168
      %v5914 = vunpack.c.0.s8 %v5913
      %v5915 = vlaneseq
      %v5916 = vshrl.u32 %v5915, 7
      %v5917 = vsub.s32 %v5914, %v5916
      %v5918 = vrot.slane %v5910, %v5917
      %v5920 = vunpack.c.l.s4 1966171168
      %v5921 = vunpack.c.0.s8 %v5920
      %v5922 = vlaneseq
      %v5923 = vshrl.u32 %v5922, 7
      %v5924 = vsub.s32 %v5921, %v5923
      %v5925 = vrot.slane %v5911, %v5924
      %v5926 = vcombine.low %v5878, %v5861
      %v5928 = vunpack.c.l.s4 1966171168
      %v5929 = vunpack.c.0.s8 %v5928
      %v5930 = vlaneseq
      %v5931 = vshrl.u32 %v5930, 7
      %v5932 = vsub.s32 %v5929, %v5931
      %v5933 = vrot.slane %v5926, %v5932
      %v5935 = vunpack.c.l.s4 1966171168
      %v5936 = vunpack.c.0.s8 %v5935
      %v5937 = vlaneseq
      %v5938 = vshrl.u32 %v5937, 7
      %v5939 = vsub.s32 %v5936, %v5938
      %v5940 = vrot.slane %v5875, %v5939
      %v5941 = vcombine.low %v5933, %v5940
      %v5942 = vcombine.high %v5933, %v5940
      %v5944 = vunpack.c.l.s4 1966171168
      %v5945 = vunpack.c.0.s8 %v5944
      %v5946 = vlaneseq
      %v5947 = vshrl.u32 %v5946, 7
      %v5948 = vsub.s32 %v5945, %v5947
      %v5949 = vrot.slane %v5941, %v5948
      %v5951 = vunpack.c.l.s4 1966171168
      %v5952 = vunpack.c.0.s8 %v5951
      %v5953 = vlaneseq
      %v5954 = vshrl.u32 %v5953, 7
      %v5955 = vsub.s32 %v5952, %v5954
      %v5956 = vrot.slane %v5942, %v5955
      %v5957 = vcombine.low %v5877, %v5879
      %v5959 = vunpack.c.l.s4 1966171168
      %v5960 = vunpack.c.0.s8 %v5959
      %v5961 = vlaneseq
      %v5962 = vshrl.u32 %v5961, 7
      %v5963 = vsub.s32 %v5960, %v5962
      %v5964 = vrot.slane %v5957, %v5963
      %v5966 = vunpack.c.l.s4 1966171168
      %v5967 = vunpack.c.0.s8 %v5966
      %v5968 = vlaneseq
      %v5969 = vshrl.u32 %v5968, 7
      %v5970 = vsub.s32 %v5967, %v5969
      %v5971 = vrot.slane %v5894, %v5970
      %v5972 = vcombine.low %v5964, %v5971
      %v5973 = vcombine.high %v5964, %v5971
      %v5975 = vunpack.c.l.s4 1966171168
      %v5976 = vunpack.c.0.s8 %v5975
      %v5977 = vlaneseq
      %v5978 = vshrl.u32 %v5977, 7
      %v5979 = vsub.s32 %v5976, %v5978
      %v5980 = vrot.slane %v5972, %v5979
      %v5982 = vunpack.c.l.s4 1966171168
      %v5983 = vunpack.c.0.s8 %v5982
      %v5984 = vlaneseq
      %v5985 = vshrl.u32 %v5984, 7
      %v5986 = vsub.s32 %v5983, %v5985
      %v5987 = vrot.slane %v5973, %v5986
      %v5994 = vsel %vm3910, %v5918, -inf
      %v5995 = vrot.slane %v5994, 4
      %v5996 = vmax.f32 %v5994, %v5995
      %v5997 = vrot.slane %v5996, 2
      %v5998 = vmax.f32 %v5996, %v5997
      %v5999 = vrot.slane %v5998, 1
      %v6000 = vmax.f32 %v5998, %v5999
      %vm6001 = vcmask 911360
      %v6002 = vsel %vm6001, %v5925, -inf
      %v6003 = vrot.slane %v6002, 4
      %v6004 = vmax.f32 %v6002, %v6003
      %v6005 = vrot.slane %v6004, 2
      %v6006 = vmax.f32 %v6004, %v6005
      %v6007 = vrot.slane %v6006, 1
      %v6008 = vmax.f32 %v6006, %v6007
      %v6009 = vsel %vm3910, %v5949, -inf
      %v6010 = vrot.slane %v6009, 4
      %v6011 = vmax.f32 %v6009, %v6010
      %v6012 = vrot.slane %v6011, 2
      %v6013 = vmax.f32 %v6011, %v6012
      %v6014 = vrot.slane %v6013, 1
      %v6015 = vmax.f32 %v6013, %v6014
      %v6016 = vsel %vm6001, %v5956, -inf
      %v6017 = vrot.slane %v6016, 4
      %v6018 = vmax.f32 %v6016, %v6017
      %v6019 = vrot.slane %v6018, 2
      %v6020 = vmax.f32 %v6018, %v6019
      %v6021 = vrot.slane %v6020, 1
      %v6022 = vmax.f32 %v6020, %v6021
      %v6023 = vsel %vm3910, %v5980, -inf
      %v6024 = vrot.slane %v6023, 4
      %v6025 = vmax.f32 %v6023, %v6024
      %v6026 = vrot.slane %v6025, 2
      %v6027 = vmax.f32 %v6025, %v6026
      %v6028 = vrot.slane %v6027, 1
      %v6029 = vmax.f32 %v6027, %v6028
      %v6030 = vsel %vm6001, %v5987, -inf
      %v6031 = vrot.slane %v6030, 4
      %v6032 = vmax.f32 %v6030, %v6031
      %v6033 = vrot.slane %v6032, 2
      %v6034 = vmax.f32 %v6032, %v6033
      %v6035 = vrot.slane %v6034, 1
      %v6036 = vmax.f32 %v6034, %v6035
      %6043 = vrot.lane.b32.xlu0 %v6000, 104
      %v6044 = vpop.permute.xlu0 %6043
      %6045 = vrot.lane.b32.xlu0 %v6008, 104
      %v6046 = vpop.permute.xlu0 %6045
      %6047 = vrot.lane.b32.xlu0 %v6015, 104
      %v6048 = vpop.permute.xlu0 %6047
      %6049 = vrot.lane.b32.xlu0 %v6022, 104
      %v6050 = vpop.permute.xlu0 %6049
      %6051 = vrot.lane.b32.xlu0 %v6029, 104
      %v6052 = vpop.permute.xlu0 %6051
      %6053 = vrot.lane.b32.xlu0 %v6036, 104
      %v6054 = vpop.permute.xlu0 %6053
      %v6055 = vsel %vm4621, %v6044, %v6046
      %v6056 = vsel %vm4621, %v6048, %v6050
      %v6057 = vsel %vm4621, %v6052, %v6054
      %v6064 = vmax.f32 %v6000, %v6055
      %v6065 = vmax.f32 %v6008, %v6046
      %v6066 = vmax.f32 %v6015, %v6056
      %v6067 = vmax.f32 %v6022, %v6050
      %v6068 = vmax.f32 %v6029, %v6057
      %v6069 = vmax.f32 %v6036, %v6054
      %6070 = vrot.lane.b32.xlu0 %v6000, 80
      %v6071 = vpop.permute.xlu0 %6070
      %6072 = vrot.lane.b32.xlu0 %v6008, 80
      %v6073 = vpop.permute.xlu0 %6072
      %6074 = vrot.lane.b32.xlu0 %v6015, 80
      %v6075 = vpop.permute.xlu0 %6074
      %6076 = vrot.lane.b32.xlu0 %v6022, 80
      %v6077 = vpop.permute.xlu0 %6076
      %6078 = vrot.lane.b32.xlu0 %v6029, 80
      %v6079 = vpop.permute.xlu0 %6078
      %6080 = vrot.lane.b32.xlu0 %v6036, 80
      %v6081 = vpop.permute.xlu0 %6080
      %vm6082 = vcmask 654336
      %v6083 = vsel %vm6082, %v6071, %v6073
      %v6084 = vsel %vm6082, %v6075, %v6077
      %v6085 = vsel %vm6082, %v6079, %v6081
      %v6092 = vmax.f32 %v6064, %v6083
      %v6093 = vmax.f32 %v6065, %v6073
      %v6094 = vmax.f32 %v6066, %v6084
      %v6095 = vmax.f32 %v6067, %v6077
      %v6096 = vmax.f32 %v6068, %v6085
      %v6097 = vmax.f32 %v6069, %v6081
      %v6098 = vld [vmem:[%s7] sm:$0xff]
      %v6099 = vld [vmem:[%s7 + $0x8] sm:$0xff]
      %v6100 = vld [vmem:[%s7 + $0x10] sm:$0xff]
      %v6101 = vld [vmem:[%s7 + $0x18] sm:$0xff]
      %v6102 = vld [vmem:[%s7 + $0x20] sm:$0xff]
      %v6103 = vld [vmem:[%s7 + $0x28] sm:$0xff]
      %v6104 = vld [vmem:[%s7 + $0x30] sm:$0xff]
      %v6105 = vld [vmem:[%s7 + $0x38] sm:$0xff]
      %v6106 = vld [vmem:[%s7 + $0x40] sm:$0xff]
      %v6107 = vld [vmem:[%s7 + $0x48] sm:$0xff]
      %v6108 = vld [vmem:[%s7 + $0x50] sm:$0xff]
      %v6109 = vld [vmem:[%s7 + $0x58] sm:$0xff]
      %v6110 = vld [vmem:[%s7 + $0x60] sm:$0xff]
      %v6111 = vld [vmem:[%s7 + $0x68] sm:$0xff]
      %v6112 = vld [vmem:[%s7 + $0x70] sm:$0xff]
      %v6113 = vld [vmem:[%s7 + $0x78] sm:$0xff]
      %v6114 = vld [vmem:[%s7 + $0x80] sm:$0xff]
      %v6115 = vld [vmem:[%s7 + $0x88] sm:$0xff]
      %v6116 = vld [vmem:[%s7 + $0x90] sm:$0xff]
      %v6117 = vld [vmem:[%s7 + $0x98] sm:$0xff]
      %v6118 = vld [vmem:[%s7 + $0xa0] sm:$0xff]
      %v6119 = vld [vmem:[%s7 + $0xa8] sm:$0xff]
      %v6120 = vld [vmem:[%s7 + $0xb0] sm:$0xff]
      %v6121 = vld [vmem:[%s7 + $0xb8] sm:$0xff]
      %v6128 = vrot.slane %v6094, 7
      %v6129 = vsel %vm5000, %v6128, %v6092
      %v6130 = vrot.slane %v6096, 6
      %v6131 = vsel %vm5003, %v6130, %v6129
      %v6132 = vrot.slane %v6095, 7
      %v6133 = vsel %vm5000, %v6132, %v6093
      %v6134 = vrot.slane %v6097, 6
      %v6135 = vsel %vm5003, %v6134, %v6133
      %vm6137 = vcmask 523264
      %v6138 = vsel %vm6137, %v6135, 0
      %6140 = vmatprep.subr.mxu0 0.0
      %6141 = vmatpush1.msra.mxu0 %v6113
      %6142 = vmatprep.subr.mxu0 0.0
      %6143 = vmatpush1.msra.mxu0 %v6112
      %6144 = vmatprep.subr.mxu0 0.0
      %6145 = vmatpush1.msra.mxu0 %v6111
      %6146 = vmatprep.subr.mxu0 0.0
      %6147 = vmatpush1.msra.mxu0 %v6110
      %6148 = vmatprep.subr.mxu0 0.0
      %6149 = vmatpush1.msra.mxu0 %v6109
      %6150 = vmatprep.subr.mxu0 0.0
      %6151 = vmatpush1.msra.mxu0 %v6108
      %6152 = vmatprep.subr.mxu0 0.0
      %6153 = vmatpush1.msra.mxu0 %v6107
      %6154 = vmatprep.subr.mxu0 0.0
      %6155 = vmatpush1.msra.mxu0 %v6106
      %6156 = vmatprep.subr.mxu0 0.0
      %6157 = vmatpush1.msra.mxu0 %v6105
      %6158 = vmatprep.subr.mxu0 0.0
      %6159 = vmatpush1.msra.mxu0 %v6104
      %6160 = vmatprep.subr.mxu0 0.0
      %6161 = vmatpush1.msra.mxu0 %v6103
      %6162 = vmatprep.subr.mxu0 0.0
      %6163 = vmatpush1.msra.mxu0 %v6102
      %6164 = vmatprep.subr.mxu0 0.0
      %6165 = vmatpush1.msra.mxu0 %v6101
      %6166 = vmatprep.subr.mxu0 0.0
      %6167 = vmatpush1.msra.mxu0 %v6100
      %6168 = vmatprep.subr.mxu0 0.0
      %6169 = vmatpush1.msra.mxu0 %v6099
      %6170 = vmatprep.subr.mxu0 0.0
      %6171 = vmatpush1.msra.mxu0 %v6098
      %6172 = vmatprep.subr.mxu0 0.0
      %6173 = vmatpush2.msra.mxu0 0.0
      %6174 = vmatprep.subr.mxu0 0.0
      %6175 = vmatpush2.msra.mxu0 0.0
      %6176 = vmatprep.subr.mxu0 0.0
      %6177 = vmatpush2.msra.mxu0 0.0
      %6178 = vmatprep.subr.mxu0 0.0
      %6179 = vmatpush2.msra.mxu0 0.0
      %6180 = vmatprep.subr.mxu0 0.0
      %6181 = vmatpush2.msra.mxu0 0.0
      %6182 = vmatprep.subr.mxu0 0.0
      %6183 = vmatpush2.msra.mxu0 0.0
      %6184 = vmatprep.subr.mxu0 0.0
      %6185 = vmatpush2.msra.mxu0 0.0
      %6186 = vmatprep.subr.mxu0 0.0
      %6187 = vmatpush2.msra.mxu0 0.0
      %6188 = vmatprep.subr.mxu0 0.0
      %6189 = vmatpush2.msra.mxu0 %v6121
      %6190 = vmatprep.subr.mxu0 0.0
      %6191 = vmatpush2.msra.mxu0 %v6120
      %6192 = vmatprep.subr.mxu0 0.0
      %6193 = vmatpush2.msra.mxu0 %v6119
      %6194 = vmatprep.subr.mxu0 0.0
      %6195 = vmatpush2.msra.mxu0 %v6118
      %6196 = vmatprep.subr.mxu0 0.0
      %6197 = vmatpush2.msra.mxu0 %v6117
      %6198 = vmatprep.subr.mxu0 0.0
      %6199 = vmatpush2.msra.mxu0 %v6116
      %6200 = vmatprep.subr.mxu0 0.0
      %6201 = vmatpush2.msra.mxu0 %v6115
      %6202 = vmatprep.subr.mxu0 0.0
      %6203 = vmatpush2.msra.mxu0 %v6114
      %6204 = vmatprep.mubr.f32.mxu0 %v6138
      %6205 = vmatmul.mubr.f32.gmra.mxu0 %v6131
      %v6206 = vpop.f32.mrf.mxu0
      %v6207 = vadd.f32 0.0, %v6206
      %v6208 = vpop.f32.mrf.mxu0
      %6209 = vdwg.mxu0
      %vm6210 = vcmask 583680
      %6211 = vst.msk [vmem:[%s303] sm:$0x7] %vm6210, %v6207
      %p6212 = scmp.lt.s32.totalorder %s19, 1
      %s6213 = scalar_select %p6212, %s19, 1
      %s6214 = smul.addr %s6213, 4
      %s6215 = scalar_lea.vmem %s8, %s6214
      // Predicated region
      $region53: #{feature_extractor_fwd.1} parent=51 // pred_check
        %p6216 = pneg %p210
      $region54: #{feature_extractor_fwd.1} parent=51 // pred_check_branch
        %6218 = sbr.rel (%p6216) target = $region56
      $region55: #{feature_extractor_fwd.1} parent=51 // pred_region
        _
      $region56: #{feature_extractor_fwd.1} parent=51 // pred_fallthru
        _
    $region52: #{feature_extractor_fwd.1} parent=5 // pred_fallthru
      _
    %p6219 = scmp.le.s32.totalorder 2, %s14
    // Predicated region
    $region57: #{feature_extractor_fwd.1} parent=5 // pred_check
      %p6220 = pneg %p6219
    $region58: #{feature_extractor_fwd.1} parent=5 // pred_check_branch
      %6222 = sbr.rel (%p6220) target = $region60
    $region59: #{feature_extractor_fwd.1} parent=5 // pred_region
      %s6223 = ssub.s32 %s14, 2
      // Predicated region
      $region61: #{feature_extractor_fwd.1} parent=59 // pred_check
        %p6224 = pneg %p216
      $region62: #{feature_extractor_fwd.1} parent=59 // pred_check_branch
        %6226 = sbr.rel (%p6224) target = $region64
      $region63: #{feature_extractor_fwd.1} parent=59 // pred_region
        %p6227 = scmp.lt.s32.totalorder %s20, 1
        %s6228 = scalar_select %p6227, %s20, 1
        %s6229 = smul.addr %s6228, 4
        %s6230 = scalar_lea.vmem %s8, %s6229
      $region64: #{feature_extractor_fwd.1} parent=59 // pred_fallthru
        _
    $region60: #{feature_extractor_fwd.1} parent=5 // pred_fallthru
      _
  $region6: #{feature_extractor_fwd.1} parent=0 // loop_footer
    %s18 = sadd.s32 1, %s14
  $region7: #{feature_extractor_fwd.1} parent=0 // loop_footer_branch
    %13 = sbr.rel target = $region3
  $region8: #{feature_extractor_fwd.1} parent=0 // loop_exit
    _

</llo_original>
